<compile_context>
chip_gen: v6e
topology: v6e:2x2x1
jax: 0.10.0
libtpu: 0.0.40
codegen_flags: <defaults>
</compile_context>

<pallas_src>
import functools

import jax
import jax.numpy as jnp
from jax.experimental import pallas as pl
from jax.experimental.pallas import tpu as pltpu


# ----------------------------------------------------------------------------
# Fused GRU kernel: block input projection (MXU, parallel over the block)
# followed by the sequential recurrence over the block's time steps.
#   grid = (batch_chunks [parallel], time_blocks [arbitrary])
# ----------------------------------------------------------------------------
def _gru_fused_kernel(emb_ref, lens_ref, h0_ref, w_ih_ref, w_hh_ref,
                      b_fold_ref, b_hhn_ref,
                      out_ref, hN_ref,
                      gi_r_ref, gi_z_ref, gi_n_ref, h_ref):
    tb = pl.program_id(1)          # time-block index (sequential axis)
    tt = out_ref.shape[0]          # steps per time block (static)

    @pl.when(tb == 0)
    def _():
        h_ref[...] = h0_ref[...]   # reset carried hidden at start of each batch chunk

    # ---- Block-hoisted input projection: independent of h, pure MXU work. ----
    # Gate-leading weights -> each gate's projection is a lane-aligned (bb, H)
    # array; biases (b_ih + b_hh for r,z) are pre-folded, n-gate hidden bias
    # stays in-loop (needed under r * (.)).
    w_ir = w_ih_ref[0]             # (E, H) bf16
    w_iz = w_ih_ref[1]
    w_in = w_ih_ref[2]
    b_r = b_fold_ref[0]            # (1, H) f32
    b_z = b_fold_ref[1]
    b_n = b_fold_ref[2]
    for s in range(tt):            # static unroll; bf16 operands, f32 accumulate
        e_s = emb_ref[s]           # (bb, E) bf16
        gi_r_ref[s] = jnp.dot(e_s, w_ir, preferred_element_type=jnp.float32) + b_r
        gi_z_ref[s] = jnp.dot(e_s, w_iz, preferred_element_type=jnp.float32) + b_z
        gi_n_ref[s] = jnp.dot(e_s, w_in, preferred_element_type=jnp.float32) + b_n

    # ---- Sequential recurrence over the block. ----
    w_hr = w_hh_ref[0]             # (H, H) bf16
    w_hz = w_hh_ref[1]
    w_hn = w_hh_ref[2]
    b_hn = b_hhn_ref[...]          # (1, H) f32
    # Hoisted per-block validity threshold: step s is valid iff s < rem[b].
    rem = lens_ref[...] - tb * tt  # (bb, 1) int32

    def step(s, h):
        hb = h.astype(jnp.bfloat16)                      # bf16 only for the MXU
        gh_r = jnp.dot(hb, w_hr, preferred_element_type=jnp.float32)
        gh_z = jnp.dot(hb, w_hz, preferred_element_type=jnp.float32)
        gh_n = jnp.dot(hb, w_hn, preferred_element_type=jnp.float32)
        # All gate math in f32 (v5e VPU/EUP have no bf16 path).
        r = jax.nn.sigmoid(gi_r_ref[s] + gh_r)
        z = jax.nn.sigmoid(gi_z_ref[s] + gh_z)
        n = jnp.tanh(gi_n_ref[s] + r * (gh_n + b_hn))
        h_new = (1.0 - z) * n + z * h
        valid = s < rem                                   # (bb, 1) packed-seq mask
        out_ref[s] = jnp.where(valid, h_new, 0.0)         # pad_packed_sequence zeros
        return jnp.where(valid, h_new, h)                 # freeze h past seq length

    # Hidden state stays in vregs across the unrolled inner loop; for very
    # large bb*H use unroll=2/4 to bound vreg pressure.
    h = jax.lax.fori_loop(0, tt, step, h_ref[...], unroll=True)
    h_ref[...] = h

    @pl.when(tb == pl.num_programs(1) - 1)
    def _():
        hN_ref[...] = h            # final hidden = h at each sequence's last valid step


@functools.partial(jax.jit, static_argnames=("time_block", "batch_block"))
def encoder_forward(emb_table, pad_seqs, seq_lengths, hidden,
                    w_ih_bf16, w_hh_bf16, b_fold, b_hh_n,
                    *, time_block=16, batch_block=None):
    """emb_table: (V,E) f32; pad_seqs: (T,B) i32; seq_lengths: (B,) i32;
    hidden: (1,B,H) f32; w_ih_bf16: (3,E,H) bf16; w_hh_bf16: (3,H,H) bf16;
    b_fold: (3,1,H) f32 (b_ih + b_hh with n-gate b_hh zeroed); b_hh_n: (1,H) f32.
    Returns ((T,B,H) f32, (1,B,H) f32)."""
    # Embedding gather + bf16 cast (fused by XLA: gather emits bf16 directly).
    # TODO(synk): optionally fuse the row-gather into the kernel via
    # PrefetchScalarGridSpec + pl.Element when E is large (v5e bandwidth).
    embedded = jnp.take(emb_table, pad_seqs, axis=0).astype(jnp.bfloat16)  # (T,B,E)

    T, B, E = embedded.shape
    H = hidden.shape[-1]

    tt = min(time_block, T)
    if batch_block is None:
        # v7x has 2 TensorCores: give the parallel axis >= 2 chunks when the
        # batch allows a sublane-aligned split. No-op at small B (test case).
        bb = B // 2 if (B % 16 == 0) else B
    else:
        bb = batch_block
    assert B % bb == 0 and (bb == B or bb % 8 == 0), "bb must be B or a multiple of 8"

    # Pad the time axis only if needed (avoids the old full-tensor gi pad).
    n_tb = pl.cdiv(T, tt)
    T_pad = n_tb * tt
    if T_pad != T:
        embedded = jnp.pad(embedded, ((0, T_pad - T), (0, 0), (0, 0)))

    lens = seq_lengths.astype(jnp.int32).reshape(B, 1)
    h0_2d = hidden[0]                                     # (B, H)

    out_shape = (
        jax.ShapeDtypeStruct((T_pad, B, H), jnp.float32),
        jax.ShapeDtypeStruct((B, H), jnp.float32),
    )

    grid_spec = pltpu.PrefetchScalarGridSpec(
        num_scalar_prefetch=0,
        grid=(B // bb, n_tb),                             # (batch chunks, time blocks)
        in_specs=[
            pl.BlockSpec((tt, bb, E), lambda b, t: (t, b, 0)),    # embedded (bf16)
            pl.BlockSpec((bb, 1), lambda b, t: (b, 0)),           # lengths
            pl.BlockSpec((bb, H), lambda b, t: (b, 0)),           # h0
            pl.BlockSpec((3, E, H), lambda b, t: (0, 0, 0)),      # W_ih gate-leading (bf16)
            pl.BlockSpec((3, H, H), lambda b, t: (0, 0, 0)),      # W_hh gate-leading (bf16)
            pl.BlockSpec((3, 1, H), lambda b, t: (0, 0, 0)),      # folded biases (r,z,n)
            pl.BlockSpec((1, H), lambda b, t: (0, 0)),            # b_hh (n gate)
        ],
        out_specs=[
            pl.BlockSpec((tt, bb, H), lambda b, t: (t, b, 0)),    # per-step outputs
            pl.BlockSpec((bb, H), lambda b, t: (b, 0)),           # final hidden (resident)
        ],
        scratch_shapes=[
            pltpu.VMEM((tt, bb, H), jnp.float32),                 # gi_r block
            pltpu.VMEM((tt, bb, H), jnp.float32),                 # gi_z block
            pltpu.VMEM((tt, bb, H), jnp.float32),                 # gi_n block
            pltpu.VMEM((bb, H), jnp.float32),                     # carried hidden
        ],
    )

    outputs, hN = pl.pallas_call(
        _gru_fused_kernel,
        out_shape=out_shape,
        grid_spec=grid_spec,
        compiler_params=pltpu.CompilerParams(
            dimension_semantics=("parallel", "arbitrary")),
    )(embedded, lens, h0_2d, w_ih_bf16, w_hh_bf16, b_fold, b_hh_n)

    if T_pad != T:
        outputs = outputs[:T]
    return outputs, hN[None]


class Encoder:
    """JAX/Pallas port of the PyTorch Encoder (Embedding + packed single-layer GRU)."""

    def __init__(self, src_dictionary_size, embed_size, hidden_size, key):
        self.hidden_size = hidden_size
        k = jax.random.split(key, 5)
        s = 1.0 / jnp.sqrt(hidden_size)
        # Embedding table (vocab, E) ~ N(0,1) like nn.Embedding.
        self.embedding = jax.random.normal(
            k[0], (src_dictionary_size, embed_size), jnp.float32)
        # GRU weights in gate-leading layout, PyTorch gate order (r, z, n),
        # pre-transposed so kernels compute x @ W[g]: W_ih: (3,E,H), W_hh: (3,H,H).
        self.w_ih = jax.random.uniform(
            k[1], (3, embed_size, hidden_size), jnp.float32, -s, s)
        self.w_hh = jax.random.uniform(
            k[2], (3, hidden_size, hidden_size), jnp.float32, -s, s)
        self.b_ih = jax.random.uniform(k[3], (3, hidden_size), jnp.float32, -s, s)
        self.b_hh = jax.random.uniform(k[4], (3, hidden_size), jnp.float32, -s, s)
        # Precomputed kernel operands: bf16 MXU weights + folded biases.
        self.w_ih_bf16 = self.w_ih.astype(jnp.bfloat16)
        self.w_hh_bf16 = self.w_hh.astype(jnp.bfloat16)
        self.b_fold = (self.b_ih + self.b_hh.at[2].set(0.0)).reshape(3, 1, hidden_size)
        self.b_hh_n = self.b_hh[2].reshape(1, hidden_size)

    def init_hidden(self, batch_size=1):
        return jnp.zeros((1, batch_size, self.hidden_size), jnp.float32)

    def forward(self, pad_seqs, seq_lengths, hidden, *, time_block=16):
        return encoder_forward(self.embedding, pad_seqs,
                               seq_lengths.astype(jnp.int32), hidden,
                               self.w_ih_bf16, self.w_hh_bf16,
                               self.b_fold, self.b_hh_n,
                               time_block=time_block)


def _reference_forward(enc, pad_seqs, seq_lengths, hidden):
    """Pure-JAX reference with the same bf16-operand / f32-accumulate matmul
    numerics as the kernel (gate math in f32), matching packed-GRU semantics."""
    emb = jnp.take(enc.embedding, pad_seqs, axis=0)               # (T,B,E) f32
    h = hidden[0]                                                 # (B,H)
    w_ih = enc.w_ih.astype(jnp.bfloat16)
    w_hh = enc.w_hh.astype(jnp.bfloat16)
    outs = []
    for t in range(emb.shape[0]):
        x = emb[t].astype(jnp.bfloat16)
        gi_r = jnp.dot(x, w_ih[0], preferred_element_type=jnp.float32) + enc.b_ih[0] + enc.b_hh[0]
        gi_z = jnp.dot(x, w_ih[1], preferred_element_type=jnp.float32) + enc.b_ih[1] + enc.b_hh[1]
        gi_n = jnp.dot(x, w_ih[2], preferred_element_type=jnp.float32) + enc.b_ih[2]
        hb = h.astype(jnp.bfloat16)
        gh_r = jnp.dot(hb, w_hh[0], preferred_element_type=jnp.float32)
        gh_z = jnp.dot(hb, w_hh[1], preferred_element_type=jnp.float32)
        gh_n = jnp.dot(hb, w_hh[2], preferred_element_type=jnp.float32)
        r = jax.nn.sigmoid(gi_r + gh_r)
        z = jax.nn.sigmoid(gi_z + gh_z)
        n = jnp.tanh(gi_n + r * (gh_n + enc.b_hh[2]))
        h_new = (1.0 - z) * n + z * h
        valid = (t < seq_lengths)[:, None]
        h = jnp.where(valid, h_new, h)
        outs.append(jnp.where(valid, h_new, 0.0))
    return jnp.stack(outs, axis=0), h[None]


if __name__ == "__main__":
    key = jax.random.PRNGKey(0)
    k_enc, k_tok = jax.random.split(key)

    vocab, embed_size, hidden_size = 16, 32, 32
    T, B = 16, 4
    # pack_padded_sequence default requires lengths sorted descending.
    seq_lengths = jnp.array([16, 12, 9, 5], dtype=jnp.int32)

    enc = Encoder(vocab, embed_size, hidden_size, k_enc)
    pad_seqs = jax.random.randint(k_tok, (T, B), 0, vocab, dtype=jnp.int32)
    h0 = enc.init_hidden(batch_size=B)

    # time_block=8 -> 2 sequential time blocks; exercises the carried hidden
    # state across blocks (default time_block is 16 for real workloads).
    outputs, hidden = enc.forward(pad_seqs, seq_lengths, h0, time_block=8)
    outputs = jax.block_until_ready(outputs)
    hidden = jax.block_until_ready(hidden)

    ref_out, ref_hid = _reference_forward(enc, pad_seqs, seq_lengths, h0)
    assert outputs.shape == (T, B, hidden_size)
    assert hidden.shape == (1, B, hidden_size)
    assert jnp.allclose(outputs, ref_out, atol=2e-3, rtol=2e-3)
    assert jnp.allclose(hidden, ref_hid, atol=2e-3, rtol=2e-3)

    print("KERNEL_OK")
</pallas_src>

<mosaic_0001>
module attributes {stable_mosaic.version = 11 : i64} {
  func.func @_gru_fused_kernel(%arg0: i32, %arg1: i32, %arg2: memref<8x4x32xbf16, #tpu.memory_space<vmem>>, %arg3: memref<4x1xi32, #tpu.memory_space<vmem>>, %arg4: memref<4x32xf32, #tpu.memory_space<vmem>>, %arg5: memref<3x32x32xbf16, #tpu.memory_space<vmem>>, %arg6: memref<3x32x32xbf16, #tpu.memory_space<vmem>>, %arg7: memref<3x1x32xf32, #tpu.memory_space<vmem>>, %arg8: memref<1x32xf32, #tpu.memory_space<vmem>>, %arg9: memref<8x4x32xf32, #tpu.memory_space<vmem>>, %arg10: memref<4x32xf32, #tpu.memory_space<vmem>>, %arg11: memref<8x4x32xf32, #tpu.memory_space<vmem>>, %arg12: memref<8x4x32xf32, #tpu.memory_space<vmem>>, %arg13: memref<8x4x32xf32, #tpu.memory_space<vmem>>, %arg14: memref<4x32xf32, #tpu.memory_space<vmem>>) attributes {dimension_semantics = [#tpu.dimension_semantics<parallel>, #tpu.dimension_semantics<arbitrary>], iteration_bounds = array<i64: 1, 2>, scalar_prefetch = 0 : i64, scratch_operands = 4 : i64, tpu.core_type = #tpu.core_type<tc>, window_params = [{transform_indices = @transform_0, window_bounds = array<i64: 8, 4, 32>}, {transform_indices = @transform_1, window_bounds = array<i64: 4, 1>}, {transform_indices = @transform_2, window_bounds = array<i64: 4, 32>}, {pipeline_mode = #tpu.pipeline_mode<synchronous>, transform_indices = @transform_3, window_bounds = array<i64: 3, 32, 32>}, {pipeline_mode = #tpu.pipeline_mode<synchronous>, transform_indices = @transform_4, window_bounds = array<i64: 3, 32, 32>}, {pipeline_mode = #tpu.pipeline_mode<synchronous>, transform_indices = @transform_5, window_bounds = array<i64: 3, 1, 32>}, {pipeline_mode = #tpu.pipeline_mode<synchronous>, transform_indices = @transform_6, window_bounds = array<i64: 1, 32>}, {transform_indices = @transform_7, window_bounds = array<i64: 8, 4, 32>}, {transform_indices = @transform_8, window_bounds = array<i64: 4, 32>}]} {
    %c0_i32 = arith.constant 0 : i32
    %0 = arith.cmpi eq, %arg1, %c0_i32 : i32
    %1 = arith.extui %0 : i1 to i32
    %c0_i32_0 = arith.constant 0 : i32
    %2 = arith.cmpi ne, %1, %c0_i32_0 : i32
    scf.if %2 {
      %c0_271 = arith.constant 0 : index
      %c0_272 = arith.constant 0 : index
      %575 = vector.load %arg4[%c0_271, %c0_272] : memref<4x32xf32, #tpu.memory_space<vmem>>, vector<4x32xf32>
      %c0_273 = arith.constant 0 : index
      %c0_274 = arith.constant 0 : index
      %576 = vector.load %arg14[%c0_273, %c0_274] : memref<4x32xf32, #tpu.memory_space<vmem>>, vector<4x32xf32>
      tpu.vector_store %arg14[%c0_273, %c0_274], %575 {strides = array<i32>} : memref<4x32xf32, #tpu.memory_space<vmem>>, vector<4x32xf32>,
    } else {
    }
    %c0 = arith.constant 0 : index
    %c0_1 = arith.constant 0 : index
    %c0_2 = arith.constant 0 : index
    %3 = vector.load %arg5[%c0, %c0_1, %c0_2] : memref<3x32x32xbf16, #tpu.memory_space<vmem>>, vector<1x32x32xbf16>
    %4 = vector.shape_cast %3 : vector<1x32x32xbf16> to vector<32x32xbf16>
    %c1 = arith.constant 1 : index
    %c0_3 = arith.constant 0 : index
    %c0_4 = arith.constant 0 : index
    %5 = vector.load %arg5[%c1, %c0_3, %c0_4] : memref<3x32x32xbf16, #tpu.memory_space<vmem>>, vector<1x32x32xbf16>
    %6 = vector.shape_cast %5 : vector<1x32x32xbf16> to vector<32x32xbf16>
    %c2 = arith.constant 2 : index
    %c0_5 = arith.constant 0 : index
    %c0_6 = arith.constant 0 : index
    %7 = vector.load %arg5[%c2, %c0_5, %c0_6] : memref<3x32x32xbf16, #tpu.memory_space<vmem>>, vector<1x32x32xbf16>
    %8 = vector.shape_cast %7 : vector<1x32x32xbf16> to vector<32x32xbf16>
    %c0_7 = arith.constant 0 : index
    %c0_8 = arith.constant 0 : index
    %c0_9 = arith.constant 0 : index
    %9 = vector.load %arg7[%c0_7, %c0_8, %c0_9] : memref<3x1x32xf32, #tpu.memory_space<vmem>>, vector<1x1x32xf32>
    %10 = vector.shape_cast %9 : vector<1x1x32xf32> to vector<1x32xf32>
    %c1_10 = arith.constant 1 : index
    %c0_11 = arith.constant 0 : index
    %c0_12 = arith.constant 0 : index
    %11 = vector.load %arg7[%c1_10, %c0_11, %c0_12] : memref<3x1x32xf32, #tpu.memory_space<vmem>>, vector<1x1x32xf32>
    %12 = vector.shape_cast %11 : vector<1x1x32xf32> to vector<1x32xf32>
    %c2_13 = arith.constant 2 : index
    %c0_14 = arith.constant 0 : index
    %c0_15 = arith.constant 0 : index
    %13 = vector.load %arg7[%c2_13, %c0_14, %c0_15] : memref<3x1x32xf32, #tpu.memory_space<vmem>>, vector<1x1x32xf32>
    %14 = vector.shape_cast %13 : vector<1x1x32xf32> to vector<1x32xf32>
    %c0_16 = arith.constant 0 : index
    %c0_17 = arith.constant 0 : index
    %c0_18 = arith.constant 0 : index
    %15 = vector.load %arg2[%c0_16, %c0_17, %c0_18] : memref<8x4x32xbf16, #tpu.memory_space<vmem>>, vector<1x4x32xbf16>
    %16 = vector.shape_cast %15 : vector<1x4x32xbf16> to vector<4x32xbf16>
    %cst = arith.constant dense<0.000000e+00> : vector<4x32xf32>
    %17 = tpu.matmul %16, %4, %cst {dimension_numbers = #tpu.dot_dimension_numbers<[1], [0], [0], [1], [0, 0, 1, 1], [], []>} : vector<4x32xbf16>, vector<32x32xbf16>, vector<4x32xf32> -> vector<4x32xf32>
    %18 = vector.broadcast %10 : vector<1x32xf32> to vector<4x32xf32>
    %19 = arith.addf %17, %18 : vector<4x32xf32>
    %c0_19 = arith.constant 0 : index
    %c0_20 = arith.constant 0 : index
    %c0_21 = arith.constant 0 : index
    %20 = vector.load %arg11[%c0_19, %c0_20, %c0_21] : memref<8x4x32xf32, #tpu.memory_space<vmem>>, vector<1x4x32xf32>
    %21 = vector.shape_cast %20 : vector<1x4x32xf32> to vector<4x32xf32>
    %22 = vector.shape_cast %19 : vector<4x32xf32> to vector<1x4x32xf32>
    tpu.vector_store %arg11[%c0_19, %c0_20, %c0_21], %22 {strides = array<i32>} : memref<8x4x32xf32, #tpu.memory_space<vmem>>, vector<1x4x32xf32>,
    %cst_22 = arith.constant dense<0.000000e+00> : vector<4x32xf32>
    %23 = tpu.matmul %16, %6, %cst_22 {dimension_numbers = #tpu.dot_dimension_numbers<[1], [0], [0], [1], [0, 0, 1, 1], [], []>} : vector<4x32xbf16>, vector<32x32xbf16>, vector<4x32xf32> -> vector<4x32xf32>
    %24 = vector.broadcast %12 : vector<1x32xf32> to vector<4x32xf32>
    %25 = arith.addf %23, %24 : vector<4x32xf32>
    %c0_23 = arith.constant 0 : index
    %c0_24 = arith.constant 0 : index
    %c0_25 = arith.constant 0 : index
    %26 = vector.load %arg12[%c0_23, %c0_24, %c0_25] : memref<8x4x32xf32, #tpu.memory_space<vmem>>, vector<1x4x32xf32>
    %27 = vector.shape_cast %26 : vector<1x4x32xf32> to vector<4x32xf32>
    %28 = vector.shape_cast %25 : vector<4x32xf32> to vector<1x4x32xf32>
    tpu.vector_store %arg12[%c0_23, %c0_24, %c0_25], %28 {strides = array<i32>} : memref<8x4x32xf32, #tpu.memory_space<vmem>>, vector<1x4x32xf32>,
    %cst_26 = arith.constant dense<0.000000e+00> : vector<4x32xf32>
    %29 = tpu.matmul %16, %8, %cst_26 {dimension_numbers = #tpu.dot_dimension_numbers<[1], [0], [0], [1], [0, 0, 1, 1], [], []>} : vector<4x32xbf16>, vector<32x32xbf16>, vector<4x32xf32> -> vector<4x32xf32>
    %30 = vector.broadcast %14 : vector<1x32xf32> to vector<4x32xf32>
    %31 = arith.addf %29, %30 : vector<4x32xf32>
    %c0_27 = arith.constant 0 : index
    %c0_28 = arith.constant 0 : index
    %c0_29 = arith.constant 0 : index
    %32 = vector.load %arg13[%c0_27, %c0_28, %c0_29] : memref<8x4x32xf32, #tpu.memory_space<vmem>>, vector<1x4x32xf32>
    %33 = vector.shape_cast %32 : vector<1x4x32xf32> to vector<4x32xf32>
    %34 = vector.shape_cast %31 : vector<4x32xf32> to vector<1x4x32xf32>
    tpu.vector_store %arg13[%c0_27, %c0_28, %c0_29], %34 {strides = array<i32>} : memref<8x4x32xf32, #tpu.memory_space<vmem>>, vector<1x4x32xf32>,
    %c1_30 = arith.constant 1 : index
    %c0_31 = arith.constant 0 : index
    %c0_32 = arith.constant 0 : index
    %35 = vector.load %arg2[%c1_30, %c0_31, %c0_32] : memref<8x4x32xbf16, #tpu.memory_space<vmem>>, vector<1x4x32xbf16>
    %36 = vector.shape_cast %35 : vector<1x4x32xbf16> to vector<4x32xbf16>
    %cst_33 = arith.constant dense<0.000000e+00> : vector<4x32xf32>
    %37 = tpu.matmul %36, %4, %cst_33 {dimension_numbers = #tpu.dot_dimension_numbers<[1], [0], [0], [1], [0, 0, 1, 1], [], []>} : vector<4x32xbf16>, vector<32x32xbf16>, vector<4x32xf32> -> vector<4x32xf32>
    %38 = vector.broadcast %10 : vector<1x32xf32> to vector<4x32xf32>
    %39 = arith.addf %37, %38 : vector<4x32xf32>
    %c1_34 = arith.constant 1 : index
    %c0_35 = arith.constant 0 : index
    %c0_36 = arith.constant 0 : index
    %40 = vector.load %arg11[%c1_34, %c0_35, %c0_36] : memref<8x4x32xf32, #tpu.memory_space<vmem>>, vector<1x4x32xf32>
    %41 = vector.shape_cast %40 : vector<1x4x32xf32> to vector<4x32xf32>
    %42 = vector.shape_cast %39 : vector<4x32xf32> to vector<1x4x32xf32>
    tpu.vector_store %arg11[%c1_34, %c0_35, %c0_36], %42 {strides = array<i32>} : memref<8x4x32xf32, #tpu.memory_space<vmem>>, vector<1x4x32xf32>,
    %cst_37 = arith.constant dense<0.000000e+00> : vector<4x32xf32>
    %43 = tpu.matmul %36, %6, %cst_37 {dimension_numbers = #tpu.dot_dimension_numbers<[1], [0], [0], [1], [0, 0, 1, 1], [], []>} : vector<4x32xbf16>, vector<32x32xbf16>, vector<4x32xf32> -> vector<4x32xf32>
    %44 = vector.broadcast %12 : vector<1x32xf32> to vector<4x32xf32>
    %45 = arith.addf %43, %44 : vector<4x32xf32>
    %c1_38 = arith.constant 1 : index
    %c0_39 = arith.constant 0 : index
    %c0_40 = arith.constant 0 : index
    %46 = vector.load %arg12[%c1_38, %c0_39, %c0_40] : memref<8x4x32xf32, #tpu.memory_space<vmem>>, vector<1x4x32xf32>
    %47 = vector.shape_cast %46 : vector<1x4x32xf32> to vector<4x32xf32>
    %48 = vector.shape_cast %45 : vector<4x32xf32> to vector<1x4x32xf32>
    tpu.vector_store %arg12[%c1_38, %c0_39, %c0_40], %48 {strides = array<i32>} : memref<8x4x32xf32, #tpu.memory_space<vmem>>, vector<1x4x32xf32>,
    %cst_41 = arith.constant dense<0.000000e+00> : vector<4x32xf32>
    %49 = tpu.matmul %36, %8, %cst_41 {dimension_numbers = #tpu.dot_dimension_numbers<[1], [0], [0], [1], [0, 0, 1, 1], [], []>} : vector<4x32xbf16>, vector<32x32xbf16>, vector<4x32xf32> -> vector<4x32xf32>
    %50 = vector.broadcast %14 : vector<1x32xf32> to vector<4x32xf32>
    %51 = arith.addf %49, %50 : vector<4x32xf32>
    %c1_42 = arith.constant 1 : index
    %c0_43 = arith.constant 0 : index
    %c0_44 = arith.constant 0 : index
    %52 = vector.load %arg13[%c1_42, %c0_43, %c0_44] : memref<8x4x32xf32, #tpu.memory_space<vmem>>, vector<1x4x32xf32>
    %53 = vector.shape_cast %52 : vector<1x4x32xf32> to vector<4x32xf32>
    %54 = vector.shape_cast %51 : vector<4x32xf32> to vector<1x4x32xf32>
    tpu.vector_store %arg13[%c1_42, %c0_43, %c0_44], %54 {strides = array<i32>} : memref<8x4x32xf32, #tpu.memory_space<vmem>>, vector<1x4x32xf32>,
    %c2_45 = arith.constant 2 : index
    %c0_46 = arith.constant 0 : index
    %c0_47 = arith.constant 0 : index
    %55 = vector.load %arg2[%c2_45, %c0_46, %c0_47] : memref<8x4x32xbf16, #tpu.memory_space<vmem>>, vector<1x4x32xbf16>
    %56 = vector.shape_cast %55 : vector<1x4x32xbf16> to vector<4x32xbf16>
    %cst_48 = arith.constant dense<0.000000e+00> : vector<4x32xf32>
    %57 = tpu.matmul %56, %4, %cst_48 {dimension_numbers = #tpu.dot_dimension_numbers<[1], [0], [0], [1], [0, 0, 1, 1], [], []>} : vector<4x32xbf16>, vector<32x32xbf16>, vector<4x32xf32> -> vector<4x32xf32>
    %58 = vector.broadcast %10 : vector<1x32xf32> to vector<4x32xf32>
    %59 = arith.addf %57, %58 : vector<4x32xf32>
    %c2_49 = arith.constant 2 : index
    %c0_50 = arith.constant 0 : index
    %c0_51 = arith.constant 0 : index
    %60 = vector.load %arg11[%c2_49, %c0_50, %c0_51] : memref<8x4x32xf32, #tpu.memory_space<vmem>>, vector<1x4x32xf32>
    %61 = vector.shape_cast %60 : vector<1x4x32xf32> to vector<4x32xf32>
    %62 = vector.shape_cast %59 : vector<4x32xf32> to vector<1x4x32xf32>
    tpu.vector_store %arg11[%c2_49, %c0_50, %c0_51], %62 {strides = array<i32>} : memref<8x4x32xf32, #tpu.memory_space<vmem>>, vector<1x4x32xf32>,
    %cst_52 = arith.constant dense<0.000000e+00> : vector<4x32xf32>
    %63 = tpu.matmul %56, %6, %cst_52 {dimension_numbers = #tpu.dot_dimension_numbers<[1], [0], [0], [1], [0, 0, 1, 1], [], []>} : vector<4x32xbf16>, vector<32x32xbf16>, vector<4x32xf32> -> vector<4x32xf32>
    %64 = vector.broadcast %12 : vector<1x32xf32> to vector<4x32xf32>
    %65 = arith.addf %63, %64 : vector<4x32xf32>
    %c2_53 = arith.constant 2 : index
    %c0_54 = arith.constant 0 : index
    %c0_55 = arith.constant 0 : index
    %66 = vector.load %arg12[%c2_53, %c0_54, %c0_55] : memref<8x4x32xf32, #tpu.memory_space<vmem>>, vector<1x4x32xf32>
    %67 = vector.shape_cast %66 : vector<1x4x32xf32> to vector<4x32xf32>
    %68 = vector.shape_cast %65 : vector<4x32xf32> to vector<1x4x32xf32>
    tpu.vector_store %arg12[%c2_53, %c0_54, %c0_55], %68 {strides = array<i32>} : memref<8x4x32xf32, #tpu.memory_space<vmem>>, vector<1x4x32xf32>,
    %cst_56 = arith.constant dense<0.000000e+00> : vector<4x32xf32>
    %69 = tpu.matmul %56, %8, %cst_56 {dimension_numbers = #tpu.dot_dimension_numbers<[1], [0], [0], [1], [0, 0, 1, 1], [], []>} : vector<4x32xbf16>, vector<32x32xbf16>, vector<4x32xf32> -> vector<4x32xf32>
    %70 = vector.broadcast %14 : vector<1x32xf32> to vector<4x32xf32>
    %71 = arith.addf %69, %70 : vector<4x32xf32>
    %c2_57 = arith.constant 2 : index
    %c0_58 = arith.constant 0 : index
    %c0_59 = arith.constant 0 : index
    %72 = vector.load %arg13[%c2_57, %c0_58, %c0_59] : memref<8x4x32xf32, #tpu.memory_space<vmem>>, vector<1x4x32xf32>
    %73 = vector.shape_cast %72 : vector<1x4x32xf32> to vector<4x32xf32>
    %74 = vector.shape_cast %71 : vector<4x32xf32> to vector<1x4x32xf32>
    tpu.vector_store %arg13[%c2_57, %c0_58, %c0_59], %74 {strides = array<i32>} : memref<8x4x32xf32, #tpu.memory_space<vmem>>, vector<1x4x32xf32>,
    %c3 = arith.constant 3 : index
    %c0_60 = arith.constant 0 : index
    %c0_61 = arith.constant 0 : index
    %75 = vector.load %arg2[%c3, %c0_60, %c0_61] : memref<8x4x32xbf16, #tpu.memory_space<vmem>>, vector<1x4x32xbf16>
    %76 = vector.shape_cast %75 : vector<1x4x32xbf16> to vector<4x32xbf16>
    %cst_62 = arith.constant dense<0.000000e+00> : vector<4x32xf32>
    %77 = tpu.matmul %76, %4, %cst_62 {dimension_numbers = #tpu.dot_dimension_numbers<[1], [0], [0], [1], [0, 0, 1, 1], [], []>} : vector<4x32xbf16>, vector<32x32xbf16>, vector<4x32xf32> -> vector<4x32xf32>
    %78 = vector.broadcast %10 : vector<1x32xf32> to vector<4x32xf32>
    %79 = arith.addf %77, %78 : vector<4x32xf32>
    %c3_63 = arith.constant 3 : index
    %c0_64 = arith.constant 0 : index
    %c0_65 = arith.constant 0 : index
    %80 = vector.load %arg11[%c3_63, %c0_64, %c0_65] : memref<8x4x32xf32, #tpu.memory_space<vmem>>, vector<1x4x32xf32>
    %81 = vector.shape_cast %80 : vector<1x4x32xf32> to vector<4x32xf32>
    %82 = vector.shape_cast %79 : vector<4x32xf32> to vector<1x4x32xf32>
    tpu.vector_store %arg11[%c3_63, %c0_64, %c0_65], %82 {strides = array<i32>} : memref<8x4x32xf32, #tpu.memory_space<vmem>>, vector<1x4x32xf32>,
    %cst_66 = arith.constant dense<0.000000e+00> : vector<4x32xf32>
    %83 = tpu.matmul %76, %6, %cst_66 {dimension_numbers = #tpu.dot_dimension_numbers<[1], [0], [0], [1], [0, 0, 1, 1], [], []>} : vector<4x32xbf16>, vector<32x32xbf16>, vector<4x32xf32> -> vector<4x32xf32>
    %84 = vector.broadcast %12 : vector<1x32xf32> to vector<4x32xf32>
    %85 = arith.addf %83, %84 : vector<4x32xf32>
    %c3_67 = arith.constant 3 : index
    %c0_68 = arith.constant 0 : index
    %c0_69 = arith.constant 0 : index
    %86 = vector.load %arg12[%c3_67, %c0_68, %c0_69] : memref<8x4x32xf32, #tpu.memory_space<vmem>>, vector<1x4x32xf32>
    %87 = vector.shape_cast %86 : vector<1x4x32xf32> to vector<4x32xf32>
    %88 = vector.shape_cast %85 : vector<4x32xf32> to vector<1x4x32xf32>
    tpu.vector_store %arg12[%c3_67, %c0_68, %c0_69], %88 {strides = array<i32>} : memref<8x4x32xf32, #tpu.memory_space<vmem>>, vector<1x4x32xf32>,
    %cst_70 = arith.constant dense<0.000000e+00> : vector<4x32xf32>
    %89 = tpu.matmul %76, %8, %cst_70 {dimension_numbers = #tpu.dot_dimension_numbers<[1], [0], [0], [1], [0, 0, 1, 1], [], []>} : vector<4x32xbf16>, vector<32x32xbf16>, vector<4x32xf32> -> vector<4x32xf32>
    %90 = vector.broadcast %14 : vector<1x32xf32> to vector<4x32xf32>
    %91 = arith.addf %89, %90 : vector<4x32xf32>
    %c3_71 = arith.constant 3 : index
    %c0_72 = arith.constant 0 : index
    %c0_73 = arith.constant 0 : index
    %92 = vector.load %arg13[%c3_71, %c0_72, %c0_73] : memref<8x4x32xf32, #tpu.memory_space<vmem>>, vector<1x4x32xf32>
    %93 = vector.shape_cast %92 : vector<1x4x32xf32> to vector<4x32xf32>
    %94 = vector.shape_cast %91 : vector<4x32xf32> to vector<1x4x32xf32>
    tpu.vector_store %arg13[%c3_71, %c0_72, %c0_73], %94 {strides = array<i32>} : memref<8x4x32xf32, #tpu.memory_space<vmem>>, vector<1x4x32xf32>,
    %c4 = arith.constant 4 : index
    %c0_74 = arith.constant 0 : index
    %c0_75 = arith.constant 0 : index
    %95 = vector.load %arg2[%c4, %c0_74, %c0_75] : memref<8x4x32xbf16, #tpu.memory_space<vmem>>, vector<1x4x32xbf16>
    %96 = vector.shape_cast %95 : vector<1x4x32xbf16> to vector<4x32xbf16>
    %cst_76 = arith.constant dense<0.000000e+00> : vector<4x32xf32>
    %97 = tpu.matmul %96, %4, %cst_76 {dimension_numbers = #tpu.dot_dimension_numbers<[1], [0], [0], [1], [0, 0, 1, 1], [], []>} : vector<4x32xbf16>, vector<32x32xbf16>, vector<4x32xf32> -> vector<4x32xf32>
    %98 = vector.broadcast %10 : vector<1x32xf32> to vector<4x32xf32>
    %99 = arith.addf %97, %98 : vector<4x32xf32>
    %c4_77 = arith.constant 4 : index
    %c0_78 = arith.constant 0 : index
    %c0_79 = arith.constant 0 : index
    %100 = vector.load %arg11[%c4_77, %c0_78, %c0_79] : memref<8x4x32xf32, #tpu.memory_space<vmem>>, vector<1x4x32xf32>
    %101 = vector.shape_cast %100 : vector<1x4x32xf32> to vector<4x32xf32>
    %102 = vector.shape_cast %99 : vector<4x32xf32> to vector<1x4x32xf32>
    tpu.vector_store %arg11[%c4_77, %c0_78, %c0_79], %102 {strides = array<i32>} : memref<8x4x32xf32, #tpu.memory_space<vmem>>, vector<1x4x32xf32>,
    %cst_80 = arith.constant dense<0.000000e+00> : vector<4x32xf32>
    %103 = tpu.matmul %96, %6, %cst_80 {dimension_numbers = #tpu.dot_dimension_numbers<[1], [0], [0], [1], [0, 0, 1, 1], [], []>} : vector<4x32xbf16>, vector<32x32xbf16>, vector<4x32xf32> -> vector<4x32xf32>
    %104 = vector.broadcast %12 : vector<1x32xf32> to vector<4x32xf32>
    %105 = arith.addf %103, %104 : vector<4x32xf32>
    %c4_81 = arith.constant 4 : index
    %c0_82 = arith.constant 0 : index
    %c0_83 = arith.constant 0 : index
    %106 = vector.load %arg12[%c4_81, %c0_82, %c0_83] : memref<8x4x32xf32, #tpu.memory_space<vmem>>, vector<1x4x32xf32>
    %107 = vector.shape_cast %106 : vector<1x4x32xf32> to vector<4x32xf32>
    %108 = vector.shape_cast %105 : vector<4x32xf32> to vector<1x4x32xf32>
    tpu.vector_store %arg12[%c4_81, %c0_82, %c0_83], %108 {strides = array<i32>} : memref<8x4x32xf32, #tpu.memory_space<vmem>>, vector<1x4x32xf32>,
    %cst_84 = arith.constant dense<0.000000e+00> : vector<4x32xf32>
    %109 = tpu.matmul %96, %8, %cst_84 {dimension_numbers = #tpu.dot_dimension_numbers<[1], [0], [0], [1], [0, 0, 1, 1], [], []>} : vector<4x32xbf16>, vector<32x32xbf16>, vector<4x32xf32> -> vector<4x32xf32>
    %110 = vector.broadcast %14 : vector<1x32xf32> to vector<4x32xf32>
    %111 = arith.addf %109, %110 : vector<4x32xf32>
    %c4_85 = arith.constant 4 : index
    %c0_86 = arith.constant 0 : index
    %c0_87 = arith.constant 0 : index
    %112 = vector.load %arg13[%c4_85, %c0_86, %c0_87] : memref<8x4x32xf32, #tpu.memory_space<vmem>>, vector<1x4x32xf32>
    %113 = vector.shape_cast %112 : vector<1x4x32xf32> to vector<4x32xf32>
    %114 = vector.shape_cast %111 : vector<4x32xf32> to vector<1x4x32xf32>
    tpu.vector_store %arg13[%c4_85, %c0_86, %c0_87], %114 {strides = array<i32>} : memref<8x4x32xf32, #tpu.memory_space<vmem>>, vector<1x4x32xf32>,
    %c5 = arith.constant 5 : index
    %c0_88 = arith.constant 0 : index
    %c0_89 = arith.constant 0 : index
    %115 = vector.load %arg2[%c5, %c0_88, %c0_89] : memref<8x4x32xbf16, #tpu.memory_space<vmem>>, vector<1x4x32xbf16>
    %116 = vector.shape_cast %115 : vector<1x4x32xbf16> to vector<4x32xbf16>
    %cst_90 = arith.constant dense<0.000000e+00> : vector<4x32xf32>
    %117 = tpu.matmul %116, %4, %cst_90 {dimension_numbers = #tpu.dot_dimension_numbers<[1], [0], [0], [1], [0, 0, 1, 1], [], []>} : vector<4x32xbf16>, vector<32x32xbf16>, vector<4x32xf32> -> vector<4x32xf32>
    %118 = vector.broadcast %10 : vector<1x32xf32> to vector<4x32xf32>
    %119 = arith.addf %117, %118 : vector<4x32xf32>
    %c5_91 = arith.constant 5 : index
    %c0_92 = arith.constant 0 : index
    %c0_93 = arith.constant 0 : index
    %120 = vector.load %arg11[%c5_91, %c0_92, %c0_93] : memref<8x4x32xf32, #tpu.memory_space<vmem>>, vector<1x4x32xf32>
    %121 = vector.shape_cast %120 : vector<1x4x32xf32> to vector<4x32xf32>
    %122 = vector.shape_cast %119 : vector<4x32xf32> to vector<1x4x32xf32>
    tpu.vector_store %arg11[%c5_91, %c0_92, %c0_93], %122 {strides = array<i32>} : memref<8x4x32xf32, #tpu.memory_space<vmem>>, vector<1x4x32xf32>,
    %cst_94 = arith.constant dense<0.000000e+00> : vector<4x32xf32>
    %123 = tpu.matmul %116, %6, %cst_94 {dimension_numbers = #tpu.dot_dimension_numbers<[1], [0], [0], [1], [0, 0, 1, 1], [], []>} : vector<4x32xbf16>, vector<32x32xbf16>, vector<4x32xf32> -> vector<4x32xf32>
    %124 = vector.broadcast %12 : vector<1x32xf32> to vector<4x32xf32>
    %125 = arith.addf %123, %124 : vector<4x32xf32>
    %c5_95 = arith.constant 5 : index
    %c0_96 = arith.constant 0 : index
    %c0_97 = arith.constant 0 : index
    %126 = vector.load %arg12[%c5_95, %c0_96, %c0_97] : memref<8x4x32xf32, #tpu.memory_space<vmem>>, vector<1x4x32xf32>
    %127 = vector.shape_cast %126 : vector<1x4x32xf32> to vector<4x32xf32>
    %128 = vector.shape_cast %125 : vector<4x32xf32> to vector<1x4x32xf32>
    tpu.vector_store %arg12[%c5_95, %c0_96, %c0_97], %128 {strides = array<i32>} : memref<8x4x32xf32, #tpu.memory_space<vmem>>, vector<1x4x32xf32>,
    %cst_98 = arith.constant dense<0.000000e+00> : vector<4x32xf32>
    %129 = tpu.matmul %116, %8, %cst_98 {dimension_numbers = #tpu.dot_dimension_numbers<[1], [0], [0], [1], [0, 0, 1, 1], [], []>} : vector<4x32xbf16>, vector<32x32xbf16>, vector<4x32xf32> -> vector<4x32xf32>
    %130 = vector.broadcast %14 : vector<1x32xf32> to vector<4x32xf32>
    %131 = arith.addf %129, %130 : vector<4x32xf32>
    %c5_99 = arith.constant 5 : index
    %c0_100 = arith.constant 0 : index
    %c0_101 = arith.constant 0 : index
    %132 = vector.load %arg13[%c5_99, %c0_100, %c0_101] : memref<8x4x32xf32, #tpu.memory_space<vmem>>, vector<1x4x32xf32>
    %133 = vector.shape_cast %132 : vector<1x4x32xf32> to vector<4x32xf32>
    %134 = vector.shape_cast %131 : vector<4x32xf32> to vector<1x4x32xf32>
    tpu.vector_store %arg13[%c5_99, %c0_100, %c0_101], %134 {strides = array<i32>} : memref<8x4x32xf32, #tpu.memory_space<vmem>>, vector<1x4x32xf32>,
    %c6 = arith.constant 6 : index
    %c0_102 = arith.constant 0 : index
    %c0_103 = arith.constant 0 : index
    %135 = vector.load %arg2[%c6, %c0_102, %c0_103] : memref<8x4x32xbf16, #tpu.memory_space<vmem>>, vector<1x4x32xbf16>
    %136 = vector.shape_cast %135 : vector<1x4x32xbf16> to vector<4x32xbf16>
    %cst_104 = arith.constant dense<0.000000e+00> : vector<4x32xf32>
    %137 = tpu.matmul %136, %4, %cst_104 {dimension_numbers = #tpu.dot_dimension_numbers<[1], [0], [0], [1], [0, 0, 1, 1], [], []>} : vector<4x32xbf16>, vector<32x32xbf16>, vector<4x32xf32> -> vector<4x32xf32>
    %138 = vector.broadcast %10 : vector<1x32xf32> to vector<4x32xf32>
    %139 = arith.addf %137, %138 : vector<4x32xf32>
    %c6_105 = arith.constant 6 : index
    %c0_106 = arith.constant 0 : index
    %c0_107 = arith.constant 0 : index
    %140 = vector.load %arg11[%c6_105, %c0_106, %c0_107] : memref<8x4x32xf32, #tpu.memory_space<vmem>>, vector<1x4x32xf32>
    %141 = vector.shape_cast %140 : vector<1x4x32xf32> to vector<4x32xf32>
    %142 = vector.shape_cast %139 : vector<4x32xf32> to vector<1x4x32xf32>
    tpu.vector_store %arg11[%c6_105, %c0_106, %c0_107], %142 {strides = array<i32>} : memref<8x4x32xf32, #tpu.memory_space<vmem>>, vector<1x4x32xf32>,
    %cst_108 = arith.constant dense<0.000000e+00> : vector<4x32xf32>
    %143 = tpu.matmul %136, %6, %cst_108 {dimension_numbers = #tpu.dot_dimension_numbers<[1], [0], [0], [1], [0, 0, 1, 1], [], []>} : vector<4x32xbf16>, vector<32x32xbf16>, vector<4x32xf32> -> vector<4x32xf32>
    %144 = vector.broadcast %12 : vector<1x32xf32> to vector<4x32xf32>
    %145 = arith.addf %143, %144 : vector<4x32xf32>
    %c6_109 = arith.constant 6 : index
    %c0_110 = arith.constant 0 : index
    %c0_111 = arith.constant 0 : index
    %146 = vector.load %arg12[%c6_109, %c0_110, %c0_111] : memref<8x4x32xf32, #tpu.memory_space<vmem>>, vector<1x4x32xf32>
    %147 = vector.shape_cast %146 : vector<1x4x32xf32> to vector<4x32xf32>
    %148 = vector.shape_cast %145 : vector<4x32xf32> to vector<1x4x32xf32>
    tpu.vector_store %arg12[%c6_109, %c0_110, %c0_111], %148 {strides = array<i32>} : memref<8x4x32xf32, #tpu.memory_space<vmem>>, vector<1x4x32xf32>,
    %cst_112 = arith.constant dense<0.000000e+00> : vector<4x32xf32>
    %149 = tpu.matmul %136, %8, %cst_112 {dimension_numbers = #tpu.dot_dimension_numbers<[1], [0], [0], [1], [0, 0, 1, 1], [], []>} : vector<4x32xbf16>, vector<32x32xbf16>, vector<4x32xf32> -> vector<4x32xf32>
    %150 = vector.broadcast %14 : vector<1x32xf32> to vector<4x32xf32>
    %151 = arith.addf %149, %150 : vector<4x32xf32>
    %c6_113 = arith.constant 6 : index
    %c0_114 = arith.constant 0 : index
    %c0_115 = arith.constant 0 : index
    %152 = vector.load %arg13[%c6_113, %c0_114, %c0_115] : memref<8x4x32xf32, #tpu.memory_space<vmem>>, vector<1x4x32xf32>
    %153 = vector.shape_cast %152 : vector<1x4x32xf32> to vector<4x32xf32>
    %154 = vector.shape_cast %151 : vector<4x32xf32> to vector<1x4x32xf32>
    tpu.vector_store %arg13[%c6_113, %c0_114, %c0_115], %154 {strides = array<i32>} : memref<8x4x32xf32, #tpu.memory_space<vmem>>, vector<1x4x32xf32>,
    %c7 = arith.constant 7 : index
    %c0_116 = arith.constant 0 : index
    %c0_117 = arith.constant 0 : index
    %155 = vector.load %arg2[%c7, %c0_116, %c0_117] : memref<8x4x32xbf16, #tpu.memory_space<vmem>>, vector<1x4x32xbf16>
    %156 = vector.shape_cast %155 : vector<1x4x32xbf16> to vector<4x32xbf16>
    %cst_118 = arith.constant dense<0.000000e+00> : vector<4x32xf32>
    %157 = tpu.matmul %156, %4, %cst_118 {dimension_numbers = #tpu.dot_dimension_numbers<[1], [0], [0], [1], [0, 0, 1, 1], [], []>} : vector<4x32xbf16>, vector<32x32xbf16>, vector<4x32xf32> -> vector<4x32xf32>
    %158 = vector.broadcast %10 : vector<1x32xf32> to vector<4x32xf32>
    %159 = arith.addf %157, %158 : vector<4x32xf32>
    %c7_119 = arith.constant 7 : index
    %c0_120 = arith.constant 0 : index
    %c0_121 = arith.constant 0 : index
    %160 = vector.load %arg11[%c7_119, %c0_120, %c0_121] : memref<8x4x32xf32, #tpu.memory_space<vmem>>, vector<1x4x32xf32>
    %161 = vector.shape_cast %160 : vector<1x4x32xf32> to vector<4x32xf32>
    %162 = vector.shape_cast %159 : vector<4x32xf32> to vector<1x4x32xf32>
    tpu.vector_store %arg11[%c7_119, %c0_120, %c0_121], %162 {strides = array<i32>} : memref<8x4x32xf32, #tpu.memory_space<vmem>>, vector<1x4x32xf32>,
    %cst_122 = arith.constant dense<0.000000e+00> : vector<4x32xf32>
    %163 = tpu.matmul %156, %6, %cst_122 {dimension_numbers = #tpu.dot_dimension_numbers<[1], [0], [0], [1], [0, 0, 1, 1], [], []>} : vector<4x32xbf16>, vector<32x32xbf16>, vector<4x32xf32> -> vector<4x32xf32>
    %164 = vector.broadcast %12 : vector<1x32xf32> to vector<4x32xf32>
    %165 = arith.addf %163, %164 : vector<4x32xf32>
    %c7_123 = arith.constant 7 : index
    %c0_124 = arith.constant 0 : index
    %c0_125 = arith.constant 0 : index
    %166 = vector.load %arg12[%c7_123, %c0_124, %c0_125] : memref<8x4x32xf32, #tpu.memory_space<vmem>>, vector<1x4x32xf32>
    %167 = vector.shape_cast %166 : vector<1x4x32xf32> to vector<4x32xf32>
    %168 = vector.shape_cast %165 : vector<4x32xf32> to vector<1x4x32xf32>
    tpu.vector_store %arg12[%c7_123, %c0_124, %c0_125], %168 {strides = array<i32>} : memref<8x4x32xf32, #tpu.memory_space<vmem>>, vector<1x4x32xf32>,
    %cst_126 = arith.constant dense<0.000000e+00> : vector<4x32xf32>
    %169 = tpu.matmul %156, %8, %cst_126 {dimension_numbers = #tpu.dot_dimension_numbers<[1], [0], [0], [1], [0, 0, 1, 1], [], []>} : vector<4x32xbf16>, vector<32x32xbf16>, vector<4x32xf32> -> vector<4x32xf32>
    %170 = vector.broadcast %14 : vector<1x32xf32> to vector<4x32xf32>
    %171 = arith.addf %169, %170 : vector<4x32xf32>
    %c7_127 = arith.constant 7 : index
    %c0_128 = arith.constant 0 : index
    %c0_129 = arith.constant 0 : index
    %172 = vector.load %arg13[%c7_127, %c0_128, %c0_129] : memref<8x4x32xf32, #tpu.memory_space<vmem>>, vector<1x4x32xf32>
    %173 = vector.shape_cast %172 : vector<1x4x32xf32> to vector<4x32xf32>
    %174 = vector.shape_cast %171 : vector<4x32xf32> to vector<1x4x32xf32>
    tpu.vector_store %arg13[%c7_127, %c0_128, %c0_129], %174 {strides = array<i32>} : memref<8x4x32xf32, #tpu.memory_space<vmem>>, vector<1x4x32xf32>,
    %c0_130 = arith.constant 0 : index
    %c0_131 = arith.constant 0 : index
    %c0_132 = arith.constant 0 : index
    %175 = vector.load %arg6[%c0_130, %c0_131, %c0_132] : memref<3x32x32xbf16, #tpu.memory_space<vmem>>, vector<1x32x32xbf16>
    %176 = vector.shape_cast %175 : vector<1x32x32xbf16> to vector<32x32xbf16>
    %c1_133 = arith.constant 1 : index
    %c0_134 = arith.constant 0 : index
    %c0_135 = arith.constant 0 : index
    %177 = vector.load %arg6[%c1_133, %c0_134, %c0_135] : memref<3x32x32xbf16, #tpu.memory_space<vmem>>, vector<1x32x32xbf16>
    %178 = vector.shape_cast %177 : vector<1x32x32xbf16> to vector<32x32xbf16>
    %c2_136 = arith.constant 2 : index
    %c0_137 = arith.constant 0 : index
    %c0_138 = arith.constant 0 : index
    %179 = vector.load %arg6[%c2_136, %c0_137, %c0_138] : memref<3x32x32xbf16, #tpu.memory_space<vmem>>, vector<1x32x32xbf16>
    %180 = vector.shape_cast %179 : vector<1x32x32xbf16> to vector<32x32xbf16>
    %c0_139 = arith.constant 0 : index
    %c0_140 = arith.constant 0 : index
    %181 = vector.load %arg8[%c0_139, %c0_140] : memref<1x32xf32, #tpu.memory_space<vmem>>, vector<1x32xf32>
    %c0_141 = arith.constant 0 : index
    %c0_142 = arith.constant 0 : index
    %182 = vector.load %arg3[%c0_141, %c0_142] : memref<4x1xi32, #tpu.memory_space<vmem>>, vector<4x1xi32>
    %c8_i32 = arith.constant 8 : i32
    %183 = arith.muli %arg1, %c8_i32 : i32
    %184 = vector.broadcast %183 : i32 to vector<4x1xi32>
    %185 = arith.subi %182, %184 : vector<4x1xi32>
    %c0_143 = arith.constant 0 : index
    %c0_144 = arith.constant 0 : index
    %186 = vector.load %arg14[%c0_143, %c0_144] : memref<4x32xf32, #tpu.memory_space<vmem>>, vector<4x32xf32>
    %c0_i32_145 = arith.constant 0 : i32
    %187 = arith.truncf %186 : vector<4x32xf32> to vector<4x32xbf16>
    %cst_146 = arith.constant dense<0.000000e+00> : vector<4x32xf32>
    %188 = tpu.matmul %187, %176, %cst_146 {dimension_numbers = #tpu.dot_dimension_numbers<[1], [0], [0], [1], [0, 0, 1, 1], [], []>} : vector<4x32xbf16>, vector<32x32xbf16>, vector<4x32xf32> -> vector<4x32xf32>
    %cst_147 = arith.constant dense<0.000000e+00> : vector<4x32xf32>
    %189 = tpu.matmul %187, %178, %cst_147 {dimension_numbers = #tpu.dot_dimension_numbers<[1], [0], [0], [1], [0, 0, 1, 1], [], []>} : vector<4x32xbf16>, vector<32x32xbf16>, vector<4x32xf32> -> vector<4x32xf32>
    %cst_148 = arith.constant dense<0.000000e+00> : vector<4x32xf32>
    %190 = tpu.matmul %187, %180, %cst_148 {dimension_numbers = #tpu.dot_dimension_numbers<[1], [0], [0], [1], [0, 0, 1, 1], [], []>} : vector<4x32xbf16>, vector<32x32xbf16>, vector<4x32xf32> -> vector<4x32xf32>
    %191 = arith.index_cast %c0_i32_145 : i32 to index
    %c0_149 = arith.constant 0 : index
    %c0_150 = arith.constant 0 : index
    %192 = vector.load %arg11[%191, %c0_149, %c0_150] : memref<8x4x32xf32, #tpu.memory_space<vmem>>, vector<1x4x32xf32>
    %193 = vector.shape_cast %192 : vector<1x4x32xf32> to vector<4x32xf32>
    %194 = arith.addf %193, %188 : vector<4x32xf32>
    %195 = arith.negf %194 : vector<4x32xf32>
    %196 = math.exp %195 : vector<4x32xf32>
    %cst_151 = arith.constant 1.000000e+00 : f32
    %197 = vector.broadcast %cst_151 : f32 to vector<4x32xf32>
    %198 = arith.addf %197, %196 : vector<4x32xf32>
    %199 = arith.divf %197, %198 : vector<4x32xf32>
    %200 = arith.index_cast %c0_i32_145 : i32 to index
    %c0_152 = arith.constant 0 : index
    %c0_153 = arith.constant 0 : index
    %201 = vector.load %arg12[%200, %c0_152, %c0_153] : memref<8x4x32xf32, #tpu.memory_space<vmem>>, vector<1x4x32xf32>
    %202 = vector.shape_cast %201 : vector<1x4x32xf32> to vector<4x32xf32>
    %203 = arith.addf %202, %189 : vector<4x32xf32>
    %204 = arith.negf %203 : vector<4x32xf32>
    %205 = math.exp %204 : vector<4x32xf32>
    %cst_154 = arith.constant 1.000000e+00 : f32
    %206 = vector.broadcast %cst_154 : f32 to vector<4x32xf32>
    %207 = arith.addf %206, %205 : vector<4x32xf32>
    %208 = arith.divf %206, %207 : vector<4x32xf32>
    %209 = arith.index_cast %c0_i32_145 : i32 to index
    %c0_155 = arith.constant 0 : index
    %c0_156 = arith.constant 0 : index
    %210 = vector.load %arg13[%209, %c0_155, %c0_156] : memref<8x4x32xf32, #tpu.memory_space<vmem>>, vector<1x4x32xf32>
    %211 = vector.shape_cast %210 : vector<1x4x32xf32> to vector<4x32xf32>
    %212 = vector.broadcast %181 : vector<1x32xf32> to vector<4x32xf32>
    %213 = arith.addf %190, %212 : vector<4x32xf32>
    %214 = arith.mulf %199, %213 : vector<4x32xf32>
    %215 = arith.addf %211, %214 : vector<4x32xf32>
    %216 = math.tanh %215 : vector<4x32xf32>
    %cst_157 = arith.constant 1.000000e+00 : f32
    %217 = vector.broadcast %cst_157 : f32 to vector<4x32xf32>
    %218 = arith.subf %217, %208 : vector<4x32xf32>
    %219 = arith.mulf %218, %216 : vector<4x32xf32>
    %220 = arith.mulf %208, %186 : vector<4x32xf32>
    %221 = arith.addf %219, %220 : vector<4x32xf32>
    %222 = vector.broadcast %c0_i32_145 : i32 to vector<4x1xi32>
    %223 = arith.cmpi slt, %222, %185 : vector<4x1xi32>
    %cst_158 = arith.constant 0.000000e+00 : f32
    %224 = vector.shape_cast %223 : vector<4x1xi1> to vector<4x1xi1>
    %225 = vector.broadcast %224 : vector<4x1xi1> to vector<4x32xi1>
    %226 = vector.broadcast %cst_158 : f32 to vector<4x32xf32>
    %227 = arith.select %225, %221, %226 : vector<4x32xi1>, vector<4x32xf32>
    %228 = arith.index_cast %c0_i32_145 : i32 to index
    %c0_159 = arith.constant 0 : index
    %c0_160 = arith.constant 0 : index
    %229 = vector.load %arg9[%228, %c0_159, %c0_160] : memref<8x4x32xf32, #tpu.memory_space<vmem>>, vector<1x4x32xf32>
    %230 = vector.shape_cast %229 : vector<1x4x32xf32> to vector<4x32xf32>
    %231 = vector.shape_cast %227 : vector<4x32xf32> to vector<1x4x32xf32>
    tpu.vector_store %arg9[%228, %c0_159, %c0_160], %231 {strides = array<i32>} : memref<8x4x32xf32, #tpu.memory_space<vmem>>, vector<1x4x32xf32>,
    %232 = vector.shape_cast %223 : vector<4x1xi1> to vector<4x1xi1>
    %233 = vector.broadcast %232 : vector<4x1xi1> to vector<4x32xi1>
    %234 = arith.select %233, %221, %186 : vector<4x32xi1>, vector<4x32xf32>
    %c1_i32 = arith.constant 1 : i32
    %235 = arith.truncf %234 : vector<4x32xf32> to vector<4x32xbf16>
    %cst_161 = arith.constant dense<0.000000e+00> : vector<4x32xf32>
    %236 = tpu.matmul %235, %176, %cst_161 {dimension_numbers = #tpu.dot_dimension_numbers<[1], [0], [0], [1], [0, 0, 1, 1], [], []>} : vector<4x32xbf16>, vector<32x32xbf16>, vector<4x32xf32> -> vector<4x32xf32>
    %cst_162 = arith.constant dense<0.000000e+00> : vector<4x32xf32>
    %237 = tpu.matmul %235, %178, %cst_162 {dimension_numbers = #tpu.dot_dimension_numbers<[1], [0], [0], [1], [0, 0, 1, 1], [], []>} : vector<4x32xbf16>, vector<32x32xbf16>, vector<4x32xf32> -> vector<4x32xf32>
    %cst_163 = arith.constant dense<0.000000e+00> : vector<4x32xf32>
    %238 = tpu.matmul %235, %180, %cst_163 {dimension_numbers = #tpu.dot_dimension_numbers<[1], [0], [0], [1], [0, 0, 1, 1], [], []>} : vector<4x32xbf16>, vector<32x32xbf16>, vector<4x32xf32> -> vector<4x32xf32>
    %239 = arith.index_cast %c1_i32 : i32 to index
    %c0_164 = arith.constant 0 : index
    %c0_165 = arith.constant 0 : index
    %240 = vector.load %arg11[%239, %c0_164, %c0_165] : memref<8x4x32xf32, #tpu.memory_space<vmem>>, vector<1x4x32xf32>
    %241 = vector.shape_cast %240 : vector<1x4x32xf32> to vector<4x32xf32>
    %242 = arith.addf %241, %236 : vector<4x32xf32>
    %243 = arith.negf %242 : vector<4x32xf32>
    %244 = math.exp %243 : vector<4x32xf32>
    %cst_166 = arith.constant 1.000000e+00 : f32
    %245 = vector.broadcast %cst_166 : f32 to vector<4x32xf32>
    %246 = arith.addf %245, %244 : vector<4x32xf32>
    %247 = arith.divf %245, %246 : vector<4x32xf32>
    %248 = arith.index_cast %c1_i32 : i32 to index
    %c0_167 = arith.constant 0 : index
    %c0_168 = arith.constant 0 : index
    %249 = vector.load %arg12[%248, %c0_167, %c0_168] : memref<8x4x32xf32, #tpu.memory_space<vmem>>, vector<1x4x32xf32>
    %250 = vector.shape_cast %249 : vector<1x4x32xf32> to vector<4x32xf32>
    %251 = arith.addf %250, %237 : vector<4x32xf32>
    %252 = arith.negf %251 : vector<4x32xf32>
    %253 = math.exp %252 : vector<4x32xf32>
    %cst_169 = arith.constant 1.000000e+00 : f32
    %254 = vector.broadcast %cst_169 : f32 to vector<4x32xf32>
    %255 = arith.addf %254, %253 : vector<4x32xf32>
    %256 = arith.divf %254, %255 : vector<4x32xf32>
    %257 = arith.index_cast %c1_i32 : i32 to index
    %c0_170 = arith.constant 0 : index
    %c0_171 = arith.constant 0 : index
    %258 = vector.load %arg13[%257, %c0_170, %c0_171] : memref<8x4x32xf32, #tpu.memory_space<vmem>>, vector<1x4x32xf32>
    %259 = vector.shape_cast %258 : vector<1x4x32xf32> to vector<4x32xf32>
    %260 = vector.broadcast %181 : vector<1x32xf32> to vector<4x32xf32>
    %261 = arith.addf %238, %260 : vector<4x32xf32>
    %262 = arith.mulf %247, %261 : vector<4x32xf32>
    %263 = arith.addf %259, %262 : vector<4x32xf32>
    %264 = math.tanh %263 : vector<4x32xf32>
    %cst_172 = arith.constant 1.000000e+00 : f32
    %265 = vector.broadcast %cst_172 : f32 to vector<4x32xf32>
    %266 = arith.subf %265, %256 : vector<4x32xf32>
    %267 = arith.mulf %266, %264 : vector<4x32xf32>
    %268 = arith.mulf %256, %234 : vector<4x32xf32>
    %269 = arith.addf %267, %268 : vector<4x32xf32>
    %270 = vector.broadcast %c1_i32 : i32 to vector<4x1xi32>
    %271 = arith.cmpi slt, %270, %185 : vector<4x1xi32>
    %cst_173 = arith.constant 0.000000e+00 : f32
    %272 = vector.shape_cast %271 : vector<4x1xi1> to vector<4x1xi1>
    %273 = vector.broadcast %272 : vector<4x1xi1> to vector<4x32xi1>
    %274 = vector.broadcast %cst_173 : f32 to vector<4x32xf32>
    %275 = arith.select %273, %269, %274 : vector<4x32xi1>, vector<4x32xf32>
    %276 = arith.index_cast %c1_i32 : i32 to index
    %c0_174 = arith.constant 0 : index
    %c0_175 = arith.constant 0 : index
    %277 = vector.load %arg9[%276, %c0_174, %c0_175] : memref<8x4x32xf32, #tpu.memory_space<vmem>>, vector<1x4x32xf32>
    %278 = vector.shape_cast %277 : vector<1x4x32xf32> to vector<4x32xf32>
    %279 = vector.shape_cast %275 : vector<4x32xf32> to vector<1x4x32xf32>
    tpu.vector_store %arg9[%276, %c0_174, %c0_175], %279 {strides = array<i32>} : memref<8x4x32xf32, #tpu.memory_space<vmem>>, vector<1x4x32xf32>,
    %280 = vector.shape_cast %271 : vector<4x1xi1> to vector<4x1xi1>
    %281 = vector.broadcast %280 : vector<4x1xi1> to vector<4x32xi1>
    %282 = arith.select %281, %269, %234 : vector<4x32xi1>, vector<4x32xf32>
    %c2_i32 = arith.constant 2 : i32
    %283 = arith.truncf %282 : vector<4x32xf32> to vector<4x32xbf16>
    %cst_176 = arith.constant dense<0.000000e+00> : vector<4x32xf32>
    %284 = tpu.matmul %283, %176, %cst_176 {dimension_numbers = #tpu.dot_dimension_numbers<[1], [0], [0], [1], [0, 0, 1, 1], [], []>} : vector<4x32xbf16>, vector<32x32xbf16>, vector<4x32xf32> -> vector<4x32xf32>
    %cst_177 = arith.constant dense<0.000000e+00> : vector<4x32xf32>
    %285 = tpu.matmul %283, %178, %cst_177 {dimension_numbers = #tpu.dot_dimension_numbers<[1], [0], [0], [1], [0, 0, 1, 1], [], []>} : vector<4x32xbf16>, vector<32x32xbf16>, vector<4x32xf32> -> vector<4x32xf32>
    %cst_178 = arith.constant dense<0.000000e+00> : vector<4x32xf32>
    %286 = tpu.matmul %283, %180, %cst_178 {dimension_numbers = #tpu.dot_dimension_numbers<[1], [0], [0], [1], [0, 0, 1, 1], [], []>} : vector<4x32xbf16>, vector<32x32xbf16>, vector<4x32xf32> -> vector<4x32xf32>
    %287 = arith.index_cast %c2_i32 : i32 to index
    %c0_179 = arith.constant 0 : index
    %c0_180 = arith.constant 0 : index
    %288 = vector.load %arg11[%287, %c0_179, %c0_180] : memref<8x4x32xf32, #tpu.memory_space<vmem>>, vector<1x4x32xf32>
    %289 = vector.shape_cast %288 : vector<1x4x32xf32> to vector<4x32xf32>
    %290 = arith.addf %289, %284 : vector<4x32xf32>
    %291 = arith.negf %290 : vector<4x32xf32>
    %292 = math.exp %291 : vector<4x32xf32>
    %cst_181 = arith.constant 1.000000e+00 : f32
    %293 = vector.broadcast %cst_181 : f32 to vector<4x32xf32>
    %294 = arith.addf %293, %292 : vector<4x32xf32>
    %295 = arith.divf %293, %294 : vector<4x32xf32>
    %296 = arith.index_cast %c2_i32 : i32 to index
    %c0_182 = arith.constant 0 : index
    %c0_183 = arith.constant 0 : index
    %297 = vector.load %arg12[%296, %c0_182, %c0_183] : memref<8x4x32xf32, #tpu.memory_space<vmem>>, vector<1x4x32xf32>
    %298 = vector.shape_cast %297 : vector<1x4x32xf32> to vector<4x32xf32>
    %299 = arith.addf %298, %285 : vector<4x32xf32>
    %300 = arith.negf %299 : vector<4x32xf32>
    %301 = math.exp %300 : vector<4x32xf32>
    %cst_184 = arith.constant 1.000000e+00 : f32
    %302 = vector.broadcast %cst_184 : f32 to vector<4x32xf32>
    %303 = arith.addf %302, %301 : vector<4x32xf32>
    %304 = arith.divf %302, %303 : vector<4x32xf32>
    %305 = arith.index_cast %c2_i32 : i32 to index
    %c0_185 = arith.constant 0 : index
    %c0_186 = arith.constant 0 : index
    %306 = vector.load %arg13[%305, %c0_185, %c0_186] : memref<8x4x32xf32, #tpu.memory_space<vmem>>, vector<1x4x32xf32>
    %307 = vector.shape_cast %306 : vector<1x4x32xf32> to vector<4x32xf32>
    %308 = vector.broadcast %181 : vector<1x32xf32> to vector<4x32xf32>
    %309 = arith.addf %286, %308 : vector<4x32xf32>
    %310 = arith.mulf %295, %309 : vector<4x32xf32>
    %311 = arith.addf %307, %310 : vector<4x32xf32>
    %312 = math.tanh %311 : vector<4x32xf32>
    %cst_187 = arith.constant 1.000000e+00 : f32
    %313 = vector.broadcast %cst_187 : f32 to vector<4x32xf32>
    %314 = arith.subf %313, %304 : vector<4x32xf32>
    %315 = arith.mulf %314, %312 : vector<4x32xf32>
    %316 = arith.mulf %304, %282 : vector<4x32xf32>
    %317 = arith.addf %315, %316 : vector<4x32xf32>
    %318 = vector.broadcast %c2_i32 : i32 to vector<4x1xi32>
    %319 = arith.cmpi slt, %318, %185 : vector<4x1xi32>
    %cst_188 = arith.constant 0.000000e+00 : f32
    %320 = vector.shape_cast %319 : vector<4x1xi1> to vector<4x1xi1>
    %321 = vector.broadcast %320 : vector<4x1xi1> to vector<4x32xi1>
    %322 = vector.broadcast %cst_188 : f32 to vector<4x32xf32>
    %323 = arith.select %321, %317, %322 : vector<4x32xi1>, vector<4x32xf32>
    %324 = arith.index_cast %c2_i32 : i32 to index
    %c0_189 = arith.constant 0 : index
    %c0_190 = arith.constant 0 : index
    %325 = vector.load %arg9[%324, %c0_189, %c0_190] : memref<8x4x32xf32, #tpu.memory_space<vmem>>, vector<1x4x32xf32>
    %326 = vector.shape_cast %325 : vector<1x4x32xf32> to vector<4x32xf32>
    %327 = vector.shape_cast %323 : vector<4x32xf32> to vector<1x4x32xf32>
    tpu.vector_store %arg9[%324, %c0_189, %c0_190], %327 {strides = array<i32>} : memref<8x4x32xf32, #tpu.memory_space<vmem>>, vector<1x4x32xf32>,
    %328 = vector.shape_cast %319 : vector<4x1xi1> to vector<4x1xi1>
    %329 = vector.broadcast %328 : vector<4x1xi1> to vector<4x32xi1>
    %330 = arith.select %329, %317, %282 : vector<4x32xi1>, vector<4x32xf32>
    %c3_i32 = arith.constant 3 : i32
    %331 = arith.truncf %330 : vector<4x32xf32> to vector<4x32xbf16>
    %cst_191 = arith.constant dense<0.000000e+00> : vector<4x32xf32>
    %332 = tpu.matmul %331, %176, %cst_191 {dimension_numbers = #tpu.dot_dimension_numbers<[1], [0], [0], [1], [0, 0, 1, 1], [], []>} : vector<4x32xbf16>, vector<32x32xbf16>, vector<4x32xf32> -> vector<4x32xf32>
    %cst_192 = arith.constant dense<0.000000e+00> : vector<4x32xf32>
    %333 = tpu.matmul %331, %178, %cst_192 {dimension_numbers = #tpu.dot_dimension_numbers<[1], [0], [0], [1], [0, 0, 1, 1], [], []>} : vector<4x32xbf16>, vector<32x32xbf16>, vector<4x32xf32> -> vector<4x32xf32>
    %cst_193 = arith.constant dense<0.000000e+00> : vector<4x32xf32>
    %334 = tpu.matmul %331, %180, %cst_193 {dimension_numbers = #tpu.dot_dimension_numbers<[1], [0], [0], [1], [0, 0, 1, 1], [], []>} : vector<4x32xbf16>, vector<32x32xbf16>, vector<4x32xf32> -> vector<4x32xf32>
    %335 = arith.index_cast %c3_i32 : i32 to index
    %c0_194 = arith.constant 0 : index
    %c0_195 = arith.constant 0 : index
    %336 = vector.load %arg11[%335, %c0_194, %c0_195] : memref<8x4x32xf32, #tpu.memory_space<vmem>>, vector<1x4x32xf32>
    %337 = vector.shape_cast %336 : vector<1x4x32xf32> to vector<4x32xf32>
    %338 = arith.addf %337, %332 : vector<4x32xf32>
    %339 = arith.negf %338 : vector<4x32xf32>
    %340 = math.exp %339 : vector<4x32xf32>
    %cst_196 = arith.constant 1.000000e+00 : f32
    %341 = vector.broadcast %cst_196 : f32 to vector<4x32xf32>
    %342 = arith.addf %341, %340 : vector<4x32xf32>
    %343 = arith.divf %341, %342 : vector<4x32xf32>
    %344 = arith.index_cast %c3_i32 : i32 to index
    %c0_197 = arith.constant 0 : index
    %c0_198 = arith.constant 0 : index
    %345 = vector.load %arg12[%344, %c0_197, %c0_198] : memref<8x4x32xf32, #tpu.memory_space<vmem>>, vector<1x4x32xf32>
    %346 = vector.shape_cast %345 : vector<1x4x32xf32> to vector<4x32xf32>
    %347 = arith.addf %346, %333 : vector<4x32xf32>
    %348 = arith.negf %347 : vector<4x32xf32>
    %349 = math.exp %348 : vector<4x32xf32>
    %cst_199 = arith.constant 1.000000e+00 : f32
    %350 = vector.broadcast %cst_199 : f32 to vector<4x32xf32>
    %351 = arith.addf %350, %349 : vector<4x32xf32>
    %352 = arith.divf %350, %351 : vector<4x32xf32>
    %353 = arith.index_cast %c3_i32 : i32 to index
    %c0_200 = arith.constant 0 : index
    %c0_201 = arith.constant 0 : index
    %354 = vector.load %arg13[%353, %c0_200, %c0_201] : memref<8x4x32xf32, #tpu.memory_space<vmem>>, vector<1x4x32xf32>
    %355 = vector.shape_cast %354 : vector<1x4x32xf32> to vector<4x32xf32>
    %356 = vector.broadcast %181 : vector<1x32xf32> to vector<4x32xf32>
    %357 = arith.addf %334, %356 : vector<4x32xf32>
    %358 = arith.mulf %343, %357 : vector<4x32xf32>
    %359 = arith.addf %355, %358 : vector<4x32xf32>
    %360 = math.tanh %359 : vector<4x32xf32>
    %cst_202 = arith.constant 1.000000e+00 : f32
    %361 = vector.broadcast %cst_202 : f32 to vector<4x32xf32>
    %362 = arith.subf %361, %352 : vector<4x32xf32>
    %363 = arith.mulf %362, %360 : vector<4x32xf32>
    %364 = arith.mulf %352, %330 : vector<4x32xf32>
    %365 = arith.addf %363, %364 : vector<4x32xf32>
    %366 = vector.broadcast %c3_i32 : i32 to vector<4x1xi32>
    %367 = arith.cmpi slt, %366, %185 : vector<4x1xi32>
    %cst_203 = arith.constant 0.000000e+00 : f32
    %368 = vector.shape_cast %367 : vector<4x1xi1> to vector<4x1xi1>
    %369 = vector.broadcast %368 : vector<4x1xi1> to vector<4x32xi1>
    %370 = vector.broadcast %cst_203 : f32 to vector<4x32xf32>
    %371 = arith.select %369, %365, %370 : vector<4x32xi1>, vector<4x32xf32>
    %372 = arith.index_cast %c3_i32 : i32 to index
    %c0_204 = arith.constant 0 : index
    %c0_205 = arith.constant 0 : index
    %373 = vector.load %arg9[%372, %c0_204, %c0_205] : memref<8x4x32xf32, #tpu.memory_space<vmem>>, vector<1x4x32xf32>
    %374 = vector.shape_cast %373 : vector<1x4x32xf32> to vector<4x32xf32>
    %375 = vector.shape_cast %371 : vector<4x32xf32> to vector<1x4x32xf32>
    tpu.vector_store %arg9[%372, %c0_204, %c0_205], %375 {strides = array<i32>} : memref<8x4x32xf32, #tpu.memory_space<vmem>>, vector<1x4x32xf32>,
    %376 = vector.shape_cast %367 : vector<4x1xi1> to vector<4x1xi1>
    %377 = vector.broadcast %376 : vector<4x1xi1> to vector<4x32xi1>
    %378 = arith.select %377, %365, %330 : vector<4x32xi1>, vector<4x32xf32>
    %c4_i32 = arith.constant 4 : i32
    %379 = arith.truncf %378 : vector<4x32xf32> to vector<4x32xbf16>
    %cst_206 = arith.constant dense<0.000000e+00> : vector<4x32xf32>
    %380 = tpu.matmul %379, %176, %cst_206 {dimension_numbers = #tpu.dot_dimension_numbers<[1], [0], [0], [1], [0, 0, 1, 1], [], []>} : vector<4x32xbf16>, vector<32x32xbf16>, vector<4x32xf32> -> vector<4x32xf32>
    %cst_207 = arith.constant dense<0.000000e+00> : vector<4x32xf32>
    %381 = tpu.matmul %379, %178, %cst_207 {dimension_numbers = #tpu.dot_dimension_numbers<[1], [0], [0], [1], [0, 0, 1, 1], [], []>} : vector<4x32xbf16>, vector<32x32xbf16>, vector<4x32xf32> -> vector<4x32xf32>
    %cst_208 = arith.constant dense<0.000000e+00> : vector<4x32xf32>
    %382 = tpu.matmul %379, %180, %cst_208 {dimension_numbers = #tpu.dot_dimension_numbers<[1], [0], [0], [1], [0, 0, 1, 1], [], []>} : vector<4x32xbf16>, vector<32x32xbf16>, vector<4x32xf32> -> vector<4x32xf32>
    %383 = arith.index_cast %c4_i32 : i32 to index
    %c0_209 = arith.constant 0 : index
    %c0_210 = arith.constant 0 : index
    %384 = vector.load %arg11[%383, %c0_209, %c0_210] : memref<8x4x32xf32, #tpu.memory_space<vmem>>, vector<1x4x32xf32>
    %385 = vector.shape_cast %384 : vector<1x4x32xf32> to vector<4x32xf32>
    %386 = arith.addf %385, %380 : vector<4x32xf32>
    %387 = arith.negf %386 : vector<4x32xf32>
    %388 = math.exp %387 : vector<4x32xf32>
    %cst_211 = arith.constant 1.000000e+00 : f32
    %389 = vector.broadcast %cst_211 : f32 to vector<4x32xf32>
    %390 = arith.addf %389, %388 : vector<4x32xf32>
    %391 = arith.divf %389, %390 : vector<4x32xf32>
    %392 = arith.index_cast %c4_i32 : i32 to index
    %c0_212 = arith.constant 0 : index
    %c0_213 = arith.constant 0 : index
    %393 = vector.load %arg12[%392, %c0_212, %c0_213] : memref<8x4x32xf32, #tpu.memory_space<vmem>>, vector<1x4x32xf32>
    %394 = vector.shape_cast %393 : vector<1x4x32xf32> to vector<4x32xf32>
    %395 = arith.addf %394, %381 : vector<4x32xf32>
    %396 = arith.negf %395 : vector<4x32xf32>
    %397 = math.exp %396 : vector<4x32xf32>
    %cst_214 = arith.constant 1.000000e+00 : f32
    %398 = vector.broadcast %cst_214 : f32 to vector<4x32xf32>
    %399 = arith.addf %398, %397 : vector<4x32xf32>
    %400 = arith.divf %398, %399 : vector<4x32xf32>
    %401 = arith.index_cast %c4_i32 : i32 to index
    %c0_215 = arith.constant 0 : index
    %c0_216 = arith.constant 0 : index
    %402 = vector.load %arg13[%401, %c0_215, %c0_216] : memref<8x4x32xf32, #tpu.memory_space<vmem>>, vector<1x4x32xf32>
    %403 = vector.shape_cast %402 : vector<1x4x32xf32> to vector<4x32xf32>
    %404 = vector.broadcast %181 : vector<1x32xf32> to vector<4x32xf32>
    %405 = arith.addf %382, %404 : vector<4x32xf32>
    %406 = arith.mulf %391, %405 : vector<4x32xf32>
    %407 = arith.addf %403, %406 : vector<4x32xf32>
    %408 = math.tanh %407 : vector<4x32xf32>
    %cst_217 = arith.constant 1.000000e+00 : f32
    %409 = vector.broadcast %cst_217 : f32 to vector<4x32xf32>
    %410 = arith.subf %409, %400 : vector<4x32xf32>
    %411 = arith.mulf %410, %408 : vector<4x32xf32>
    %412 = arith.mulf %400, %378 : vector<4x32xf32>
    %413 = arith.addf %411, %412 : vector<4x32xf32>
    %414 = vector.broadcast %c4_i32 : i32 to vector<4x1xi32>
    %415 = arith.cmpi slt, %414, %185 : vector<4x1xi32>
    %cst_218 = arith.constant 0.000000e+00 : f32
    %416 = vector.shape_cast %415 : vector<4x1xi1> to vector<4x1xi1>
    %417 = vector.broadcast %416 : vector<4x1xi1> to vector<4x32xi1>
    %418 = vector.broadcast %cst_218 : f32 to vector<4x32xf32>
    %419 = arith.select %417, %413, %418 : vector<4x32xi1>, vector<4x32xf32>
    %420 = arith.index_cast %c4_i32 : i32 to index
    %c0_219 = arith.constant 0 : index
    %c0_220 = arith.constant 0 : index
    %421 = vector.load %arg9[%420, %c0_219, %c0_220] : memref<8x4x32xf32, #tpu.memory_space<vmem>>, vector<1x4x32xf32>
    %422 = vector.shape_cast %421 : vector<1x4x32xf32> to vector<4x32xf32>
    %423 = vector.shape_cast %419 : vector<4x32xf32> to vector<1x4x32xf32>
    tpu.vector_store %arg9[%420, %c0_219, %c0_220], %423 {strides = array<i32>} : memref<8x4x32xf32, #tpu.memory_space<vmem>>, vector<1x4x32xf32>,
    %424 = vector.shape_cast %415 : vector<4x1xi1> to vector<4x1xi1>
    %425 = vector.broadcast %424 : vector<4x1xi1> to vector<4x32xi1>
    %426 = arith.select %425, %413, %378 : vector<4x32xi1>, vector<4x32xf32>
    %c5_i32 = arith.constant 5 : i32
    %427 = arith.truncf %426 : vector<4x32xf32> to vector<4x32xbf16>
    %cst_221 = arith.constant dense<0.000000e+00> : vector<4x32xf32>
    %428 = tpu.matmul %427, %176, %cst_221 {dimension_numbers = #tpu.dot_dimension_numbers<[1], [0], [0], [1], [0, 0, 1, 1], [], []>} : vector<4x32xbf16>, vector<32x32xbf16>, vector<4x32xf32> -> vector<4x32xf32>
    %cst_222 = arith.constant dense<0.000000e+00> : vector<4x32xf32>
    %429 = tpu.matmul %427, %178, %cst_222 {dimension_numbers = #tpu.dot_dimension_numbers<[1], [0], [0], [1], [0, 0, 1, 1], [], []>} : vector<4x32xbf16>, vector<32x32xbf16>, vector<4x32xf32> -> vector<4x32xf32>
    %cst_223 = arith.constant dense<0.000000e+00> : vector<4x32xf32>
    %430 = tpu.matmul %427, %180, %cst_223 {dimension_numbers = #tpu.dot_dimension_numbers<[1], [0], [0], [1], [0, 0, 1, 1], [], []>} : vector<4x32xbf16>, vector<32x32xbf16>, vector<4x32xf32> -> vector<4x32xf32>
    %431 = arith.index_cast %c5_i32 : i32 to index
    %c0_224 = arith.constant 0 : index
    %c0_225 = arith.constant 0 : index
    %432 = vector.load %arg11[%431, %c0_224, %c0_225] : memref<8x4x32xf32, #tpu.memory_space<vmem>>, vector<1x4x32xf32>
    %433 = vector.shape_cast %432 : vector<1x4x32xf32> to vector<4x32xf32>
    %434 = arith.addf %433, %428 : vector<4x32xf32>
    %435 = arith.negf %434 : vector<4x32xf32>
    %436 = math.exp %435 : vector<4x32xf32>
    %cst_226 = arith.constant 1.000000e+00 : f32
    %437 = vector.broadcast %cst_226 : f32 to vector<4x32xf32>
    %438 = arith.addf %437, %436 : vector<4x32xf32>
    %439 = arith.divf %437, %438 : vector<4x32xf32>
    %440 = arith.index_cast %c5_i32 : i32 to index
    %c0_227 = arith.constant 0 : index
    %c0_228 = arith.constant 0 : index
    %441 = vector.load %arg12[%440, %c0_227, %c0_228] : memref<8x4x32xf32, #tpu.memory_space<vmem>>, vector<1x4x32xf32>
    %442 = vector.shape_cast %441 : vector<1x4x32xf32> to vector<4x32xf32>
    %443 = arith.addf %442, %429 : vector<4x32xf32>
    %444 = arith.negf %443 : vector<4x32xf32>
    %445 = math.exp %444 : vector<4x32xf32>
    %cst_229 = arith.constant 1.000000e+00 : f32
    %446 = vector.broadcast %cst_229 : f32 to vector<4x32xf32>
    %447 = arith.addf %446, %445 : vector<4x32xf32>
    %448 = arith.divf %446, %447 : vector<4x32xf32>
    %449 = arith.index_cast %c5_i32 : i32 to index
    %c0_230 = arith.constant 0 : index
    %c0_231 = arith.constant 0 : index
    %450 = vector.load %arg13[%449, %c0_230, %c0_231] : memref<8x4x32xf32, #tpu.memory_space<vmem>>, vector<1x4x32xf32>
    %451 = vector.shape_cast %450 : vector<1x4x32xf32> to vector<4x32xf32>
    %452 = vector.broadcast %181 : vector<1x32xf32> to vector<4x32xf32>
    %453 = arith.addf %430, %452 : vector<4x32xf32>
    %454 = arith.mulf %439, %453 : vector<4x32xf32>
    %455 = arith.addf %451, %454 : vector<4x32xf32>
    %456 = math.tanh %455 : vector<4x32xf32>
    %cst_232 = arith.constant 1.000000e+00 : f32
    %457 = vector.broadcast %cst_232 : f32 to vector<4x32xf32>
    %458 = arith.subf %457, %448 : vector<4x32xf32>
    %459 = arith.mulf %458, %456 : vector<4x32xf32>
    %460 = arith.mulf %448, %426 : vector<4x32xf32>
    %461 = arith.addf %459, %460 : vector<4x32xf32>
    %462 = vector.broadcast %c5_i32 : i32 to vector<4x1xi32>
    %463 = arith.cmpi slt, %462, %185 : vector<4x1xi32>
    %cst_233 = arith.constant 0.000000e+00 : f32
    %464 = vector.shape_cast %463 : vector<4x1xi1> to vector<4x1xi1>
    %465 = vector.broadcast %464 : vector<4x1xi1> to vector<4x32xi1>
    %466 = vector.broadcast %cst_233 : f32 to vector<4x32xf32>
    %467 = arith.select %465, %461, %466 : vector<4x32xi1>, vector<4x32xf32>
    %468 = arith.index_cast %c5_i32 : i32 to index
    %c0_234 = arith.constant 0 : index
    %c0_235 = arith.constant 0 : index
    %469 = vector.load %arg9[%468, %c0_234, %c0_235] : memref<8x4x32xf32, #tpu.memory_space<vmem>>, vector<1x4x32xf32>
    %470 = vector.shape_cast %469 : vector<1x4x32xf32> to vector<4x32xf32>
    %471 = vector.shape_cast %467 : vector<4x32xf32> to vector<1x4x32xf32>
    tpu.vector_store %arg9[%468, %c0_234, %c0_235], %471 {strides = array<i32>} : memref<8x4x32xf32, #tpu.memory_space<vmem>>, vector<1x4x32xf32>,
    %472 = vector.shape_cast %463 : vector<4x1xi1> to vector<4x1xi1>
    %473 = vector.broadcast %472 : vector<4x1xi1> to vector<4x32xi1>
    %474 = arith.select %473, %461, %426 : vector<4x32xi1>, vector<4x32xf32>
    %c6_i32 = arith.constant 6 : i32
    %475 = arith.truncf %474 : vector<4x32xf32> to vector<4x32xbf16>
    %cst_236 = arith.constant dense<0.000000e+00> : vector<4x32xf32>
    %476 = tpu.matmul %475, %176, %cst_236 {dimension_numbers = #tpu.dot_dimension_numbers<[1], [0], [0], [1], [0, 0, 1, 1], [], []>} : vector<4x32xbf16>, vector<32x32xbf16>, vector<4x32xf32> -> vector<4x32xf32>
    %cst_237 = arith.constant dense<0.000000e+00> : vector<4x32xf32>
    %477 = tpu.matmul %475, %178, %cst_237 {dimension_numbers = #tpu.dot_dimension_numbers<[1], [0], [0], [1], [0, 0, 1, 1], [], []>} : vector<4x32xbf16>, vector<32x32xbf16>, vector<4x32xf32> -> vector<4x32xf32>
    %cst_238 = arith.constant dense<0.000000e+00> : vector<4x32xf32>
    %478 = tpu.matmul %475, %180, %cst_238 {dimension_numbers = #tpu.dot_dimension_numbers<[1], [0], [0], [1], [0, 0, 1, 1], [], []>} : vector<4x32xbf16>, vector<32x32xbf16>, vector<4x32xf32> -> vector<4x32xf32>
    %479 = arith.index_cast %c6_i32 : i32 to index
    %c0_239 = arith.constant 0 : index
    %c0_240 = arith.constant 0 : index
    %480 = vector.load %arg11[%479, %c0_239, %c0_240] : memref<8x4x32xf32, #tpu.memory_space<vmem>>, vector<1x4x32xf32>
    %481 = vector.shape_cast %480 : vector<1x4x32xf32> to vector<4x32xf32>
    %482 = arith.addf %481, %476 : vector<4x32xf32>
    %483 = arith.negf %482 : vector<4x32xf32>
    %484 = math.exp %483 : vector<4x32xf32>
    %cst_241 = arith.constant 1.000000e+00 : f32
    %485 = vector.broadcast %cst_241 : f32 to vector<4x32xf32>
    %486 = arith.addf %485, %484 : vector<4x32xf32>
    %487 = arith.divf %485, %486 : vector<4x32xf32>
    %488 = arith.index_cast %c6_i32 : i32 to index
    %c0_242 = arith.constant 0 : index
    %c0_243 = arith.constant 0 : index
    %489 = vector.load %arg12[%488, %c0_242, %c0_243] : memref<8x4x32xf32, #tpu.memory_space<vmem>>, vector<1x4x32xf32>
    %490 = vector.shape_cast %489 : vector<1x4x32xf32> to vector<4x32xf32>
    %491 = arith.addf %490, %477 : vector<4x32xf32>
    %492 = arith.negf %491 : vector<4x32xf32>
    %493 = math.exp %492 : vector<4x32xf32>
    %cst_244 = arith.constant 1.000000e+00 : f32
    %494 = vector.broadcast %cst_244 : f32 to vector<4x32xf32>
    %495 = arith.addf %494, %493 : vector<4x32xf32>
    %496 = arith.divf %494, %495 : vector<4x32xf32>
    %497 = arith.index_cast %c6_i32 : i32 to index
    %c0_245 = arith.constant 0 : index
    %c0_246 = arith.constant 0 : index
    %498 = vector.load %arg13[%497, %c0_245, %c0_246] : memref<8x4x32xf32, #tpu.memory_space<vmem>>, vector<1x4x32xf32>
    %499 = vector.shape_cast %498 : vector<1x4x32xf32> to vector<4x32xf32>
    %500 = vector.broadcast %181 : vector<1x32xf32> to vector<4x32xf32>
    %501 = arith.addf %478, %500 : vector<4x32xf32>
    %502 = arith.mulf %487, %501 : vector<4x32xf32>
    %503 = arith.addf %499, %502 : vector<4x32xf32>
    %504 = math.tanh %503 : vector<4x32xf32>
    %cst_247 = arith.constant 1.000000e+00 : f32
    %505 = vector.broadcast %cst_247 : f32 to vector<4x32xf32>
    %506 = arith.subf %505, %496 : vector<4x32xf32>
    %507 = arith.mulf %506, %504 : vector<4x32xf32>
    %508 = arith.mulf %496, %474 : vector<4x32xf32>
    %509 = arith.addf %507, %508 : vector<4x32xf32>
    %510 = vector.broadcast %c6_i32 : i32 to vector<4x1xi32>
    %511 = arith.cmpi slt, %510, %185 : vector<4x1xi32>
    %cst_248 = arith.constant 0.000000e+00 : f32
    %512 = vector.shape_cast %511 : vector<4x1xi1> to vector<4x1xi1>
    %513 = vector.broadcast %512 : vector<4x1xi1> to vector<4x32xi1>
    %514 = vector.broadcast %cst_248 : f32 to vector<4x32xf32>
    %515 = arith.select %513, %509, %514 : vector<4x32xi1>, vector<4x32xf32>
    %516 = arith.index_cast %c6_i32 : i32 to index
    %c0_249 = arith.constant 0 : index
    %c0_250 = arith.constant 0 : index
    %517 = vector.load %arg9[%516, %c0_249, %c0_250] : memref<8x4x32xf32, #tpu.memory_space<vmem>>, vector<1x4x32xf32>
    %518 = vector.shape_cast %517 : vector<1x4x32xf32> to vector<4x32xf32>
    %519 = vector.shape_cast %515 : vector<4x32xf32> to vector<1x4x32xf32>
    tpu.vector_store %arg9[%516, %c0_249, %c0_250], %519 {strides = array<i32>} : memref<8x4x32xf32, #tpu.memory_space<vmem>>, vector<1x4x32xf32>,
    %520 = vector.shape_cast %511 : vector<4x1xi1> to vector<4x1xi1>
    %521 = vector.broadcast %520 : vector<4x1xi1> to vector<4x32xi1>
    %522 = arith.select %521, %509, %474 : vector<4x32xi1>, vector<4x32xf32>
    %c7_i32 = arith.constant 7 : i32
    %523 = arith.truncf %522 : vector<4x32xf32> to vector<4x32xbf16>
    %cst_251 = arith.constant dense<0.000000e+00> : vector<4x32xf32>
    %524 = tpu.matmul %523, %176, %cst_251 {dimension_numbers = #tpu.dot_dimension_numbers<[1], [0], [0], [1], [0, 0, 1, 1], [], []>} : vector<4x32xbf16>, vector<32x32xbf16>, vector<4x32xf32> -> vector<4x32xf32>
    %cst_252 = arith.constant dense<0.000000e+00> : vector<4x32xf32>
    %525 = tpu.matmul %523, %178, %cst_252 {dimension_numbers = #tpu.dot_dimension_numbers<[1], [0], [0], [1], [0, 0, 1, 1], [], []>} : vector<4x32xbf16>, vector<32x32xbf16>, vector<4x32xf32> -> vector<4x32xf32>
    %cst_253 = arith.constant dense<0.000000e+00> : vector<4x32xf32>
    %526 = tpu.matmul %523, %180, %cst_253 {dimension_numbers = #tpu.dot_dimension_numbers<[1], [0], [0], [1], [0, 0, 1, 1], [], []>} : vector<4x32xbf16>, vector<32x32xbf16>, vector<4x32xf32> -> vector<4x32xf32>
    %527 = arith.index_cast %c7_i32 : i32 to index
    %c0_254 = arith.constant 0 : index
    %c0_255 = arith.constant 0 : index
    %528 = vector.load %arg11[%527, %c0_254, %c0_255] : memref<8x4x32xf32, #tpu.memory_space<vmem>>, vector<1x4x32xf32>
    %529 = vector.shape_cast %528 : vector<1x4x32xf32> to vector<4x32xf32>
    %530 = arith.addf %529, %524 : vector<4x32xf32>
    %531 = arith.negf %530 : vector<4x32xf32>
    %532 = math.exp %531 : vector<4x32xf32>
    %cst_256 = arith.constant 1.000000e+00 : f32
    %533 = vector.broadcast %cst_256 : f32 to vector<4x32xf32>
    %534 = arith.addf %533, %532 : vector<4x32xf32>
    %535 = arith.divf %533, %534 : vector<4x32xf32>
    %536 = arith.index_cast %c7_i32 : i32 to index
    %c0_257 = arith.constant 0 : index
    %c0_258 = arith.constant 0 : index
    %537 = vector.load %arg12[%536, %c0_257, %c0_258] : memref<8x4x32xf32, #tpu.memory_space<vmem>>, vector<1x4x32xf32>
    %538 = vector.shape_cast %537 : vector<1x4x32xf32> to vector<4x32xf32>
    %539 = arith.addf %538, %525 : vector<4x32xf32>
    %540 = arith.negf %539 : vector<4x32xf32>
    %541 = math.exp %540 : vector<4x32xf32>
    %cst_259 = arith.constant 1.000000e+00 : f32
    %542 = vector.broadcast %cst_259 : f32 to vector<4x32xf32>
    %543 = arith.addf %542, %541 : vector<4x32xf32>
    %544 = arith.divf %542, %543 : vector<4x32xf32>
    %545 = arith.index_cast %c7_i32 : i32 to index
    %c0_260 = arith.constant 0 : index
    %c0_261 = arith.constant 0 : index
    %546 = vector.load %arg13[%545, %c0_260, %c0_261] : memref<8x4x32xf32, #tpu.memory_space<vmem>>, vector<1x4x32xf32>
    %547 = vector.shape_cast %546 : vector<1x4x32xf32> to vector<4x32xf32>
    %548 = vector.broadcast %181 : vector<1x32xf32> to vector<4x32xf32>
    %549 = arith.addf %526, %548 : vector<4x32xf32>
    %550 = arith.mulf %535, %549 : vector<4x32xf32>
    %551 = arith.addf %547, %550 : vector<4x32xf32>
    %552 = math.tanh %551 : vector<4x32xf32>
    %cst_262 = arith.constant 1.000000e+00 : f32
    %553 = vector.broadcast %cst_262 : f32 to vector<4x32xf32>
    %554 = arith.subf %553, %544 : vector<4x32xf32>
    %555 = arith.mulf %554, %552 : vector<4x32xf32>
    %556 = arith.mulf %544, %522 : vector<4x32xf32>
    %557 = arith.addf %555, %556 : vector<4x32xf32>
    %558 = vector.broadcast %c7_i32 : i32 to vector<4x1xi32>
    %559 = arith.cmpi slt, %558, %185 : vector<4x1xi32>
    %cst_263 = arith.constant 0.000000e+00 : f32
    %560 = vector.shape_cast %559 : vector<4x1xi1> to vector<4x1xi1>
    %561 = vector.broadcast %560 : vector<4x1xi1> to vector<4x32xi1>
    %562 = vector.broadcast %cst_263 : f32 to vector<4x32xf32>
    %563 = arith.select %561, %557, %562 : vector<4x32xi1>, vector<4x32xf32>
    %564 = arith.index_cast %c7_i32 : i32 to index
    %c0_264 = arith.constant 0 : index
    %c0_265 = arith.constant 0 : index
    %565 = vector.load %arg9[%564, %c0_264, %c0_265] : memref<8x4x32xf32, #tpu.memory_space<vmem>>, vector<1x4x32xf32>
    %566 = vector.shape_cast %565 : vector<1x4x32xf32> to vector<4x32xf32>
    %567 = vector.shape_cast %563 : vector<4x32xf32> to vector<1x4x32xf32>
    tpu.vector_store %arg9[%564, %c0_264, %c0_265], %567 {strides = array<i32>} : memref<8x4x32xf32, #tpu.memory_space<vmem>>, vector<1x4x32xf32>,
    %568 = vector.shape_cast %559 : vector<4x1xi1> to vector<4x1xi1>
    %569 = vector.broadcast %568 : vector<4x1xi1> to vector<4x32xi1>
    %570 = arith.select %569, %557, %522 : vector<4x32xi1>, vector<4x32xf32>
    %c8_i32_266 = arith.constant 8 : i32
    %c0_267 = arith.constant 0 : index
    %c0_268 = arith.constant 0 : index
    %571 = vector.load %arg14[%c0_267, %c0_268] : memref<4x32xf32, #tpu.memory_space<vmem>>, vector<4x32xf32>
    tpu.vector_store %arg14[%c0_267, %c0_268], %570 {strides = array<i32>} : memref<4x32xf32, #tpu.memory_space<vmem>>, vector<4x32xf32>,
    %c1_i32_269 = arith.constant 1 : i32
    %572 = arith.cmpi eq, %arg1, %c1_i32_269 : i32
    %573 = arith.extui %572 : i1 to i32
    %c0_i32_270 = arith.constant 0 : i32
    %574 = arith.cmpi ne, %573, %c0_i32_270 : i32
    scf.if %574 {
      %c0_271 = arith.constant 0 : index
      %c0_272 = arith.constant 0 : index
      %575 = vector.load %arg10[%c0_271, %c0_272] : memref<4x32xf32, #tpu.memory_space<vmem>>, vector<4x32xf32>
      tpu.vector_store %arg10[%c0_271, %c0_272], %570 {strides = array<i32>} : memref<4x32xf32, #tpu.memory_space<vmem>>, vector<4x32xf32>,
    } else {
    }
    return
  }
  func.func @transform_0(%arg0: i32, %arg1: i32) -> (i32, i32, i32) {
    %c0_i32 = arith.constant 0 : i32
    %c0_i32_0 = arith.constant 0 : i32
    return %arg1, %arg0, %c0_i32 : i32, i32, i32
  }
  func.func @transform_1(%arg0: i32, %arg1: i32) -> (i32, i32) {
    %c0_i32 = arith.constant 0 : i32
    %c0_i32_0 = arith.constant 0 : i32
    return %arg0, %c0_i32 : i32, i32
  }
  func.func @transform_2(%arg0: i32, %arg1: i32) -> (i32, i32) {
    %c0_i32 = arith.constant 0 : i32
    %c0_i32_0 = arith.constant 0 : i32
    return %arg0, %c0_i32 : i32, i32
  }
  func.func @transform_3(%arg0: i32, %arg1: i32) -> (i32, i32, i32) {
    %c0_i32 = arith.constant 0 : i32
    %c0_i32_0 = arith.constant 0 : i32
    %c0_i32_1 = arith.constant 0 : i32
    %c0_i32_2 = arith.constant 0 : i32
    return %c0_i32, %c0_i32_0, %c0_i32_1 : i32, i32, i32
  }
  func.func @transform_4(%arg0: i32, %arg1: i32) -> (i32, i32, i32) {
    %c0_i32 = arith.constant 0 : i32
    %c0_i32_0 = arith.constant 0 : i32
    %c0_i32_1 = arith.constant 0 : i32
    %c0_i32_2 = arith.constant 0 : i32
    return %c0_i32, %c0_i32_0, %c0_i32_1 : i32, i32, i32
  }
  func.func @transform_5(%arg0: i32, %arg1: i32) -> (i32, i32, i32) {
    %c0_i32 = arith.constant 0 : i32
    %c0_i32_0 = arith.constant 0 : i32
    %c0_i32_1 = arith.constant 0 : i32
    %c0_i32_2 = arith.constant 0 : i32
    return %c0_i32, %c0_i32_0, %c0_i32_1 : i32, i32, i32
  }
  func.func @transform_6(%arg0: i32, %arg1: i32) -> (i32, i32) {
    %c0_i32 = arith.constant 0 : i32
    %c0_i32_0 = arith.constant 0 : i32
    %c0_i32_1 = arith.constant 0 : i32
    return %c0_i32, %c0_i32_0 : i32, i32
  }
  func.func @transform_7(%arg0: i32, %arg1: i32) -> (i32, i32, i32) {
    %c0_i32 = arith.constant 0 : i32
    %c0_i32_0 = arith.constant 0 : i32
    return %arg1, %arg0, %c0_i32 : i32, i32, i32
  }
  func.func @transform_8(%arg0: i32, %arg1: i32) -> (i32, i32) {
    %c0_i32 = arith.constant 0 : i32
    %c0_i32_0 = arith.constant 0 : i32
    return %arg0, %c0_i32 : i32, i32
  }
}

</mosaic_0001>

<llo_original>
// kernel: encoder_forward.1
$region0: #{encoder_forward.1}
  #allocation0 [shape = 'u32[]', space=smem, size = 0x4, offset = 0x4, fixed_abs, tag = 'smem constant byte address 0x4 - core index']
  #allocation1 [shape = 'u32[144,128]{1,0:T(1,128)}', space=vmem, size = 0x12000, scoped, tag = 'internal scratch']
  #allocation2 [shape = 'f32[8,4,32]{2,1,0:T(4,128)}', space=vmem, size = 0x4000, scoped, tag = 'scratch operand']
  #allocation3 [shape = 'f32[8,4,32]{2,1,0:T(4,128)}', space=vmem, size = 0x4000, scoped, tag = 'scratch operand']
  #allocation4 [shape = 'f32[8,4,32]{2,1,0:T(4,128)}', space=vmem, size = 0x4000, scoped, tag = 'scratch operand']
  #allocation5 [shape = 'f32[4,32]{1,0:T(4,128)}', space=vmem, size = 0x800, scoped, tag = 'scratch operand']
  %s0 = inlined_call_operand.vmem [shape: bf16[16,4,32], index: 0, kind: input, shape index: {}]
  %s1 = inlined_call_operand.vmem [shape: s32[4,1], index: 1, kind: input, shape index: {}]
  %s2 = inlined_call_operand.vmem [shape: f32[4,32], index: 2, kind: input, shape index: {}]
  %s3 = inlined_call_operand.vmem [shape: bf16[3,32,32], index: 3, kind: input, shape index: {}]
  %s4 = inlined_call_operand.vmem [shape: bf16[3,32,32], index: 4, kind: input, shape index: {}]
  %s5 = inlined_call_operand.vmem [shape: f32[3,1,32], index: 5, kind: input, shape index: {}]
  %s6 = inlined_call_operand.vmem [shape: f32[1,32], index: 6, kind: input, shape index: {}]
  %s7 = inlined_call_operand.hbm [shape: f32[16,4,32], index: 7, kind: output, shape index: {0}]
  %s8 = inlined_call_operand.hbm [shape: f32[4,32], index: 8, kind: output, shape index: {1}]
  %9 = xla_tuple %s7, %s8
  %s10 = sld [smem:[#allocation0]]
  $region77: #{encoder_forward.1} parent=0
    _
  %s12 = ssub.s32 1, %s10
  %s13 = scalar_select 0, %s12, %s10
  $region1: #{encoder_forward.1} parent=0
    #allocation6 [shape = 'u8[32768]{0}', space=vmem, size = 0x8000, scoped, tag = 'output window, operand 0']
    #allocation7 [shape = 's32[2]{0}', space=sflag, size = 0x8, scoped, tag = 'scoped memory for encoder_forward.1']
    #allocation8 [shape = 'u8[2048]{0}', space=vmem, size = 0x800, scoped, tag = 'output window, operand 1, single buffered']
    #allocation9 [shape = 's32[1]{0}', space=sflag, size = 0x4, scoped, tag = 'scoped memory for encoder_forward.1']
    %14 = vsyncpa [#allocation7], 0
    %s15 = scalar_lea.sflag [#allocation7], 1
    %16 = vsyncpa %s15, 0
    %17 = vsyncpa [#allocation9], 0
    loop: start=0, step=1, limit=4
    $region2: #{encoder_forward.1} parent=1 // loop_pre_header
      _
    $region3: #{encoder_forward.1} parent=1 // loop_header
      %s19 = sphi 0, %s23
      %p20 = scmp.ge.s32.totalorder %s19, 4
      %s26 = sphi 0, %s38
      %s27 = sphi 0, %s34
      %s28 = sphi 0, %s26
      %s29 = sphi 0, %s27
      %s30 = sphi 0, %s28
      %s31 = sphi 0, %s29
      %s43 = sphi 0, %s45
      %s46 = sphi 0, %s43
      %s47 = sphi 0, %s46
      %s63 = sphi 0, %s47
      %s69 = sphi 0, %s71
      %s72 = sphi 0, %s69
      %s73 = sphi 0, %s72
      %s89 = sphi 0, %s73
      %s95 = sphi 0, %s97
      %s98 = sphi 0, %s95
      %s99 = sphi 0, %s98
      %s115 = sphi 0, %s99
      %s119 = sphi 0, %s119
      %s121 = sphi 0, %s119
      %s122 = sphi 0, %s121
      %s136 = sphi 0, %s122
      %s140 = sphi 0, %s140
      %s142 = sphi 0, %s140
      %s143 = sphi 0, %s142
      %s157 = sphi 0, %s143
      %s161 = sphi 0, %s161
      %s163 = sphi 0, %s161
      %s164 = sphi 0, %s163
      %s178 = sphi 0, %s164
      %s182 = sphi 0, %s182
      %s184 = sphi 0, %s182
      %s185 = sphi 0, %s184
      %s199 = sphi 0, %s185
      %s207 = sphi 0, %s209
      %s210 = sphi 0, %s207
      %s211 = sphi 0, %s210
      %s227 = sphi 0, %s211
      %s233 = sphi 0, %s235
      %s236 = sphi 0, %s233
      %s237 = sphi 0, %s236
      %s253 = sphi 0, %s237
    $region4: #{encoder_forward.1} parent=1 // loop_header_branch
      %22 = sbr.rel (%p20) target = $region8
    $region5: #{encoder_forward.1} parent=1 // loop_body
      %s24 = ssub.s32 %s19, 1
      %s25 = ssub.s32 %s19, 2
      %s32 = sadd.s32 1, %s27
      %p33 = scmp.ge.s32.totalorder %s32, 2
      %s34 = scalar_select %p33, 0, %s32
      %s35 = sadd.s32 1, %s26
      %s36 = scalar_select %p33, %s35, %s26
      %p37 = scmp.ge.s32.totalorder %s36, 1
      %s38 = scalar_select %p37, 0, %s36
      %s39 = ssub.s32 %s27, %s34
      %s40 = ssub.s32 %s26, %s38
      %s41 = sor.u32 %s39, %s40
      %p42 = scmp.eq.s32.totalorder %s41, 0
      %s44 = sadd.s32 %s43, 1
      %s45 = scalar_select %p42, %s43, %s44
      %p48 = pneg %p42
      %p49 = scmp.eq.s32.totalorder %s19, 1
      %p50 = por %p48, %p49
      %p51 = scmp.ne.s32.totalorder %s43, %s46
      %p52 = scmp.eq.s32.totalorder %s19, 0
      %p53 = por %p51, %p52
      %p54 = scmp.ne.s32.totalorder %s43, %s46
      %p55 = scmp.eq.s32.totalorder %s24, 1
      %p56 = por %p54, %p55
      %p57 = scmp.ne.s32.totalorder %s46, %s47
      %p58 = scmp.eq.s32.totalorder %s24, 0
      %p59 = por %p57, %p58
      %p60 = scmp.ne.s32.totalorder %s46, %s47
      %p61 = scmp.eq.s32.totalorder %s25, 1
      %p62 = por %p60, %p61
      %p64 = scmp.ne.s32.totalorder %s47, %s63
      %p65 = scmp.eq.s32.totalorder %s25, 0
      %p66 = por %p64, %p65
      %s67 = ssub.s32 %s26, %s38
      %p68 = scmp.eq.s32.totalorder %s67, 0
      %s70 = sadd.s32 %s69, 1
      %s71 = scalar_select %p68, %s69, %s70
      %p74 = pneg %p68
      %p75 = scmp.eq.s32.totalorder %s19, 1
      %p76 = por %p74, %p75
      %p77 = scmp.ne.s32.totalorder %s69, %s72
      %p78 = scmp.eq.s32.totalorder %s19, 0
      %p79 = por %p77, %p78
      %p80 = scmp.ne.s32.totalorder %s69, %s72
      %p81 = scmp.eq.s32.totalorder %s24, 1
      %p82 = por %p80, %p81
      %p83 = scmp.ne.s32.totalorder %s72, %s73
      %p84 = scmp.eq.s32.totalorder %s24, 0
      %p85 = por %p83, %p84
      %p86 = scmp.ne.s32.totalorder %s72, %s73
      %p87 = scmp.eq.s32.totalorder %s25, 1
      %p88 = por %p86, %p87
      %p90 = scmp.ne.s32.totalorder %s73, %s89
      %p91 = scmp.eq.s32.totalorder %s25, 0
      %p92 = por %p90, %p91
      %s93 = ssub.s32 %s26, %s38
      %p94 = scmp.eq.s32.totalorder %s93, 0
      %s96 = sadd.s32 %s95, 1
      %s97 = scalar_select %p94, %s95, %s96
      %p100 = pneg %p94
      %p101 = scmp.eq.s32.totalorder %s19, 1
      %p102 = por %p100, %p101
      %p103 = scmp.ne.s32.totalorder %s95, %s98
      %p104 = scmp.eq.s32.totalorder %s19, 0
      %p105 = por %p103, %p104
      %p106 = scmp.ne.s32.totalorder %s95, %s98
      %p107 = scmp.eq.s32.totalorder %s24, 1
      %p108 = por %p106, %p107
      %p109 = scmp.ne.s32.totalorder %s98, %s99
      %p110 = scmp.eq.s32.totalorder %s24, 0
      %p111 = por %p109, %p110
      %p112 = scmp.ne.s32.totalorder %s98, %s99
      %p113 = scmp.eq.s32.totalorder %s25, 1
      %p114 = por %p112, %p113
      %p116 = scmp.ne.s32.totalorder %s99, %s115
      %p117 = scmp.eq.s32.totalorder %s25, 0
      %p118 = por %p116, %p117
      %s120 = sadd.s32 %s119, 1
      %p123 = scmp.eq.s32.totalorder %s19, 1
      %p124 = scmp.ne.s32.totalorder %s119, %s121
      %p125 = scmp.eq.s32.totalorder %s19, 0
      %p126 = por %p124, %p125
      %p127 = scmp.ne.s32.totalorder %s119, %s121
      %p128 = scmp.eq.s32.totalorder %s24, 1
      %p129 = por %p127, %p128
      %p130 = scmp.ne.s32.totalorder %s121, %s122
      %p131 = scmp.eq.s32.totalorder %s24, 0
      %p132 = por %p130, %p131
      %p133 = scmp.ne.s32.totalorder %s121, %s122
      %p134 = scmp.eq.s32.totalorder %s25, 1
      %p135 = por %p133, %p134
      %p137 = scmp.ne.s32.totalorder %s122, %s136
      %p138 = scmp.eq.s32.totalorder %s25, 0
      %p139 = por %p137, %p138
      %s141 = sadd.s32 %s140, 1
      %p144 = scmp.eq.s32.totalorder %s19, 1
      %p145 = scmp.ne.s32.totalorder %s140, %s142
      %p146 = scmp.eq.s32.totalorder %s19, 0
      %p147 = por %p145, %p146
      %p148 = scmp.ne.s32.totalorder %s140, %s142
      %p149 = scmp.eq.s32.totalorder %s24, 1
      %p150 = por %p148, %p149
      %p151 = scmp.ne.s32.totalorder %s142, %s143
      %p152 = scmp.eq.s32.totalorder %s24, 0
      %p153 = por %p151, %p152
      %p154 = scmp.ne.s32.totalorder %s142, %s143
      %p155 = scmp.eq.s32.totalorder %s25, 1
      %p156 = por %p154, %p155
      %p158 = scmp.ne.s32.totalorder %s143, %s157
      %p159 = scmp.eq.s32.totalorder %s25, 0
      %p160 = por %p158, %p159
      %s162 = sadd.s32 %s161, 1
      %p165 = scmp.eq.s32.totalorder %s19, 1
      %p166 = scmp.ne.s32.totalorder %s161, %s163
      %p167 = scmp.eq.s32.totalorder %s19, 0
      %p168 = por %p166, %p167
      %p169 = scmp.ne.s32.totalorder %s161, %s163
      %p170 = scmp.eq.s32.totalorder %s24, 1
      %p171 = por %p169, %p170
      %p172 = scmp.ne.s32.totalorder %s163, %s164
      %p173 = scmp.eq.s32.totalorder %s24, 0
      %p174 = por %p172, %p173
      %p175 = scmp.ne.s32.totalorder %s163, %s164
      %p176 = scmp.eq.s32.totalorder %s25, 1
      %p177 = por %p175, %p176
      %p179 = scmp.ne.s32.totalorder %s164, %s178
      %p180 = scmp.eq.s32.totalorder %s25, 0
      %p181 = por %p179, %p180
      %s183 = sadd.s32 %s182, 1
      %p186 = scmp.eq.s32.totalorder %s19, 1
      %p187 = scmp.ne.s32.totalorder %s182, %s184
      %p188 = scmp.eq.s32.totalorder %s19, 0
      %p189 = por %p187, %p188
      %p190 = scmp.ne.s32.totalorder %s182, %s184
      %p191 = scmp.eq.s32.totalorder %s24, 1
      %p192 = por %p190, %p191
      %p193 = scmp.ne.s32.totalorder %s184, %s185
      %p194 = scmp.eq.s32.totalorder %s24, 0
      %p195 = por %p193, %p194
      %p196 = scmp.ne.s32.totalorder %s184, %s185
      %p197 = scmp.eq.s32.totalorder %s25, 1
      %p198 = por %p196, %p197
      %p200 = scmp.ne.s32.totalorder %s185, %s199
      %p201 = scmp.eq.s32.totalorder %s25, 0
      %p202 = por %p200, %p201
      %s203 = ssub.s32 %s27, %s34
      %s204 = ssub.s32 %s26, %s38
      %s205 = sor.u32 %s203, %s204
      %p206 = scmp.eq.s32.totalorder %s205, 0
      %s208 = sadd.s32 %s207, 1
      %s209 = scalar_select %p206, %s207, %s208
      %p212 = pneg %p206
      %p213 = scmp.eq.s32.totalorder %s19, 1
      %p214 = por %p212, %p213
      %p215 = scmp.ne.s32.totalorder %s207, %s210
      %p216 = scmp.eq.s32.totalorder %s19, 0
      %p217 = por %p215, %p216
      %p218 = scmp.ne.s32.totalorder %s207, %s210
      %p219 = scmp.eq.s32.totalorder %s24, 1
      %p220 = por %p218, %p219
      %p221 = scmp.ne.s32.totalorder %s210, %s211
      %p222 = scmp.eq.s32.totalorder %s24, 0
      %p223 = por %p221, %p222
      %p224 = scmp.ne.s32.totalorder %s210, %s211
      %p225 = scmp.eq.s32.totalorder %s25, 1
      %p226 = por %p224, %p225
      %p228 = scmp.ne.s32.totalorder %s211, %s227
      %p229 = scmp.eq.s32.totalorder %s25, 0
      %p230 = por %p228, %p229
      %s231 = ssub.s32 %s26, %s38
      %p232 = scmp.eq.s32.totalorder %s231, 0
      %s234 = sadd.s32 %s233, 1
      %s235 = scalar_select %p232, %s233, %s234
      %p238 = pneg %p232
      %p239 = scmp.eq.s32.totalorder %s19, 1
      %p240 = por %p238, %p239
      %p241 = scmp.ne.s32.totalorder %s233, %s236
      %p242 = scmp.eq.s32.totalorder %s19, 0
      %p243 = por %p241, %p242
      %p244 = scmp.ne.s32.totalorder %s233, %s236
      %p245 = scmp.eq.s32.totalorder %s24, 1
      %p246 = por %p244, %p245
      %p247 = scmp.ne.s32.totalorder %s236, %s237
      %p248 = scmp.eq.s32.totalorder %s24, 0
      %p249 = por %p247, %p248
      %p250 = scmp.ne.s32.totalorder %s236, %s237
      %p251 = scmp.eq.s32.totalorder %s25, 1
      %p252 = por %p250, %p251
      %p254 = scmp.ne.s32.totalorder %s237, %s253
      %p255 = scmp.eq.s32.totalorder %s25, 0
      %p256 = por %p254, %p255
      %p257 = scmp.le.s32.totalorder 1, %s19
      %p258 = scmp.lt.s32.totalorder %s19, 3
      %p259 = pnand %p257, %p258
      %p260 = pneg %p259
      // Predicated region
      $region9: #{encoder_forward.1} parent=5 // pred_check
        _
      $region10: #{encoder_forward.1} parent=5 // pred_check_branch
        %262 = sbr.rel (%p259) target = $region12
      $region11: #{encoder_forward.1} parent=5 // pred_region
        %s263 = ssub.s32 %s19, 1
        // Predicated region
        $region13: #{encoder_forward.1} parent=11 // pred_check
          %p264 = pneg %p85
        $region14: #{encoder_forward.1} parent=11 // pred_check_branch
          %266 = sbr.rel (%p264) target = $region16
        $region15: #{encoder_forward.1} parent=11 // pred_region
          %p267 = scmp.lt.s32.totalorder %s28, 0
          %s268 = scalar_select %p267, %s28, 0
          %s269 = smul.addr %s268, 4
          %s270 = scalar_lea.vmem %s1, %s269
        $region16: #{encoder_forward.1} parent=11 // pred_fallthru
          _
        // Predicated region
        $region17: #{encoder_forward.1} parent=11 // pred_check
          %p271 = pneg %p111
        $region18: #{encoder_forward.1} parent=11 // pred_check_branch
          %273 = sbr.rel (%p271) target = $region20
        $region19: #{encoder_forward.1} parent=11 // pred_region
          %p274 = scmp.lt.s32.totalorder %s28, 0
          %s275 = scalar_select %p274, %s28, 0
          %s276 = smul.addr %s275, 4
          %s277 = scalar_lea.vmem %s2, %s276
        $region20: #{encoder_forward.1} parent=11 // pred_fallthru
          _
        // Predicated region
        $region21: #{encoder_forward.1} parent=11 // pred_check
          %p278 = pneg %p132
        $region22: #{encoder_forward.1} parent=11 // pred_check_branch
          %280 = sbr.rel (%p278) target = $region24
        $region23: #{encoder_forward.1} parent=11 // pred_region
          _
        $region24: #{encoder_forward.1} parent=11 // pred_fallthru
          _
        // Predicated region
        $region25: #{encoder_forward.1} parent=11 // pred_check
          %p281 = pneg %p153
        $region26: #{encoder_forward.1} parent=11 // pred_check_branch
          %283 = sbr.rel (%p281) target = $region28
        $region27: #{encoder_forward.1} parent=11 // pred_region
          _
        $region28: #{encoder_forward.1} parent=11 // pred_fallthru
          _
        // Predicated region
        $region29: #{encoder_forward.1} parent=11 // pred_check
          %p284 = pneg %p174
        $region30: #{encoder_forward.1} parent=11 // pred_check_branch
          %286 = sbr.rel (%p284) target = $region32
        $region31: #{encoder_forward.1} parent=11 // pred_region
          _
        $region32: #{encoder_forward.1} parent=11 // pred_fallthru
          _
        // Predicated region
        $region33: #{encoder_forward.1} parent=11 // pred_check
          %p287 = pneg %p195
        $region34: #{encoder_forward.1} parent=11 // pred_check_branch
          %289 = sbr.rel (%p287) target = $region36
        $region35: #{encoder_forward.1} parent=11 // pred_region
          _
        $region36: #{encoder_forward.1} parent=11 // pred_fallthru
          _
      $region12: #{encoder_forward.1} parent=5 // pred_fallthru
        _
      %p290 = scmp.lt.s32.totalorder %s19, 2
      // Predicated region
      $region37: #{encoder_forward.1} parent=5 // pred_check
        %p291 = pneg %p290
      $region38: #{encoder_forward.1} parent=5 // pred_check_branch
        %293 = sbr.rel (%p291) target = $region40
      $region39: #{encoder_forward.1} parent=5 // pred_region
        // Predicated region
        $region41: #{encoder_forward.1} parent=39 // pred_check
          %p294 = pneg %p53
        $region42: #{encoder_forward.1} parent=39 // pred_check_branch
          %296 = sbr.rel (%p294) target = $region44
        $region43: #{encoder_forward.1} parent=39 // pred_region
          %s297 = smul.u32 8, %s27
          %p298 = scmp.lt.s32.totalorder %s297, 15
          %s299 = scalar_select %p298, %s297, 15
          %p300 = scmp.lt.s32.totalorder %s26, 0
          %s301 = scalar_select %p300, %s26, 0
          %s302 = sadd.s32 %s301, %s299
          %s303 = smul.addr %s302, 2
          %s304 = scalar_lea.vmem %s0, %s303
          %s305 = smul.u32 8, %s27
        $region44: #{encoder_forward.1} parent=39 // pred_fallthru
          _
      $region40: #{encoder_forward.1} parent=5 // pred_fallthru
        _
      %p306 = scmp.le.s32.totalorder 1, %s19
      %p307 = scmp.lt.s32.totalorder %s19, 3
      %p308 = pnand %p306, %p307
      %p309 = pneg %p308
      // Predicated region
      $region45: #{encoder_forward.1} parent=5 // pred_check
        _
      $region46: #{encoder_forward.1} parent=5 // pred_check_branch
        %311 = sbr.rel (%p308) target = $region48
      $region47: #{encoder_forward.1} parent=5 // pred_region
        %s312 = ssub.s32 %s19, 1
        %s313 = smul.u32 8, %s29
        %p314 = scmp.lt.s32.totalorder %s313, 15
        %s315 = scalar_select %p314, %s313, 15
        %p316 = scmp.lt.s32.totalorder %s28, 0
        %s317 = scalar_select %p316, %s28, 0
        %s318 = sadd.s32 %s317, %s315
        %s319 = smul.addr %s318, 2
        %s320 = scalar_lea.vmem %s0, %s319
        %p321 = pneg %p59
        %p322 = pneg %p56
        %p323 = scmp.lt.s32.totalorder %s28, 0
        %s324 = scalar_select %p323, %s28, 0
        %s325 = smul.addr %s324, 4
        %s326 = scalar_lea.vmem %s1, %s325
        %p327 = pneg %p85
        %p328 = pneg %p82
        %p329 = scmp.lt.s32.totalorder %s28, 0
        %s330 = scalar_select %p329, %s28, 0
        %s331 = smul.addr %s330, 4
        %s332 = scalar_lea.vmem %s2, %s331
        %p333 = pneg %p111
        %p334 = pneg %p108
        %p335 = pneg %p132
        %p336 = pneg %p129
        %p337 = pneg %p153
        %p338 = pneg %p150
        %p339 = pneg %p174
        %p340 = pneg %p171
        %p341 = pneg %p195
        %p342 = pneg %p192
        %p343 = pneg %p223
        %p344 = pneg %p220
        %s345 = sand.u32 %s210, 1
        %s346 = scalar_lea.sflag [#allocation7], %s345
        %s347 = sand.u32 %s210, 1
        %s348 = smul.addr %s347, 32
        %s349 = scalar_lea.vmem [#allocation6], %s348
        %p350 = pneg %p249
        %p351 = pneg %p246
        %s352 = smul.u32 8, %s29
        %p353 = scmp.lt.s32.totalorder %s352, 15
        %s354 = scalar_select %p353, %s352, 15
        %p355 = scmp.lt.s32.totalorder %s28, 0
        %s356 = scalar_select %p355, %s28, 0
        %s357 = sadd.s32 %s356, %s354
        %s358 = smul.addr %s357, 2
        %s359 = scalar_lea.vmem %s0, %s358
        %s360 = smul.u32 8, %s29
        %p361 = scmp.lt.s32.totalorder %s28, 0
        %s362 = scalar_select %p361, %s28, 0
        %s363 = smul.addr %s362, 4
        %s364 = scalar_lea.vmem %s1, %s363
        %p365 = scmp.lt.s32.totalorder %s28, 0
        %s366 = scalar_select %p365, %s28, 0
        %s367 = smul.addr %s366, 4
        %s368 = scalar_lea.vmem %s2, %s367
        %s369 = smul.u32 8, %s29
        %p371 = scmp.eq.s32.totalorder %s29, 0
        // Predicated region
        $region49: #{encoder_forward.1} parent=47 // pred_check
          %p372 = pneg %p371
        $region50: #{encoder_forward.1} parent=47 // pred_check_branch
          %374 = sbr.rel (%p372) target = $region52
        $region51: #{encoder_forward.1} parent=47 // pred_region
          %v375 = vld [vmem:[%s368] sm:$0xf]
          %vm376 = vcmask 257024
          %377 = vst.msk [vmem:[#allocation5] sm:$0xf] %vm376, %v375
        $region52: #{encoder_forward.1} parent=47 // pred_fallthru
          _
        %v378 = vld [vmem:[%s3] sm:$0xf]
        %v379 = vld [vmem:[%s3 + $0x4] sm:$0xf]
        %v380 = vld [vmem:[%s3 + $0x8] sm:$0xf]
        %v381 = vld [vmem:[%s3 + $0xc] sm:$0xf]
        %s382 = scalar_lea.vmem %s3, 16
        %v383 = vld [vmem:[%s382] sm:$0xf]
        %v384 = vld [vmem:[%s382 + $0x4] sm:$0xf]
        %v385 = vld [vmem:[%s382 + $0x8] sm:$0xf]
        %v386 = vld [vmem:[%s382 + $0xc] sm:$0xf]
        %s387 = scalar_lea.vmem %s3, 32
        %v388 = vld [vmem:[%s387] sm:$0xf]
        %v389 = vld [vmem:[%s387 + $0x4] sm:$0xf]
        %v390 = vld [vmem:[%s387 + $0x8] sm:$0xf]
        %v391 = vld [vmem:[%s387 + $0xc] sm:$0xf]
        %v392 = vld [vmem:[%s5] sm:$0x1]
        %s393 = scalar_lea.vmem %s5, 1
        %v394 = vld [vmem:[%s393] sm:$0x1]
        %s395 = scalar_lea.vmem %s5, 2
        %v396 = vld [vmem:[%s395] sm:$0x1]
        %v397 = vld [vmem:[%s359] sm:$0x3]
        %v399 = vlaneseq
        %v400 = vshrl.u32 %v399, 7
        %v401 = vsub.s32 0, %v400
        %v402 = vrot.slane %v392, %v401
        %v408 = vunpack.c.l.b16 %v378
        %v409 = vunpack.c.l.b16 %v379
        %v410 = vunpack.c.l.b16 %v380
        %v411 = vunpack.c.l.b16 %v381
        %v412 = vpack.c.b16 %v409, %v408
        %v413 = vpack.c.b16 %v411, %v410
        %vm416 = vcmask 261120
        %v418 = vsel %vm416, %v397, 0
        %420 = vmatprep.subr.bf16.mxu0 0
        %421 = vmatpush1.bf16.msra.mxu0 0
        %422 = vmatprep.subr.bf16.mxu0 0
        %423 = vmatpush1.bf16.msra.mxu0 0
        %424 = vmatprep.subr.bf16.mxu0 0
        %425 = vmatpush1.bf16.msra.mxu0 0
        %426 = vmatprep.subr.bf16.mxu0 0
        %427 = vmatpush1.bf16.msra.mxu0 0
        %428 = vmatprep.subr.bf16.mxu0 0
        %429 = vmatpush1.bf16.msra.mxu0 0
        %430 = vmatprep.subr.bf16.mxu0 0
        %431 = vmatpush1.bf16.msra.mxu0 0
        %432 = vmatprep.subr.bf16.mxu0 0
        %433 = vmatpush1.bf16.msra.mxu0 %v413
        %434 = vmatprep.subr.bf16.mxu0 0
        %435 = vmatpush1.bf16.msra.mxu0 %v412
        %436 = vmatprep.subr.bf16.mxu0 0
        %437 = vmatpush2.bf16.msra.mxu0 0
        %438 = vmatprep.subr.bf16.mxu0 0
        %439 = vmatpush2.bf16.msra.mxu0 0
        %440 = vmatprep.subr.bf16.mxu0 0
        %441 = vmatpush2.bf16.msra.mxu0 0
        %442 = vmatprep.subr.bf16.mxu0 0
        %443 = vmatpush2.bf16.msra.mxu0 0
        %444 = vmatprep.subr.bf16.mxu0 0
        %445 = vmatpush2.bf16.msra.mxu0 0
        %446 = vmatprep.subr.bf16.mxu0 0
        %447 = vmatpush2.bf16.msra.mxu0 0
        %448 = vmatprep.subr.bf16.mxu0 0
        %449 = vmatpush2.bf16.msra.mxu0 0
        %450 = vmatprep.subr.bf16.mxu0 0
        %451 = vmatpush2.bf16.msra.mxu0 0
        %452 = vmatprep.mubr.bf16.mxu0 0
        %453 = vmatmul.mubr.bf16.gmra.mxu0 %v418
        %v454 = vpop.f32.mrf.mxu0
        %v455 = vadd.f32 %v402, %v454
        %v456 = vpop.f32.mrf.mxu0
        %v457 = vpop.f32.mrf.mxu0
        %v458 = vpop.f32.mrf.mxu0
        %459 = vdwg.mxu0
        %vm460 = vcmask 257024
        %461 = vst.msk [vmem:[#allocation2] sm:$0xf] %vm460, %v455
        %v463 = vlaneseq
        %v464 = vshrl.u32 %v463, 7
        %v465 = vsub.s32 0, %v464
        %v466 = vrot.slane %v394, %v465
        %v472 = vunpack.c.l.b16 %v383
        %v473 = vunpack.c.l.b16 %v384
        %v474 = vunpack.c.l.b16 %v385
        %v475 = vunpack.c.l.b16 %v386
        %v476 = vpack.c.b16 %v473, %v472
        %v477 = vpack.c.b16 %v475, %v474
        %480 = vmatprep.subr.bf16.mxu0 0
        %481 = vmatpush1.bf16.msra.mxu0 0
        %482 = vmatprep.subr.bf16.mxu0 0
        %483 = vmatpush1.bf16.msra.mxu0 0
        %484 = vmatprep.subr.bf16.mxu0 0
        %485 = vmatpush1.bf16.msra.mxu0 0
        %486 = vmatprep.subr.bf16.mxu0 0
        %487 = vmatpush1.bf16.msra.mxu0 0
        %488 = vmatprep.subr.bf16.mxu0 0
        %489 = vmatpush1.bf16.msra.mxu0 0
        %490 = vmatprep.subr.bf16.mxu0 0
        %491 = vmatpush1.bf16.msra.mxu0 0
        %492 = vmatprep.subr.bf16.mxu0 0
        %493 = vmatpush1.bf16.msra.mxu0 %v477
        %494 = vmatprep.subr.bf16.mxu0 0
        %495 = vmatpush1.bf16.msra.mxu0 %v476
        %496 = vmatprep.subr.bf16.mxu0 0
        %497 = vmatpush2.bf16.msra.mxu0 0
        %498 = vmatprep.subr.bf16.mxu0 0
        %499 = vmatpush2.bf16.msra.mxu0 0
        %500 = vmatprep.subr.bf16.mxu0 0
        %501 = vmatpush2.bf16.msra.mxu0 0
        %502 = vmatprep.subr.bf16.mxu0 0
        %503 = vmatpush2.bf16.msra.mxu0 0
        %504 = vmatprep.subr.bf16.mxu0 0
        %505 = vmatpush2.bf16.msra.mxu0 0
        %506 = vmatprep.subr.bf16.mxu0 0
        %507 = vmatpush2.bf16.msra.mxu0 0
        %508 = vmatprep.subr.bf16.mxu0 0
        %509 = vmatpush2.bf16.msra.mxu0 0
        %510 = vmatprep.subr.bf16.mxu0 0
        %511 = vmatpush2.bf16.msra.mxu0 0
        %512 = vmatprep.mubr.bf16.mxu0 0
        %513 = vmatmul.mubr.bf16.gmra.mxu0 %v418
        %v514 = vpop.f32.mrf.mxu0
        %v515 = vadd.f32 %v466, %v514
        %v516 = vpop.f32.mrf.mxu0
        %v517 = vpop.f32.mrf.mxu0
        %v518 = vpop.f32.mrf.mxu0
        %519 = vdwg.mxu0
        %520 = vst.msk [vmem:[#allocation3] sm:$0xf] %vm460, %v515
        %v522 = vlaneseq
        %v523 = vshrl.u32 %v522, 7
        %v524 = vsub.s32 0, %v523
        %v525 = vrot.slane %v396, %v524
        %v531 = vunpack.c.l.b16 %v388
        %v532 = vunpack.c.l.b16 %v389
        %v533 = vunpack.c.l.b16 %v390
        %v534 = vunpack.c.l.b16 %v391
        %v535 = vpack.c.b16 %v532, %v531
        %v536 = vpack.c.b16 %v534, %v533
        %539 = vmatprep.subr.bf16.mxu0 0
        %540 = vmatpush1.bf16.msra.mxu0 0
        %541 = vmatprep.subr.bf16.mxu0 0
        %542 = vmatpush1.bf16.msra.mxu0 0
        %543 = vmatprep.subr.bf16.mxu0 0
        %544 = vmatpush1.bf16.msra.mxu0 0
        %545 = vmatprep.subr.bf16.mxu0 0
        %546 = vmatpush1.bf16.msra.mxu0 0
        %547 = vmatprep.subr.bf16.mxu0 0
        %548 = vmatpush1.bf16.msra.mxu0 0
        %549 = vmatprep.subr.bf16.mxu0 0
        %550 = vmatpush1.bf16.msra.mxu0 0
        %551 = vmatprep.subr.bf16.mxu0 0
        %552 = vmatpush1.bf16.msra.mxu0 %v536
        %553 = vmatprep.subr.bf16.mxu0 0
        %554 = vmatpush1.bf16.msra.mxu0 %v535
        %555 = vmatprep.subr.bf16.mxu0 0
        %556 = vmatpush2.bf16.msra.mxu0 0
        %557 = vmatprep.subr.bf16.mxu0 0
        %558 = vmatpush2.bf16.msra.mxu0 0
        %559 = vmatprep.subr.bf16.mxu0 0
        %560 = vmatpush2.bf16.msra.mxu0 0
        %561 = vmatprep.subr.bf16.mxu0 0
        %562 = vmatpush2.bf16.msra.mxu0 0
        %563 = vmatprep.subr.bf16.mxu0 0
        %564 = vmatpush2.bf16.msra.mxu0 0
        %565 = vmatprep.subr.bf16.mxu0 0
        %566 = vmatpush2.bf16.msra.mxu0 0
        %567 = vmatprep.subr.bf16.mxu0 0
        %568 = vmatpush2.bf16.msra.mxu0 0
        %569 = vmatprep.subr.bf16.mxu0 0
        %570 = vmatpush2.bf16.msra.mxu0 0
        %571 = vmatprep.mubr.bf16.mxu0 0
        %572 = vmatmul.mubr.bf16.gmra.mxu0 %v418
        %v573 = vpop.f32.mrf.mxu0
        %v574 = vadd.f32 %v525, %v573
        %v575 = vpop.f32.mrf.mxu0
        %v576 = vpop.f32.mrf.mxu0
        %v577 = vpop.f32.mrf.mxu0
        %578 = vdwg.mxu0
        %579 = vst.msk [vmem:[#allocation4] sm:$0xf] %vm460, %v574
        %s580 = scalar_lea.vmem %s359, 2
        %v581 = vld [vmem:[%s580] sm:$0x3]
        %v583 = vsel %vm416, %v581, 0
        %585 = vmatprep.subr.bf16.mxu0 0
        %586 = vmatpush1.bf16.msra.mxu0 0
        %587 = vmatprep.subr.bf16.mxu0 0
        %588 = vmatpush1.bf16.msra.mxu0 0
        %589 = vmatprep.subr.bf16.mxu0 0
        %590 = vmatpush1.bf16.msra.mxu0 0
        %591 = vmatprep.subr.bf16.mxu0 0
        %592 = vmatpush1.bf16.msra.mxu0 0
        %593 = vmatprep.subr.bf16.mxu0 0
        %594 = vmatpush1.bf16.msra.mxu0 0
        %595 = vmatprep.subr.bf16.mxu0 0
        %596 = vmatpush1.bf16.msra.mxu0 0
        %597 = vmatprep.subr.bf16.mxu0 0
        %598 = vmatpush1.bf16.msra.mxu0 %v413
        %599 = vmatprep.subr.bf16.mxu0 0
        %600 = vmatpush1.bf16.msra.mxu0 %v412
        %601 = vmatprep.subr.bf16.mxu0 0
        %602 = vmatpush2.bf16.msra.mxu0 0
        %603 = vmatprep.subr.bf16.mxu0 0
        %604 = vmatpush2.bf16.msra.mxu0 0
        %605 = vmatprep.subr.bf16.mxu0 0
        %606 = vmatpush2.bf16.msra.mxu0 0
        %607 = vmatprep.subr.bf16.mxu0 0
        %608 = vmatpush2.bf16.msra.mxu0 0
        %609 = vmatprep.subr.bf16.mxu0 0
        %610 = vmatpush2.bf16.msra.mxu0 0
        %611 = vmatprep.subr.bf16.mxu0 0
        %612 = vmatpush2.bf16.msra.mxu0 0
        %613 = vmatprep.subr.bf16.mxu0 0
        %614 = vmatpush2.bf16.msra.mxu0 0
        %615 = vmatprep.subr.bf16.mxu0 0
        %616 = vmatpush2.bf16.msra.mxu0 0
        %617 = vmatprep.mubr.bf16.mxu0 0
        %618 = vmatmul.mubr.bf16.gmra.mxu0 %v583
        %v619 = vpop.f32.mrf.mxu0
        %v620 = vadd.f32 %v402, %v619
        %v621 = vpop.f32.mrf.mxu0
        %v622 = vpop.f32.mrf.mxu0
        %v623 = vpop.f32.mrf.mxu0
        %624 = vdwg.mxu0
        %s625 = scalar_lea.vmem [#allocation2], 4
        %626 = vst.msk [vmem:[%s625] sm:$0xf] %vm460, %v620
        %627 = vmatprep.subr.bf16.mxu0 0
        %628 = vmatpush1.bf16.msra.mxu0 0
        %629 = vmatprep.subr.bf16.mxu0 0
        %630 = vmatpush1.bf16.msra.mxu0 0
        %631 = vmatprep.subr.bf16.mxu0 0
        %632 = vmatpush1.bf16.msra.mxu0 0
        %633 = vmatprep.subr.bf16.mxu0 0
        %634 = vmatpush1.bf16.msra.mxu0 0
        %635 = vmatprep.subr.bf16.mxu0 0
        %636 = vmatpush1.bf16.msra.mxu0 0
        %637 = vmatprep.subr.bf16.mxu0 0
        %638 = vmatpush1.bf16.msra.mxu0 0
        %639 = vmatprep.subr.bf16.mxu0 0
        %640 = vmatpush1.bf16.msra.mxu0 %v477
        %641 = vmatprep.subr.bf16.mxu0 0
        %642 = vmatpush1.bf16.msra.mxu0 %v476
        %643 = vmatprep.subr.bf16.mxu0 0
        %644 = vmatpush2.bf16.msra.mxu0 0
        %645 = vmatprep.subr.bf16.mxu0 0
        %646 = vmatpush2.bf16.msra.mxu0 0
        %647 = vmatprep.subr.bf16.mxu0 0
        %648 = vmatpush2.bf16.msra.mxu0 0
        %649 = vmatprep.subr.bf16.mxu0 0
        %650 = vmatpush2.bf16.msra.mxu0 0
        %651 = vmatprep.subr.bf16.mxu0 0
        %652 = vmatpush2.bf16.msra.mxu0 0
        %653 = vmatprep.subr.bf16.mxu0 0
        %654 = vmatpush2.bf16.msra.mxu0 0
        %655 = vmatprep.subr.bf16.mxu0 0
        %656 = vmatpush2.bf16.msra.mxu0 0
        %657 = vmatprep.subr.bf16.mxu0 0
        %658 = vmatpush2.bf16.msra.mxu0 0
        %659 = vmatprep.mubr.bf16.mxu0 0
        %660 = vmatmul.mubr.bf16.gmra.mxu0 %v583
        %v661 = vpop.f32.mrf.mxu0
        %v662 = vadd.f32 %v466, %v661
        %v663 = vpop.f32.mrf.mxu0
        %v664 = vpop.f32.mrf.mxu0
        %v665 = vpop.f32.mrf.mxu0
        %666 = vdwg.mxu0
        %s667 = scalar_lea.vmem [#allocation3], 4
        %668 = vst.msk [vmem:[%s667] sm:$0xf] %vm460, %v662
        %669 = vmatprep.subr.bf16.mxu0 0
        %670 = vmatpush1.bf16.msra.mxu0 0
        %671 = vmatprep.subr.bf16.mxu0 0
        %672 = vmatpush1.bf16.msra.mxu0 0
        %673 = vmatprep.subr.bf16.mxu0 0
        %674 = vmatpush1.bf16.msra.mxu0 0
        %675 = vmatprep.subr.bf16.mxu0 0
        %676 = vmatpush1.bf16.msra.mxu0 0
        %677 = vmatprep.subr.bf16.mxu0 0
        %678 = vmatpush1.bf16.msra.mxu0 0
        %679 = vmatprep.subr.bf16.mxu0 0
        %680 = vmatpush1.bf16.msra.mxu0 0
        %681 = vmatprep.subr.bf16.mxu0 0
        %682 = vmatpush1.bf16.msra.mxu0 %v536
        %683 = vmatprep.subr.bf16.mxu0 0
        %684 = vmatpush1.bf16.msra.mxu0 %v535
        %685 = vmatprep.subr.bf16.mxu0 0
        %686 = vmatpush2.bf16.msra.mxu0 0
        %687 = vmatprep.subr.bf16.mxu0 0
        %688 = vmatpush2.bf16.msra.mxu0 0
        %689 = vmatprep.subr.bf16.mxu0 0
        %690 = vmatpush2.bf16.msra.mxu0 0
        %691 = vmatprep.subr.bf16.mxu0 0
        %692 = vmatpush2.bf16.msra.mxu0 0
        %693 = vmatprep.subr.bf16.mxu0 0
        %694 = vmatpush2.bf16.msra.mxu0 0
        %695 = vmatprep.subr.bf16.mxu0 0
        %696 = vmatpush2.bf16.msra.mxu0 0
        %697 = vmatprep.subr.bf16.mxu0 0
        %698 = vmatpush2.bf16.msra.mxu0 0
        %699 = vmatprep.subr.bf16.mxu0 0
        %700 = vmatpush2.bf16.msra.mxu0 0
        %701 = vmatprep.mubr.bf16.mxu0 0
        %702 = vmatmul.mubr.bf16.gmra.mxu0 %v583
        %v703 = vpop.f32.mrf.mxu0
        %v704 = vadd.f32 %v525, %v703
        %v705 = vpop.f32.mrf.mxu0
        %v706 = vpop.f32.mrf.mxu0
        %v707 = vpop.f32.mrf.mxu0
        %708 = vdwg.mxu0
        %s709 = scalar_lea.vmem [#allocation4], 4
        %710 = vst.msk [vmem:[%s709] sm:$0xf] %vm460, %v704
        %s711 = scalar_lea.vmem %s359, 4
        %v712 = vld [vmem:[%s711] sm:$0x3]
        %v714 = vsel %vm416, %v712, 0
        %716 = vmatprep.subr.bf16.mxu0 0
        %717 = vmatpush1.bf16.msra.mxu0 0
        %718 = vmatprep.subr.bf16.mxu0 0
        %719 = vmatpush1.bf16.msra.mxu0 0
        %720 = vmatprep.subr.bf16.mxu0 0
        %721 = vmatpush1.bf16.msra.mxu0 0
        %722 = vmatprep.subr.bf16.mxu0 0
        %723 = vmatpush1.bf16.msra.mxu0 0
        %724 = vmatprep.subr.bf16.mxu0 0
        %725 = vmatpush1.bf16.msra.mxu0 0
        %726 = vmatprep.subr.bf16.mxu0 0
        %727 = vmatpush1.bf16.msra.mxu0 0
        %728 = vmatprep.subr.bf16.mxu0 0
        %729 = vmatpush1.bf16.msra.mxu0 %v413
        %730 = vmatprep.subr.bf16.mxu0 0
        %731 = vmatpush1.bf16.msra.mxu0 %v412
        %732 = vmatprep.subr.bf16.mxu0 0
        %733 = vmatpush2.bf16.msra.mxu0 0
        %734 = vmatprep.subr.bf16.mxu0 0
        %735 = vmatpush2.bf16.msra.mxu0 0
        %736 = vmatprep.subr.bf16.mxu0 0
        %737 = vmatpush2.bf16.msra.mxu0 0
        %738 = vmatprep.subr.bf16.mxu0 0
        %739 = vmatpush2.bf16.msra.mxu0 0
        %740 = vmatprep.subr.bf16.mxu0 0
        %741 = vmatpush2.bf16.msra.mxu0 0
        %742 = vmatprep.subr.bf16.mxu0 0
        %743 = vmatpush2.bf16.msra.mxu0 0
        %744 = vmatprep.subr.bf16.mxu0 0
        %745 = vmatpush2.bf16.msra.mxu0 0
        %746 = vmatprep.subr.bf16.mxu0 0
        %747 = vmatpush2.bf16.msra.mxu0 0
        %748 = vmatprep.mubr.bf16.mxu0 0
        %749 = vmatmul.mubr.bf16.gmra.mxu0 %v714
        %v750 = vpop.f32.mrf.mxu0
        %v751 = vadd.f32 %v402, %v750
        %v752 = vpop.f32.mrf.mxu0
        %v753 = vpop.f32.mrf.mxu0
        %v754 = vpop.f32.mrf.mxu0
        %755 = vdwg.mxu0
        %s756 = scalar_lea.vmem [#allocation2], 8
        %757 = vst.msk [vmem:[%s756] sm:$0xf] %vm460, %v751
        %758 = vmatprep.subr.bf16.mxu0 0
        %759 = vmatpush1.bf16.msra.mxu0 0
        %760 = vmatprep.subr.bf16.mxu0 0
        %761 = vmatpush1.bf16.msra.mxu0 0
        %762 = vmatprep.subr.bf16.mxu0 0
        %763 = vmatpush1.bf16.msra.mxu0 0
        %764 = vmatprep.subr.bf16.mxu0 0
        %765 = vmatpush1.bf16.msra.mxu0 0
        %766 = vmatprep.subr.bf16.mxu0 0
        %767 = vmatpush1.bf16.msra.mxu0 0
        %768 = vmatprep.subr.bf16.mxu0 0
        %769 = vmatpush1.bf16.msra.mxu0 0
        %770 = vmatprep.subr.bf16.mxu0 0
        %771 = vmatpush1.bf16.msra.mxu0 %v477
        %772 = vmatprep.subr.bf16.mxu0 0
        %773 = vmatpush1.bf16.msra.mxu0 %v476
        %774 = vmatprep.subr.bf16.mxu0 0
        %775 = vmatpush2.bf16.msra.mxu0 0
        %776 = vmatprep.subr.bf16.mxu0 0
        %777 = vmatpush2.bf16.msra.mxu0 0
        %778 = vmatprep.subr.bf16.mxu0 0
        %779 = vmatpush2.bf16.msra.mxu0 0
        %780 = vmatprep.subr.bf16.mxu0 0
        %781 = vmatpush2.bf16.msra.mxu0 0
        %782 = vmatprep.subr.bf16.mxu0 0
        %783 = vmatpush2.bf16.msra.mxu0 0
        %784 = vmatprep.subr.bf16.mxu0 0
        %785 = vmatpush2.bf16.msra.mxu0 0
        %786 = vmatprep.subr.bf16.mxu0 0
        %787 = vmatpush2.bf16.msra.mxu0 0
        %788 = vmatprep.subr.bf16.mxu0 0
        %789 = vmatpush2.bf16.msra.mxu0 0
        %790 = vmatprep.mubr.bf16.mxu0 0
        %791 = vmatmul.mubr.bf16.gmra.mxu0 %v714
        %v792 = vpop.f32.mrf.mxu0
        %v793 = vadd.f32 %v466, %v792
        %v794 = vpop.f32.mrf.mxu0
        %v795 = vpop.f32.mrf.mxu0
        %v796 = vpop.f32.mrf.mxu0
        %797 = vdwg.mxu0
        %s798 = scalar_lea.vmem [#allocation3], 8
        %799 = vst.msk [vmem:[%s798] sm:$0xf] %vm460, %v793
        %800 = vmatprep.subr.bf16.mxu0 0
        %801 = vmatpush1.bf16.msra.mxu0 0
        %802 = vmatprep.subr.bf16.mxu0 0
        %803 = vmatpush1.bf16.msra.mxu0 0
        %804 = vmatprep.subr.bf16.mxu0 0
        %805 = vmatpush1.bf16.msra.mxu0 0
        %806 = vmatprep.subr.bf16.mxu0 0
        %807 = vmatpush1.bf16.msra.mxu0 0
        %808 = vmatprep.subr.bf16.mxu0 0
        %809 = vmatpush1.bf16.msra.mxu0 0
        %810 = vmatprep.subr.bf16.mxu0 0
        %811 = vmatpush1.bf16.msra.mxu0 0
        %812 = vmatprep.subr.bf16.mxu0 0
        %813 = vmatpush1.bf16.msra.mxu0 %v536
        %814 = vmatprep.subr.bf16.mxu0 0
        %815 = vmatpush1.bf16.msra.mxu0 %v535
        %816 = vmatprep.subr.bf16.mxu0 0
        %817 = vmatpush2.bf16.msra.mxu0 0
        %818 = vmatprep.subr.bf16.mxu0 0
        %819 = vmatpush2.bf16.msra.mxu0 0
        %820 = vmatprep.subr.bf16.mxu0 0
        %821 = vmatpush2.bf16.msra.mxu0 0
        %822 = vmatprep.subr.bf16.mxu0 0
        %823 = vmatpush2.bf16.msra.mxu0 0
        %824 = vmatprep.subr.bf16.mxu0 0
        %825 = vmatpush2.bf16.msra.mxu0 0
        %826 = vmatprep.subr.bf16.mxu0 0
        %827 = vmatpush2.bf16.msra.mxu0 0
        %828 = vmatprep.subr.bf16.mxu0 0
        %829 = vmatpush2.bf16.msra.mxu0 0
        %830 = vmatprep.subr.bf16.mxu0 0
        %831 = vmatpush2.bf16.msra.mxu0 0
        %832 = vmatprep.mubr.bf16.mxu0 0
        %833 = vmatmul.mubr.bf16.gmra.mxu0 %v714
        %v834 = vpop.f32.mrf.mxu0
        %v835 = vadd.f32 %v525, %v834
        %v836 = vpop.f32.mrf.mxu0
        %v837 = vpop.f32.mrf.mxu0
        %v838 = vpop.f32.mrf.mxu0
        %839 = vdwg.mxu0
        %s840 = scalar_lea.vmem [#allocation4], 8
        %841 = vst.msk [vmem:[%s840] sm:$0xf] %vm460, %v835
        %s842 = scalar_lea.vmem %s359, 6
        %v843 = vld [vmem:[%s842] sm:$0x3]
        %v845 = vsel %vm416, %v843, 0
        %847 = vmatprep.subr.bf16.mxu0 0
        %848 = vmatpush1.bf16.msra.mxu0 0
        %849 = vmatprep.subr.bf16.mxu0 0
        %850 = vmatpush1.bf16.msra.mxu0 0
        %851 = vmatprep.subr.bf16.mxu0 0
        %852 = vmatpush1.bf16.msra.mxu0 0
        %853 = vmatprep.subr.bf16.mxu0 0
        %854 = vmatpush1.bf16.msra.mxu0 0
        %855 = vmatprep.subr.bf16.mxu0 0
        %856 = vmatpush1.bf16.msra.mxu0 0
        %857 = vmatprep.subr.bf16.mxu0 0
        %858 = vmatpush1.bf16.msra.mxu0 0
        %859 = vmatprep.subr.bf16.mxu0 0
        %860 = vmatpush1.bf16.msra.mxu0 %v413
        %861 = vmatprep.subr.bf16.mxu0 0
        %862 = vmatpush1.bf16.msra.mxu0 %v412
        %863 = vmatprep.subr.bf16.mxu0 0
        %864 = vmatpush2.bf16.msra.mxu0 0
        %865 = vmatprep.subr.bf16.mxu0 0
        %866 = vmatpush2.bf16.msra.mxu0 0
        %867 = vmatprep.subr.bf16.mxu0 0
        %868 = vmatpush2.bf16.msra.mxu0 0
        %869 = vmatprep.subr.bf16.mxu0 0
        %870 = vmatpush2.bf16.msra.mxu0 0
        %871 = vmatprep.subr.bf16.mxu0 0
        %872 = vmatpush2.bf16.msra.mxu0 0
        %873 = vmatprep.subr.bf16.mxu0 0
        %874 = vmatpush2.bf16.msra.mxu0 0
        %875 = vmatprep.subr.bf16.mxu0 0
        %876 = vmatpush2.bf16.msra.mxu0 0
        %877 = vmatprep.subr.bf16.mxu0 0
        %878 = vmatpush2.bf16.msra.mxu0 0
        %879 = vmatprep.mubr.bf16.mxu0 0
        %880 = vmatmul.mubr.bf16.gmra.mxu0 %v845
        %v881 = vpop.f32.mrf.mxu0
        %v882 = vadd.f32 %v402, %v881
        %v883 = vpop.f32.mrf.mxu0
        %v884 = vpop.f32.mrf.mxu0
        %v885 = vpop.f32.mrf.mxu0
        %886 = vdwg.mxu0
        %s887 = scalar_lea.vmem [#allocation2], 12
        %888 = vst.msk [vmem:[%s887] sm:$0xf] %vm460, %v882
        %889 = vmatprep.subr.bf16.mxu0 0
        %890 = vmatpush1.bf16.msra.mxu0 0
        %891 = vmatprep.subr.bf16.mxu0 0
        %892 = vmatpush1.bf16.msra.mxu0 0
        %893 = vmatprep.subr.bf16.mxu0 0
        %894 = vmatpush1.bf16.msra.mxu0 0
        %895 = vmatprep.subr.bf16.mxu0 0
        %896 = vmatpush1.bf16.msra.mxu0 0
        %897 = vmatprep.subr.bf16.mxu0 0
        %898 = vmatpush1.bf16.msra.mxu0 0
        %899 = vmatprep.subr.bf16.mxu0 0
        %900 = vmatpush1.bf16.msra.mxu0 0
        %901 = vmatprep.subr.bf16.mxu0 0
        %902 = vmatpush1.bf16.msra.mxu0 %v477
        %903 = vmatprep.subr.bf16.mxu0 0
        %904 = vmatpush1.bf16.msra.mxu0 %v476
        %905 = vmatprep.subr.bf16.mxu0 0
        %906 = vmatpush2.bf16.msra.mxu0 0
        %907 = vmatprep.subr.bf16.mxu0 0
        %908 = vmatpush2.bf16.msra.mxu0 0
        %909 = vmatprep.subr.bf16.mxu0 0
        %910 = vmatpush2.bf16.msra.mxu0 0
        %911 = vmatprep.subr.bf16.mxu0 0
        %912 = vmatpush2.bf16.msra.mxu0 0
        %913 = vmatprep.subr.bf16.mxu0 0
        %914 = vmatpush2.bf16.msra.mxu0 0
        %915 = vmatprep.subr.bf16.mxu0 0
        %916 = vmatpush2.bf16.msra.mxu0 0
        %917 = vmatprep.subr.bf16.mxu0 0
        %918 = vmatpush2.bf16.msra.mxu0 0
        %919 = vmatprep.subr.bf16.mxu0 0
        %920 = vmatpush2.bf16.msra.mxu0 0
        %921 = vmatprep.mubr.bf16.mxu0 0
        %922 = vmatmul.mubr.bf16.gmra.mxu0 %v845
        %v923 = vpop.f32.mrf.mxu0
        %v924 = vadd.f32 %v466, %v923
        %v925 = vpop.f32.mrf.mxu0
        %v926 = vpop.f32.mrf.mxu0
        %v927 = vpop.f32.mrf.mxu0
        %928 = vdwg.mxu0
        %s929 = scalar_lea.vmem [#allocation3], 12
        %930 = vst.msk [vmem:[%s929] sm:$0xf] %vm460, %v924
        %931 = vmatprep.subr.bf16.mxu0 0
        %932 = vmatpush1.bf16.msra.mxu0 0
        %933 = vmatprep.subr.bf16.mxu0 0
        %934 = vmatpush1.bf16.msra.mxu0 0
        %935 = vmatprep.subr.bf16.mxu0 0
        %936 = vmatpush1.bf16.msra.mxu0 0
        %937 = vmatprep.subr.bf16.mxu0 0
        %938 = vmatpush1.bf16.msra.mxu0 0
        %939 = vmatprep.subr.bf16.mxu0 0
        %940 = vmatpush1.bf16.msra.mxu0 0
        %941 = vmatprep.subr.bf16.mxu0 0
        %942 = vmatpush1.bf16.msra.mxu0 0
        %943 = vmatprep.subr.bf16.mxu0 0
        %944 = vmatpush1.bf16.msra.mxu0 %v536
        %945 = vmatprep.subr.bf16.mxu0 0
        %946 = vmatpush1.bf16.msra.mxu0 %v535
        %947 = vmatprep.subr.bf16.mxu0 0
        %948 = vmatpush2.bf16.msra.mxu0 0
        %949 = vmatprep.subr.bf16.mxu0 0
        %950 = vmatpush2.bf16.msra.mxu0 0
        %951 = vmatprep.subr.bf16.mxu0 0
        %952 = vmatpush2.bf16.msra.mxu0 0
        %953 = vmatprep.subr.bf16.mxu0 0
        %954 = vmatpush2.bf16.msra.mxu0 0
        %955 = vmatprep.subr.bf16.mxu0 0
        %956 = vmatpush2.bf16.msra.mxu0 0
        %957 = vmatprep.subr.bf16.mxu0 0
        %958 = vmatpush2.bf16.msra.mxu0 0
        %959 = vmatprep.subr.bf16.mxu0 0
        %960 = vmatpush2.bf16.msra.mxu0 0
        %961 = vmatprep.subr.bf16.mxu0 0
        %962 = vmatpush2.bf16.msra.mxu0 0
        %963 = vmatprep.mubr.bf16.mxu0 0
        %964 = vmatmul.mubr.bf16.gmra.mxu0 %v845
        %v965 = vpop.f32.mrf.mxu0
        %v966 = vadd.f32 %v525, %v965
        %v967 = vpop.f32.mrf.mxu0
        %v968 = vpop.f32.mrf.mxu0
        %v969 = vpop.f32.mrf.mxu0
        %970 = vdwg.mxu0
        %s971 = scalar_lea.vmem [#allocation4], 12
        %972 = vst.msk [vmem:[%s971] sm:$0xf] %vm460, %v966
        %s973 = scalar_lea.vmem %s359, 8
        %v974 = vld [vmem:[%s973] sm:$0x3]
        %v976 = vsel %vm416, %v974, 0
        %978 = vmatprep.subr.bf16.mxu0 0
        %979 = vmatpush1.bf16.msra.mxu0 0
        %980 = vmatprep.subr.bf16.mxu0 0
        %981 = vmatpush1.bf16.msra.mxu0 0
        %982 = vmatprep.subr.bf16.mxu0 0
        %983 = vmatpush1.bf16.msra.mxu0 0
        %984 = vmatprep.subr.bf16.mxu0 0
        %985 = vmatpush1.bf16.msra.mxu0 0
        %986 = vmatprep.subr.bf16.mxu0 0
        %987 = vmatpush1.bf16.msra.mxu0 0
        %988 = vmatprep.subr.bf16.mxu0 0
        %989 = vmatpush1.bf16.msra.mxu0 0
        %990 = vmatprep.subr.bf16.mxu0 0
        %991 = vmatpush1.bf16.msra.mxu0 %v413
        %992 = vmatprep.subr.bf16.mxu0 0
        %993 = vmatpush1.bf16.msra.mxu0 %v412
        %994 = vmatprep.subr.bf16.mxu0 0
        %995 = vmatpush2.bf16.msra.mxu0 0
        %996 = vmatprep.subr.bf16.mxu0 0
        %997 = vmatpush2.bf16.msra.mxu0 0
        %998 = vmatprep.subr.bf16.mxu0 0
        %999 = vmatpush2.bf16.msra.mxu0 0
        %1000 = vmatprep.subr.bf16.mxu0 0
        %1001 = vmatpush2.bf16.msra.mxu0 0
        %1002 = vmatprep.subr.bf16.mxu0 0
        %1003 = vmatpush2.bf16.msra.mxu0 0
        %1004 = vmatprep.subr.bf16.mxu0 0
        %1005 = vmatpush2.bf16.msra.mxu0 0
        %1006 = vmatprep.subr.bf16.mxu0 0
        %1007 = vmatpush2.bf16.msra.mxu0 0
        %1008 = vmatprep.subr.bf16.mxu0 0
        %1009 = vmatpush2.bf16.msra.mxu0 0
        %1010 = vmatprep.mubr.bf16.mxu0 0
        %1011 = vmatmul.mubr.bf16.gmra.mxu0 %v976
        %v1012 = vpop.f32.mrf.mxu0
        %v1013 = vadd.f32 %v402, %v1012
        %v1014 = vpop.f32.mrf.mxu0
        %v1015 = vpop.f32.mrf.mxu0
        %v1016 = vpop.f32.mrf.mxu0
        %1017 = vdwg.mxu0
        %s1018 = scalar_lea.vmem [#allocation2], 16
        %1019 = vst.msk [vmem:[%s1018] sm:$0xf] %vm460, %v1013
        %1020 = vmatprep.subr.bf16.mxu0 0
        %1021 = vmatpush1.bf16.msra.mxu0 0
        %1022 = vmatprep.subr.bf16.mxu0 0
        %1023 = vmatpush1.bf16.msra.mxu0 0
        %1024 = vmatprep.subr.bf16.mxu0 0
        %1025 = vmatpush1.bf16.msra.mxu0 0
        %1026 = vmatprep.subr.bf16.mxu0 0
        %1027 = vmatpush1.bf16.msra.mxu0 0
        %1028 = vmatprep.subr.bf16.mxu0 0
        %1029 = vmatpush1.bf16.msra.mxu0 0
        %1030 = vmatprep.subr.bf16.mxu0 0
        %1031 = vmatpush1.bf16.msra.mxu0 0
        %1032 = vmatprep.subr.bf16.mxu0 0
        %1033 = vmatpush1.bf16.msra.mxu0 %v477
        %1034 = vmatprep.subr.bf16.mxu0 0
        %1035 = vmatpush1.bf16.msra.mxu0 %v476
        %1036 = vmatprep.subr.bf16.mxu0 0
        %1037 = vmatpush2.bf16.msra.mxu0 0
        %1038 = vmatprep.subr.bf16.mxu0 0
        %1039 = vmatpush2.bf16.msra.mxu0 0
        %1040 = vmatprep.subr.bf16.mxu0 0
        %1041 = vmatpush2.bf16.msra.mxu0 0
        %1042 = vmatprep.subr.bf16.mxu0 0
        %1043 = vmatpush2.bf16.msra.mxu0 0
        %1044 = vmatprep.subr.bf16.mxu0 0
        %1045 = vmatpush2.bf16.msra.mxu0 0
        %1046 = vmatprep.subr.bf16.mxu0 0
        %1047 = vmatpush2.bf16.msra.mxu0 0
        %1048 = vmatprep.subr.bf16.mxu0 0
        %1049 = vmatpush2.bf16.msra.mxu0 0
        %1050 = vmatprep.subr.bf16.mxu0 0
        %1051 = vmatpush2.bf16.msra.mxu0 0
        %1052 = vmatprep.mubr.bf16.mxu0 0
        %1053 = vmatmul.mubr.bf16.gmra.mxu0 %v976
        %v1054 = vpop.f32.mrf.mxu0
        %v1055 = vadd.f32 %v466, %v1054
        %v1056 = vpop.f32.mrf.mxu0
        %v1057 = vpop.f32.mrf.mxu0
        %v1058 = vpop.f32.mrf.mxu0
        %1059 = vdwg.mxu0
        %s1060 = scalar_lea.vmem [#allocation3], 16
        %1061 = vst.msk [vmem:[%s1060] sm:$0xf] %vm460, %v1055
        %1062 = vmatprep.subr.bf16.mxu0 0
        %1063 = vmatpush1.bf16.msra.mxu0 0
        %1064 = vmatprep.subr.bf16.mxu0 0
        %1065 = vmatpush1.bf16.msra.mxu0 0
        %1066 = vmatprep.subr.bf16.mxu0 0
        %1067 = vmatpush1.bf16.msra.mxu0 0
        %1068 = vmatprep.subr.bf16.mxu0 0
        %1069 = vmatpush1.bf16.msra.mxu0 0
        %1070 = vmatprep.subr.bf16.mxu0 0
        %1071 = vmatpush1.bf16.msra.mxu0 0
        %1072 = vmatprep.subr.bf16.mxu0 0
        %1073 = vmatpush1.bf16.msra.mxu0 0
        %1074 = vmatprep.subr.bf16.mxu0 0
        %1075 = vmatpush1.bf16.msra.mxu0 %v536
        %1076 = vmatprep.subr.bf16.mxu0 0
        %1077 = vmatpush1.bf16.msra.mxu0 %v535
        %1078 = vmatprep.subr.bf16.mxu0 0
        %1079 = vmatpush2.bf16.msra.mxu0 0
        %1080 = vmatprep.subr.bf16.mxu0 0
        %1081 = vmatpush2.bf16.msra.mxu0 0
        %1082 = vmatprep.subr.bf16.mxu0 0
        %1083 = vmatpush2.bf16.msra.mxu0 0
        %1084 = vmatprep.subr.bf16.mxu0 0
        %1085 = vmatpush2.bf16.msra.mxu0 0
        %1086 = vmatprep.subr.bf16.mxu0 0
        %1087 = vmatpush2.bf16.msra.mxu0 0
        %1088 = vmatprep.subr.bf16.mxu0 0
        %1089 = vmatpush2.bf16.msra.mxu0 0
        %1090 = vmatprep.subr.bf16.mxu0 0
        %1091 = vmatpush2.bf16.msra.mxu0 0
        %1092 = vmatprep.subr.bf16.mxu0 0
        %1093 = vmatpush2.bf16.msra.mxu0 0
        %1094 = vmatprep.mubr.bf16.mxu0 0
        %1095 = vmatmul.mubr.bf16.gmra.mxu0 %v976
        %v1096 = vpop.f32.mrf.mxu0
        %v1097 = vadd.f32 %v525, %v1096
        %v1098 = vpop.f32.mrf.mxu0
        %v1099 = vpop.f32.mrf.mxu0
        %v1100 = vpop.f32.mrf.mxu0
        %1101 = vdwg.mxu0
        %s1102 = scalar_lea.vmem [#allocation4], 16
        %1103 = vst.msk [vmem:[%s1102] sm:$0xf] %vm460, %v1097
        %s1104 = scalar_lea.vmem %s359, 10
        %v1105 = vld [vmem:[%s1104] sm:$0x3]
        %v1107 = vsel %vm416, %v1105, 0
        %1109 = vmatprep.subr.bf16.mxu0 0
        %1110 = vmatpush1.bf16.msra.mxu0 0
        %1111 = vmatprep.subr.bf16.mxu0 0
        %1112 = vmatpush1.bf16.msra.mxu0 0
        %1113 = vmatprep.subr.bf16.mxu0 0
        %1114 = vmatpush1.bf16.msra.mxu0 0
        %1115 = vmatprep.subr.bf16.mxu0 0
        %1116 = vmatpush1.bf16.msra.mxu0 0
        %1117 = vmatprep.subr.bf16.mxu0 0
        %1118 = vmatpush1.bf16.msra.mxu0 0
        %1119 = vmatprep.subr.bf16.mxu0 0
        %1120 = vmatpush1.bf16.msra.mxu0 0
        %1121 = vmatprep.subr.bf16.mxu0 0
        %1122 = vmatpush1.bf16.msra.mxu0 %v413
        %1123 = vmatprep.subr.bf16.mxu0 0
        %1124 = vmatpush1.bf16.msra.mxu0 %v412
        %1125 = vmatprep.subr.bf16.mxu0 0
        %1126 = vmatpush2.bf16.msra.mxu0 0
        %1127 = vmatprep.subr.bf16.mxu0 0
        %1128 = vmatpush2.bf16.msra.mxu0 0
        %1129 = vmatprep.subr.bf16.mxu0 0
        %1130 = vmatpush2.bf16.msra.mxu0 0
        %1131 = vmatprep.subr.bf16.mxu0 0
        %1132 = vmatpush2.bf16.msra.mxu0 0
        %1133 = vmatprep.subr.bf16.mxu0 0
        %1134 = vmatpush2.bf16.msra.mxu0 0
        %1135 = vmatprep.subr.bf16.mxu0 0
        %1136 = vmatpush2.bf16.msra.mxu0 0
        %1137 = vmatprep.subr.bf16.mxu0 0
        %1138 = vmatpush2.bf16.msra.mxu0 0
        %1139 = vmatprep.subr.bf16.mxu0 0
        %1140 = vmatpush2.bf16.msra.mxu0 0
        %1141 = vmatprep.mubr.bf16.mxu0 0
        %1142 = vmatmul.mubr.bf16.gmra.mxu0 %v1107
        %v1143 = vpop.f32.mrf.mxu0
        %v1144 = vadd.f32 %v402, %v1143
        %v1145 = vpop.f32.mrf.mxu0
        %v1146 = vpop.f32.mrf.mxu0
        %v1147 = vpop.f32.mrf.mxu0
        %1148 = vdwg.mxu0
        %s1149 = scalar_lea.vmem [#allocation2], 20
        %1150 = vst.msk [vmem:[%s1149] sm:$0xf] %vm460, %v1144
        %1151 = vmatprep.subr.bf16.mxu0 0
        %1152 = vmatpush1.bf16.msra.mxu0 0
        %1153 = vmatprep.subr.bf16.mxu0 0
        %1154 = vmatpush1.bf16.msra.mxu0 0
        %1155 = vmatprep.subr.bf16.mxu0 0
        %1156 = vmatpush1.bf16.msra.mxu0 0
        %1157 = vmatprep.subr.bf16.mxu0 0
        %1158 = vmatpush1.bf16.msra.mxu0 0
        %1159 = vmatprep.subr.bf16.mxu0 0
        %1160 = vmatpush1.bf16.msra.mxu0 0
        %1161 = vmatprep.subr.bf16.mxu0 0
        %1162 = vmatpush1.bf16.msra.mxu0 0
        %1163 = vmatprep.subr.bf16.mxu0 0
        %1164 = vmatpush1.bf16.msra.mxu0 %v477
        %1165 = vmatprep.subr.bf16.mxu0 0
        %1166 = vmatpush1.bf16.msra.mxu0 %v476
        %1167 = vmatprep.subr.bf16.mxu0 0
        %1168 = vmatpush2.bf16.msra.mxu0 0
        %1169 = vmatprep.subr.bf16.mxu0 0
        %1170 = vmatpush2.bf16.msra.mxu0 0
        %1171 = vmatprep.subr.bf16.mxu0 0
        %1172 = vmatpush2.bf16.msra.mxu0 0
        %1173 = vmatprep.subr.bf16.mxu0 0
        %1174 = vmatpush2.bf16.msra.mxu0 0
        %1175 = vmatprep.subr.bf16.mxu0 0
        %1176 = vmatpush2.bf16.msra.mxu0 0
        %1177 = vmatprep.subr.bf16.mxu0 0
        %1178 = vmatpush2.bf16.msra.mxu0 0
        %1179 = vmatprep.subr.bf16.mxu0 0
        %1180 = vmatpush2.bf16.msra.mxu0 0
        %1181 = vmatprep.subr.bf16.mxu0 0
        %1182 = vmatpush2.bf16.msra.mxu0 0
        %1183 = vmatprep.mubr.bf16.mxu0 0
        %1184 = vmatmul.mubr.bf16.gmra.mxu0 %v1107
        %v1185 = vpop.f32.mrf.mxu0
        %v1186 = vadd.f32 %v466, %v1185
        %v1187 = vpop.f32.mrf.mxu0
        %v1188 = vpop.f32.mrf.mxu0
        %v1189 = vpop.f32.mrf.mxu0
        %1190 = vdwg.mxu0
        %s1191 = scalar_lea.vmem [#allocation3], 20
        %1192 = vst.msk [vmem:[%s1191] sm:$0xf] %vm460, %v1186
        %1193 = vmatprep.subr.bf16.mxu0 0
        %1194 = vmatpush1.bf16.msra.mxu0 0
        %1195 = vmatprep.subr.bf16.mxu0 0
        %1196 = vmatpush1.bf16.msra.mxu0 0
        %1197 = vmatprep.subr.bf16.mxu0 0
        %1198 = vmatpush1.bf16.msra.mxu0 0
        %1199 = vmatprep.subr.bf16.mxu0 0
        %1200 = vmatpush1.bf16.msra.mxu0 0
        %1201 = vmatprep.subr.bf16.mxu0 0
        %1202 = vmatpush1.bf16.msra.mxu0 0
        %1203 = vmatprep.subr.bf16.mxu0 0
        %1204 = vmatpush1.bf16.msra.mxu0 0
        %1205 = vmatprep.subr.bf16.mxu0 0
        %1206 = vmatpush1.bf16.msra.mxu0 %v536
        %1207 = vmatprep.subr.bf16.mxu0 0
        %1208 = vmatpush1.bf16.msra.mxu0 %v535
        %1209 = vmatprep.subr.bf16.mxu0 0
        %1210 = vmatpush2.bf16.msra.mxu0 0
        %1211 = vmatprep.subr.bf16.mxu0 0
        %1212 = vmatpush2.bf16.msra.mxu0 0
        %1213 = vmatprep.subr.bf16.mxu0 0
        %1214 = vmatpush2.bf16.msra.mxu0 0
        %1215 = vmatprep.subr.bf16.mxu0 0
        %1216 = vmatpush2.bf16.msra.mxu0 0
        %1217 = vmatprep.subr.bf16.mxu0 0
        %1218 = vmatpush2.bf16.msra.mxu0 0
        %1219 = vmatprep.subr.bf16.mxu0 0
        %1220 = vmatpush2.bf16.msra.mxu0 0
        %1221 = vmatprep.subr.bf16.mxu0 0
        %1222 = vmatpush2.bf16.msra.mxu0 0
        %1223 = vmatprep.subr.bf16.mxu0 0
        %1224 = vmatpush2.bf16.msra.mxu0 0
        %1225 = vmatprep.mubr.bf16.mxu0 0
        %1226 = vmatmul.mubr.bf16.gmra.mxu0 %v1107
        %v1227 = vpop.f32.mrf.mxu0
        %v1228 = vadd.f32 %v525, %v1227
        %v1229 = vpop.f32.mrf.mxu0
        %v1230 = vpop.f32.mrf.mxu0
        %v1231 = vpop.f32.mrf.mxu0
        %1232 = vdwg.mxu0
        %s1233 = scalar_lea.vmem [#allocation4], 20
        %1234 = vst.msk [vmem:[%s1233] sm:$0xf] %vm460, %v1228
        %s1235 = scalar_lea.vmem %s359, 12
        %v1236 = vld [vmem:[%s1235] sm:$0x3]
        %v1238 = vsel %vm416, %v1236, 0
        %1240 = vmatprep.subr.bf16.mxu0 0
        %1241 = vmatpush1.bf16.msra.mxu0 0
        %1242 = vmatprep.subr.bf16.mxu0 0
        %1243 = vmatpush1.bf16.msra.mxu0 0
        %1244 = vmatprep.subr.bf16.mxu0 0
        %1245 = vmatpush1.bf16.msra.mxu0 0
        %1246 = vmatprep.subr.bf16.mxu0 0
        %1247 = vmatpush1.bf16.msra.mxu0 0
        %1248 = vmatprep.subr.bf16.mxu0 0
        %1249 = vmatpush1.bf16.msra.mxu0 0
        %1250 = vmatprep.subr.bf16.mxu0 0
        %1251 = vmatpush1.bf16.msra.mxu0 0
        %1252 = vmatprep.subr.bf16.mxu0 0
        %1253 = vmatpush1.bf16.msra.mxu0 %v413
        %1254 = vmatprep.subr.bf16.mxu0 0
        %1255 = vmatpush1.bf16.msra.mxu0 %v412
        %1256 = vmatprep.subr.bf16.mxu0 0
        %1257 = vmatpush2.bf16.msra.mxu0 0
        %1258 = vmatprep.subr.bf16.mxu0 0
        %1259 = vmatpush2.bf16.msra.mxu0 0
        %1260 = vmatprep.subr.bf16.mxu0 0
        %1261 = vmatpush2.bf16.msra.mxu0 0
        %1262 = vmatprep.subr.bf16.mxu0 0
        %1263 = vmatpush2.bf16.msra.mxu0 0
        %1264 = vmatprep.subr.bf16.mxu0 0
        %1265 = vmatpush2.bf16.msra.mxu0 0
        %1266 = vmatprep.subr.bf16.mxu0 0
        %1267 = vmatpush2.bf16.msra.mxu0 0
        %1268 = vmatprep.subr.bf16.mxu0 0
        %1269 = vmatpush2.bf16.msra.mxu0 0
        %1270 = vmatprep.subr.bf16.mxu0 0
        %1271 = vmatpush2.bf16.msra.mxu0 0
        %1272 = vmatprep.mubr.bf16.mxu0 0
        %1273 = vmatmul.mubr.bf16.gmra.mxu0 %v1238
        %v1274 = vpop.f32.mrf.mxu0
        %v1275 = vadd.f32 %v402, %v1274
        %v1276 = vpop.f32.mrf.mxu0
        %v1277 = vpop.f32.mrf.mxu0
        %v1278 = vpop.f32.mrf.mxu0
        %1279 = vdwg.mxu0
        %s1280 = scalar_lea.vmem [#allocation2], 24
        %1281 = vst.msk [vmem:[%s1280] sm:$0xf] %vm460, %v1275
        %1282 = vmatprep.subr.bf16.mxu0 0
        %1283 = vmatpush1.bf16.msra.mxu0 0
        %1284 = vmatprep.subr.bf16.mxu0 0
        %1285 = vmatpush1.bf16.msra.mxu0 0
        %1286 = vmatprep.subr.bf16.mxu0 0
        %1287 = vmatpush1.bf16.msra.mxu0 0
        %1288 = vmatprep.subr.bf16.mxu0 0
        %1289 = vmatpush1.bf16.msra.mxu0 0
        %1290 = vmatprep.subr.bf16.mxu0 0
        %1291 = vmatpush1.bf16.msra.mxu0 0
        %1292 = vmatprep.subr.bf16.mxu0 0
        %1293 = vmatpush1.bf16.msra.mxu0 0
        %1294 = vmatprep.subr.bf16.mxu0 0
        %1295 = vmatpush1.bf16.msra.mxu0 %v477
        %1296 = vmatprep.subr.bf16.mxu0 0
        %1297 = vmatpush1.bf16.msra.mxu0 %v476
        %1298 = vmatprep.subr.bf16.mxu0 0
        %1299 = vmatpush2.bf16.msra.mxu0 0
        %1300 = vmatprep.subr.bf16.mxu0 0
        %1301 = vmatpush2.bf16.msra.mxu0 0
        %1302 = vmatprep.subr.bf16.mxu0 0
        %1303 = vmatpush2.bf16.msra.mxu0 0
        %1304 = vmatprep.subr.bf16.mxu0 0
        %1305 = vmatpush2.bf16.msra.mxu0 0
        %1306 = vmatprep.subr.bf16.mxu0 0
        %1307 = vmatpush2.bf16.msra.mxu0 0
        %1308 = vmatprep.subr.bf16.mxu0 0
        %1309 = vmatpush2.bf16.msra.mxu0 0
        %1310 = vmatprep.subr.bf16.mxu0 0
        %1311 = vmatpush2.bf16.msra.mxu0 0
        %1312 = vmatprep.subr.bf16.mxu0 0
        %1313 = vmatpush2.bf16.msra.mxu0 0
        %1314 = vmatprep.mubr.bf16.mxu0 0
        %1315 = vmatmul.mubr.bf16.gmra.mxu0 %v1238
        %v1316 = vpop.f32.mrf.mxu0
        %v1317 = vadd.f32 %v466, %v1316
        %v1318 = vpop.f32.mrf.mxu0
        %v1319 = vpop.f32.mrf.mxu0
        %v1320 = vpop.f32.mrf.mxu0
        %1321 = vdwg.mxu0
        %s1322 = scalar_lea.vmem [#allocation3], 24
        %1323 = vst.msk [vmem:[%s1322] sm:$0xf] %vm460, %v1317
        %1324 = vmatprep.subr.bf16.mxu0 0
        %1325 = vmatpush1.bf16.msra.mxu0 0
        %1326 = vmatprep.subr.bf16.mxu0 0
        %1327 = vmatpush1.bf16.msra.mxu0 0
        %1328 = vmatprep.subr.bf16.mxu0 0
        %1329 = vmatpush1.bf16.msra.mxu0 0
        %1330 = vmatprep.subr.bf16.mxu0 0
        %1331 = vmatpush1.bf16.msra.mxu0 0
        %1332 = vmatprep.subr.bf16.mxu0 0
        %1333 = vmatpush1.bf16.msra.mxu0 0
        %1334 = vmatprep.subr.bf16.mxu0 0
        %1335 = vmatpush1.bf16.msra.mxu0 0
        %1336 = vmatprep.subr.bf16.mxu0 0
        %1337 = vmatpush1.bf16.msra.mxu0 %v536
        %1338 = vmatprep.subr.bf16.mxu0 0
        %1339 = vmatpush1.bf16.msra.mxu0 %v535
        %1340 = vmatprep.subr.bf16.mxu0 0
        %1341 = vmatpush2.bf16.msra.mxu0 0
        %1342 = vmatprep.subr.bf16.mxu0 0
        %1343 = vmatpush2.bf16.msra.mxu0 0
        %1344 = vmatprep.subr.bf16.mxu0 0
        %1345 = vmatpush2.bf16.msra.mxu0 0
        %1346 = vmatprep.subr.bf16.mxu0 0
        %1347 = vmatpush2.bf16.msra.mxu0 0
        %1348 = vmatprep.subr.bf16.mxu0 0
        %1349 = vmatpush2.bf16.msra.mxu0 0
        %1350 = vmatprep.subr.bf16.mxu0 0
        %1351 = vmatpush2.bf16.msra.mxu0 0
        %1352 = vmatprep.subr.bf16.mxu0 0
        %1353 = vmatpush2.bf16.msra.mxu0 0
        %1354 = vmatprep.subr.bf16.mxu0 0
        %1355 = vmatpush2.bf16.msra.mxu0 0
        %1356 = vmatprep.mubr.bf16.mxu0 0
        %1357 = vmatmul.mubr.bf16.gmra.mxu0 %v1238
        %v1358 = vpop.f32.mrf.mxu0
        %v1359 = vadd.f32 %v525, %v1358
        %v1360 = vpop.f32.mrf.mxu0
        %v1361 = vpop.f32.mrf.mxu0
        %v1362 = vpop.f32.mrf.mxu0
        %1363 = vdwg.mxu0
        %s1364 = scalar_lea.vmem [#allocation4], 24
        %1365 = vst.msk [vmem:[%s1364] sm:$0xf] %vm460, %v1359
        %s1366 = scalar_lea.vmem %s359, 14
        %v1367 = vld [vmem:[%s1366] sm:$0x3]
        %v1369 = vsel %vm416, %v1367, 0
        %1371 = vmatprep.subr.bf16.mxu0 0
        %1372 = vmatpush1.bf16.msra.mxu0 0
        %1373 = vmatprep.subr.bf16.mxu0 0
        %1374 = vmatpush1.bf16.msra.mxu0 0
        %1375 = vmatprep.subr.bf16.mxu0 0
        %1376 = vmatpush1.bf16.msra.mxu0 0
        %1377 = vmatprep.subr.bf16.mxu0 0
        %1378 = vmatpush1.bf16.msra.mxu0 0
        %1379 = vmatprep.subr.bf16.mxu0 0
        %1380 = vmatpush1.bf16.msra.mxu0 0
        %1381 = vmatprep.subr.bf16.mxu0 0
        %1382 = vmatpush1.bf16.msra.mxu0 0
        %1383 = vmatprep.subr.bf16.mxu0 0
        %1384 = vmatpush1.bf16.msra.mxu0 %v413
        %1385 = vmatprep.subr.bf16.mxu0 0
        %1386 = vmatpush1.bf16.msra.mxu0 %v412
        %1387 = vmatprep.subr.bf16.mxu0 0
        %1388 = vmatpush2.bf16.msra.mxu0 0
        %1389 = vmatprep.subr.bf16.mxu0 0
        %1390 = vmatpush2.bf16.msra.mxu0 0
        %1391 = vmatprep.subr.bf16.mxu0 0
        %1392 = vmatpush2.bf16.msra.mxu0 0
        %1393 = vmatprep.subr.bf16.mxu0 0
        %1394 = vmatpush2.bf16.msra.mxu0 0
        %1395 = vmatprep.subr.bf16.mxu0 0
        %1396 = vmatpush2.bf16.msra.mxu0 0
        %1397 = vmatprep.subr.bf16.mxu0 0
        %1398 = vmatpush2.bf16.msra.mxu0 0
        %1399 = vmatprep.subr.bf16.mxu0 0
        %1400 = vmatpush2.bf16.msra.mxu0 0
        %1401 = vmatprep.subr.bf16.mxu0 0
        %1402 = vmatpush2.bf16.msra.mxu0 0
        %1403 = vmatprep.mubr.bf16.mxu0 0
        %1404 = vmatmul.mubr.bf16.gmra.mxu0 %v1369
        %v1405 = vpop.f32.mrf.mxu0
        %v1406 = vadd.f32 %v402, %v1405
        %v1407 = vpop.f32.mrf.mxu0
        %v1408 = vpop.f32.mrf.mxu0
        %v1409 = vpop.f32.mrf.mxu0
        %1410 = vdwg.mxu0
        %s1411 = scalar_lea.vmem [#allocation2], 28
        %1412 = vst.msk [vmem:[%s1411] sm:$0xf] %vm460, %v1406
        %1413 = vmatprep.subr.bf16.mxu0 0
        %1414 = vmatpush1.bf16.msra.mxu0 0
        %1415 = vmatprep.subr.bf16.mxu0 0
        %1416 = vmatpush1.bf16.msra.mxu0 0
        %1417 = vmatprep.subr.bf16.mxu0 0
        %1418 = vmatpush1.bf16.msra.mxu0 0
        %1419 = vmatprep.subr.bf16.mxu0 0
        %1420 = vmatpush1.bf16.msra.mxu0 0
        %1421 = vmatprep.subr.bf16.mxu0 0
        %1422 = vmatpush1.bf16.msra.mxu0 0
        %1423 = vmatprep.subr.bf16.mxu0 0
        %1424 = vmatpush1.bf16.msra.mxu0 0
        %1425 = vmatprep.subr.bf16.mxu0 0
        %1426 = vmatpush1.bf16.msra.mxu0 %v477
        %1427 = vmatprep.subr.bf16.mxu0 0
        %1428 = vmatpush1.bf16.msra.mxu0 %v476
        %1429 = vmatprep.subr.bf16.mxu0 0
        %1430 = vmatpush2.bf16.msra.mxu0 0
        %1431 = vmatprep.subr.bf16.mxu0 0
        %1432 = vmatpush2.bf16.msra.mxu0 0
        %1433 = vmatprep.subr.bf16.mxu0 0
        %1434 = vmatpush2.bf16.msra.mxu0 0
        %1435 = vmatprep.subr.bf16.mxu0 0
        %1436 = vmatpush2.bf16.msra.mxu0 0
        %1437 = vmatprep.subr.bf16.mxu0 0
        %1438 = vmatpush2.bf16.msra.mxu0 0
        %1439 = vmatprep.subr.bf16.mxu0 0
        %1440 = vmatpush2.bf16.msra.mxu0 0
        %1441 = vmatprep.subr.bf16.mxu0 0
        %1442 = vmatpush2.bf16.msra.mxu0 0
        %1443 = vmatprep.subr.bf16.mxu0 0
        %1444 = vmatpush2.bf16.msra.mxu0 0
        %1445 = vmatprep.mubr.bf16.mxu0 0
        %1446 = vmatmul.mubr.bf16.gmra.mxu0 %v1369
        %v1447 = vpop.f32.mrf.mxu0
        %v1448 = vadd.f32 %v466, %v1447
        %v1449 = vpop.f32.mrf.mxu0
        %v1450 = vpop.f32.mrf.mxu0
        %v1451 = vpop.f32.mrf.mxu0
        %1452 = vdwg.mxu0
        %s1453 = scalar_lea.vmem [#allocation3], 28
        %1454 = vst.msk [vmem:[%s1453] sm:$0xf] %vm460, %v1448
        %1455 = vmatprep.subr.bf16.mxu0 0
        %1456 = vmatpush1.bf16.msra.mxu0 0
        %1457 = vmatprep.subr.bf16.mxu0 0
        %1458 = vmatpush1.bf16.msra.mxu0 0
        %1459 = vmatprep.subr.bf16.mxu0 0
        %1460 = vmatpush1.bf16.msra.mxu0 0
        %1461 = vmatprep.subr.bf16.mxu0 0
        %1462 = vmatpush1.bf16.msra.mxu0 0
        %1463 = vmatprep.subr.bf16.mxu0 0
        %1464 = vmatpush1.bf16.msra.mxu0 0
        %1465 = vmatprep.subr.bf16.mxu0 0
        %1466 = vmatpush1.bf16.msra.mxu0 0
        %1467 = vmatprep.subr.bf16.mxu0 0
        %1468 = vmatpush1.bf16.msra.mxu0 %v536
        %1469 = vmatprep.subr.bf16.mxu0 0
        %1470 = vmatpush1.bf16.msra.mxu0 %v535
        %1471 = vmatprep.subr.bf16.mxu0 0
        %1472 = vmatpush2.bf16.msra.mxu0 0
        %1473 = vmatprep.subr.bf16.mxu0 0
        %1474 = vmatpush2.bf16.msra.mxu0 0
        %1475 = vmatprep.subr.bf16.mxu0 0
        %1476 = vmatpush2.bf16.msra.mxu0 0
        %1477 = vmatprep.subr.bf16.mxu0 0
        %1478 = vmatpush2.bf16.msra.mxu0 0
        %1479 = vmatprep.subr.bf16.mxu0 0
        %1480 = vmatpush2.bf16.msra.mxu0 0
        %1481 = vmatprep.subr.bf16.mxu0 0
        %1482 = vmatpush2.bf16.msra.mxu0 0
        %1483 = vmatprep.subr.bf16.mxu0 0
        %1484 = vmatpush2.bf16.msra.mxu0 0
        %1485 = vmatprep.subr.bf16.mxu0 0
        %1486 = vmatpush2.bf16.msra.mxu0 0
        %1487 = vmatprep.mubr.bf16.mxu0 0
        %1488 = vmatmul.mubr.bf16.gmra.mxu0 %v1369
        %v1489 = vpop.f32.mrf.mxu0
        %v1490 = vadd.f32 %v525, %v1489
        %v1491 = vpop.f32.mrf.mxu0
        %v1492 = vpop.f32.mrf.mxu0
        %v1493 = vpop.f32.mrf.mxu0
        %1494 = vdwg.mxu0
        %s1495 = scalar_lea.vmem [#allocation4], 28
        %1496 = vst.msk [vmem:[%s1495] sm:$0xf] %vm460, %v1490
        %v1497 = vld [vmem:[%s4] sm:$0xf]
        %v1498 = vld [vmem:[%s4 + $0x4] sm:$0xf]
        %v1499 = vld [vmem:[%s4 + $0x8] sm:$0xf]
        %v1500 = vld [vmem:[%s4 + $0xc] sm:$0xf]
        %s1501 = scalar_lea.vmem %s4, 16
        %v1502 = vld [vmem:[%s1501] sm:$0xf]
        %v1503 = vld [vmem:[%s1501 + $0x4] sm:$0xf]
        %v1504 = vld [vmem:[%s1501 + $0x8] sm:$0xf]
        %v1505 = vld [vmem:[%s1501 + $0xc] sm:$0xf]
        %s1506 = scalar_lea.vmem %s4, 32
        %v1507 = vld [vmem:[%s1506] sm:$0xf]
        %v1508 = vld [vmem:[%s1506 + $0x4] sm:$0xf]
        %v1509 = vld [vmem:[%s1506 + $0x8] sm:$0xf]
        %v1510 = vld [vmem:[%s1506 + $0xc] sm:$0xf]
        %v1511 = vld [vmem:[%s6] sm:$0x1]
        %v1512 = vld [vmem:[%s364] sm:$0xf]
        %s1513 = smul.u32 %s29, 8
        %v1514 = vstv %s1513
        %v1515 = vsub.s32 %v1512, %v1514
        %v1516 = vld [vmem:[#allocation5] sm:$0xf]
        %v1517 = vpack.c.bf16 %v1516, %v1516
        %v1522 = vunpack.c.l.b16 %v1497
        %v1523 = vunpack.c.l.b16 %v1498
        %v1524 = vunpack.c.l.b16 %v1499
        %v1525 = vunpack.c.l.b16 %v1500
        %v1526 = vpack.c.b16 %v1523, %v1522
        %v1527 = vpack.c.b16 %v1525, %v1524
        %v1531 = vsel %vm416, %v1517, 0
        %1533 = vmatprep.subr.bf16.mxu0 0
        %1534 = vmatpush1.bf16.msra.mxu0 0
        %1535 = vmatprep.subr.bf16.mxu0 0
        %1536 = vmatpush1.bf16.msra.mxu0 0
        %1537 = vmatprep.subr.bf16.mxu0 0
        %1538 = vmatpush1.bf16.msra.mxu0 0
        %1539 = vmatprep.subr.bf16.mxu0 0
        %1540 = vmatpush1.bf16.msra.mxu0 0
        %1541 = vmatprep.subr.bf16.mxu0 0
        %1542 = vmatpush1.bf16.msra.mxu0 0
        %1543 = vmatprep.subr.bf16.mxu0 0
        %1544 = vmatpush1.bf16.msra.mxu0 0
        %1545 = vmatprep.subr.bf16.mxu0 0
        %1546 = vmatpush1.bf16.msra.mxu0 %v1527
        %1547 = vmatprep.subr.bf16.mxu0 0
        %1548 = vmatpush1.bf16.msra.mxu0 %v1526
        %1549 = vmatprep.subr.bf16.mxu0 0
        %1550 = vmatpush2.bf16.msra.mxu0 0
        %1551 = vmatprep.subr.bf16.mxu0 0
        %1552 = vmatpush2.bf16.msra.mxu0 0
        %1553 = vmatprep.subr.bf16.mxu0 0
        %1554 = vmatpush2.bf16.msra.mxu0 0
        %1555 = vmatprep.subr.bf16.mxu0 0
        %1556 = vmatpush2.bf16.msra.mxu0 0
        %1557 = vmatprep.subr.bf16.mxu0 0
        %1558 = vmatpush2.bf16.msra.mxu0 0
        %1559 = vmatprep.subr.bf16.mxu0 0
        %1560 = vmatpush2.bf16.msra.mxu0 0
        %1561 = vmatprep.subr.bf16.mxu0 0
        %1562 = vmatpush2.bf16.msra.mxu0 0
        %1563 = vmatprep.subr.bf16.mxu0 0
        %1564 = vmatpush2.bf16.msra.mxu0 0
        %1565 = vmatprep.mubr.bf16.mxu0 0
        %1566 = vmatmul.mubr.bf16.gmra.mxu0 %v1531
        %v1567 = vpop.f32.mrf.mxu0
        %v1568 = vadd.f32 0.0, %v1567
        %v1569 = vpop.f32.mrf.mxu0
        %v1570 = vpop.f32.mrf.mxu0
        %v1571 = vpop.f32.mrf.mxu0
        %1572 = vdwg.mxu0
        %v1577 = vunpack.c.l.b16 %v1502
        %v1578 = vunpack.c.l.b16 %v1503
        %v1579 = vunpack.c.l.b16 %v1504
        %v1580 = vunpack.c.l.b16 %v1505
        %v1581 = vpack.c.b16 %v1578, %v1577
        %v1582 = vpack.c.b16 %v1580, %v1579
        %1585 = vmatprep.subr.bf16.mxu0 0
        %1586 = vmatpush1.bf16.msra.mxu0 0
        %1587 = vmatprep.subr.bf16.mxu0 0
        %1588 = vmatpush1.bf16.msra.mxu0 0
        %1589 = vmatprep.subr.bf16.mxu0 0
        %1590 = vmatpush1.bf16.msra.mxu0 0
        %1591 = vmatprep.subr.bf16.mxu0 0
        %1592 = vmatpush1.bf16.msra.mxu0 0
        %1593 = vmatprep.subr.bf16.mxu0 0
        %1594 = vmatpush1.bf16.msra.mxu0 0
        %1595 = vmatprep.subr.bf16.mxu0 0
        %1596 = vmatpush1.bf16.msra.mxu0 0
        %1597 = vmatprep.subr.bf16.mxu0 0
        %1598 = vmatpush1.bf16.msra.mxu0 %v1582
        %1599 = vmatprep.subr.bf16.mxu0 0
        %1600 = vmatpush1.bf16.msra.mxu0 %v1581
        %1601 = vmatprep.subr.bf16.mxu0 0
        %1602 = vmatpush2.bf16.msra.mxu0 0
        %1603 = vmatprep.subr.bf16.mxu0 0
        %1604 = vmatpush2.bf16.msra.mxu0 0
        %1605 = vmatprep.subr.bf16.mxu0 0
        %1606 = vmatpush2.bf16.msra.mxu0 0
        %1607 = vmatprep.subr.bf16.mxu0 0
        %1608 = vmatpush2.bf16.msra.mxu0 0
        %1609 = vmatprep.subr.bf16.mxu0 0
        %1610 = vmatpush2.bf16.msra.mxu0 0
        %1611 = vmatprep.subr.bf16.mxu0 0
        %1612 = vmatpush2.bf16.msra.mxu0 0
        %1613 = vmatprep.subr.bf16.mxu0 0
        %1614 = vmatpush2.bf16.msra.mxu0 0
        %1615 = vmatprep.subr.bf16.mxu0 0
        %1616 = vmatpush2.bf16.msra.mxu0 0
        %1617 = vmatprep.mubr.bf16.mxu0 0
        %1618 = vmatmul.mubr.bf16.gmra.mxu0 %v1531
        %v1619 = vpop.f32.mrf.mxu0
        %v1620 = vadd.f32 0.0, %v1619
        %v1621 = vpop.f32.mrf.mxu0
        %v1622 = vpop.f32.mrf.mxu0
        %v1623 = vpop.f32.mrf.mxu0
        %1624 = vdwg.mxu0
        %v1625 = vld [vmem:[#allocation2] sm:$0xf]
        %v1626 = vadd.f32 %v1625, %v1568
        %v1627 = vxor.u32 %v1626, 2147483648
        %v1628 = vmul.f32 %v1627, 1.442695
        %v1629 = vpow.pop %v1628
        %v1630 = vadd.f32 %v1629, 1.0
        %v1631 = vrcp.pop %v1630
        %v1632 = vmul.f32 1.0, %v1631
        %v1633 = vld [vmem:[#allocation3] sm:$0xf]
        %v1634 = vadd.f32 %v1633, %v1620
        %v1635 = vxor.u32 %v1634, 2147483648
        %v1636 = vmul.f32 %v1635, 1.442695
        %v1637 = vpow.pop %v1636
        %v1638 = vadd.f32 %v1637, 1.0
        %v1639 = vrcp.pop %v1638
        %v1640 = vmul.f32 1.0, %v1639
        %v1641 = vld [vmem:[#allocation4] sm:$0xf]
        %v1643 = vlaneseq
        %v1644 = vshrl.u32 %v1643, 7
        %v1645 = vsub.s32 0, %v1644
        %v1646 = vrot.slane %v1511, %v1645
        %v1652 = vunpack.c.l.b16 %v1507
        %v1653 = vunpack.c.l.b16 %v1508
        %v1654 = vunpack.c.l.b16 %v1509
        %v1655 = vunpack.c.l.b16 %v1510
        %v1656 = vpack.c.b16 %v1653, %v1652
        %v1657 = vpack.c.b16 %v1655, %v1654
        %1660 = vmatprep.subr.bf16.mxu0 0
        %1661 = vmatpush1.bf16.msra.mxu0 0
        %1662 = vmatprep.subr.bf16.mxu0 0
        %1663 = vmatpush1.bf16.msra.mxu0 0
        %1664 = vmatprep.subr.bf16.mxu0 0
        %1665 = vmatpush1.bf16.msra.mxu0 0
        %1666 = vmatprep.subr.bf16.mxu0 0
        %1667 = vmatpush1.bf16.msra.mxu0 0
        %1668 = vmatprep.subr.bf16.mxu0 0
        %1669 = vmatpush1.bf16.msra.mxu0 0
        %1670 = vmatprep.subr.bf16.mxu0 0
        %1671 = vmatpush1.bf16.msra.mxu0 0
        %1672 = vmatprep.subr.bf16.mxu0 0
        %1673 = vmatpush1.bf16.msra.mxu0 %v1657
        %1674 = vmatprep.subr.bf16.mxu0 0
        %1675 = vmatpush1.bf16.msra.mxu0 %v1656
        %1676 = vmatprep.subr.bf16.mxu0 0
        %1677 = vmatpush2.bf16.msra.mxu0 0
        %1678 = vmatprep.subr.bf16.mxu0 0
        %1679 = vmatpush2.bf16.msra.mxu0 0
        %1680 = vmatprep.subr.bf16.mxu0 0
        %1681 = vmatpush2.bf16.msra.mxu0 0
        %1682 = vmatprep.subr.bf16.mxu0 0
        %1683 = vmatpush2.bf16.msra.mxu0 0
        %1684 = vmatprep.subr.bf16.mxu0 0
        %1685 = vmatpush2.bf16.msra.mxu0 0
        %1686 = vmatprep.subr.bf16.mxu0 0
        %1687 = vmatpush2.bf16.msra.mxu0 0
        %1688 = vmatprep.subr.bf16.mxu0 0
        %1689 = vmatpush2.bf16.msra.mxu0 0
        %1690 = vmatprep.subr.bf16.mxu0 0
        %1691 = vmatpush2.bf16.msra.mxu0 0
        %1692 = vmatprep.mubr.bf16.mxu0 0
        %1693 = vmatmul.mubr.bf16.gmra.mxu0 %v1531
        %v1694 = vpop.f32.mrf.mxu0
        %v1695 = vadd.f32 %v1646, %v1694
        %v1696 = vpop.f32.mrf.mxu0
        %v1697 = vpop.f32.mrf.mxu0
        %v1698 = vpop.f32.mrf.mxu0
        %1699 = vdwg.mxu0
        %v1700 = vmul.f32 %v1632, %v1695
        %v1701 = vadd.f32 %v1641, %v1700
        %v1702 = vtanh.pop %v1701
        %v1703 = vsub.f32 1.0, %v1640
        %v1704 = vmul.f32 %v1703, %v1702
        %v1705 = vmul.f32 %v1640, %v1516
        %v1706 = vadd.f32 %v1704, %v1705
        %vm1707 = vcmp.gt.s32.totalorder %v1515, 0
        %v1708 = vsel %vm1707, 1, 0
        %1709 = vset.pattern.permute.xlu0 0
        %1710 = vperm.xlu0 %1709, %v1708
        %v1711 = vpop.permute.xlu0 %1710
        %vm1712 = vcmp.eq.s32.totalorder %v1711, 1
        %v1713 = vsel %vm1712, %v1706, 0.0
        %1714 = vst.msk [vmem:[%s349] sm:$0xf] %vm460, %v1713
        %v1715 = vsel %vm1712, %v1706, %v1516
        %v1716 = vpack.c.bf16 %v1715, %v1715
        %v1718 = vsel %vm416, %v1716, 0
        %1720 = vmatprep.subr.bf16.mxu0 0
        %1721 = vmatpush1.bf16.msra.mxu0 0
        %1722 = vmatprep.subr.bf16.mxu0 0
        %1723 = vmatpush1.bf16.msra.mxu0 0
        %1724 = vmatprep.subr.bf16.mxu0 0
        %1725 = vmatpush1.bf16.msra.mxu0 0
        %1726 = vmatprep.subr.bf16.mxu0 0
        %1727 = vmatpush1.bf16.msra.mxu0 0
        %1728 = vmatprep.subr.bf16.mxu0 0
        %1729 = vmatpush1.bf16.msra.mxu0 0
        %1730 = vmatprep.subr.bf16.mxu0 0
        %1731 = vmatpush1.bf16.msra.mxu0 0
        %1732 = vmatprep.subr.bf16.mxu0 0
        %1733 = vmatpush1.bf16.msra.mxu0 %v1527
        %1734 = vmatprep.subr.bf16.mxu0 0
        %1735 = vmatpush1.bf16.msra.mxu0 %v1526
        %1736 = vmatprep.subr.bf16.mxu0 0
        %1737 = vmatpush2.bf16.msra.mxu0 0
        %1738 = vmatprep.subr.bf16.mxu0 0
        %1739 = vmatpush2.bf16.msra.mxu0 0
        %1740 = vmatprep.subr.bf16.mxu0 0
        %1741 = vmatpush2.bf16.msra.mxu0 0
        %1742 = vmatprep.subr.bf16.mxu0 0
        %1743 = vmatpush2.bf16.msra.mxu0 0
        %1744 = vmatprep.subr.bf16.mxu0 0
        %1745 = vmatpush2.bf16.msra.mxu0 0
        %1746 = vmatprep.subr.bf16.mxu0 0
        %1747 = vmatpush2.bf16.msra.mxu0 0
        %1748 = vmatprep.subr.bf16.mxu0 0
        %1749 = vmatpush2.bf16.msra.mxu0 0
        %1750 = vmatprep.subr.bf16.mxu0 0
        %1751 = vmatpush2.bf16.msra.mxu0 0
        %1752 = vmatprep.mubr.bf16.mxu0 0
        %1753 = vmatmul.mubr.bf16.gmra.mxu0 %v1718
        %v1754 = vpop.f32.mrf.mxu0
        %v1755 = vadd.f32 0.0, %v1754
        %v1756 = vpop.f32.mrf.mxu0
        %v1757 = vpop.f32.mrf.mxu0
        %v1758 = vpop.f32.mrf.mxu0
        %1759 = vdwg.mxu0
        %1760 = vmatprep.subr.bf16.mxu0 0
        %1761 = vmatpush1.bf16.msra.mxu0 0
        %1762 = vmatprep.subr.bf16.mxu0 0
        %1763 = vmatpush1.bf16.msra.mxu0 0
        %1764 = vmatprep.subr.bf16.mxu0 0
        %1765 = vmatpush1.bf16.msra.mxu0 0
        %1766 = vmatprep.subr.bf16.mxu0 0
        %1767 = vmatpush1.bf16.msra.mxu0 0
        %1768 = vmatprep.subr.bf16.mxu0 0
        %1769 = vmatpush1.bf16.msra.mxu0 0
        %1770 = vmatprep.subr.bf16.mxu0 0
        %1771 = vmatpush1.bf16.msra.mxu0 0
        %1772 = vmatprep.subr.bf16.mxu0 0
        %1773 = vmatpush1.bf16.msra.mxu0 %v1582
        %1774 = vmatprep.subr.bf16.mxu0 0
        %1775 = vmatpush1.bf16.msra.mxu0 %v1581
        %1776 = vmatprep.subr.bf16.mxu0 0
        %1777 = vmatpush2.bf16.msra.mxu0 0
        %1778 = vmatprep.subr.bf16.mxu0 0
        %1779 = vmatpush2.bf16.msra.mxu0 0
        %1780 = vmatprep.subr.bf16.mxu0 0
        %1781 = vmatpush2.bf16.msra.mxu0 0
        %1782 = vmatprep.subr.bf16.mxu0 0
        %1783 = vmatpush2.bf16.msra.mxu0 0
        %1784 = vmatprep.subr.bf16.mxu0 0
        %1785 = vmatpush2.bf16.msra.mxu0 0
        %1786 = vmatprep.subr.bf16.mxu0 0
        %1787 = vmatpush2.bf16.msra.mxu0 0
        %1788 = vmatprep.subr.bf16.mxu0 0
        %1789 = vmatpush2.bf16.msra.mxu0 0
        %1790 = vmatprep.subr.bf16.mxu0 0
        %1791 = vmatpush2.bf16.msra.mxu0 0
        %1792 = vmatprep.mubr.bf16.mxu0 0
        %1793 = vmatmul.mubr.bf16.gmra.mxu0 %v1718
        %v1794 = vpop.f32.mrf.mxu0
        %v1795 = vadd.f32 0.0, %v1794
        %v1796 = vpop.f32.mrf.mxu0
        %v1797 = vpop.f32.mrf.mxu0
        %v1798 = vpop.f32.mrf.mxu0
        %1799 = vdwg.mxu0
        %v1800 = vld [vmem:[%s625] sm:$0xf]
        %v1801 = vadd.f32 %v1800, %v1755
        %v1802 = vxor.u32 %v1801, 2147483648
        %v1803 = vmul.f32 %v1802, 1.442695
        %v1804 = vpow.pop %v1803
        %v1805 = vadd.f32 %v1804, 1.0
        %v1806 = vrcp.pop %v1805
        %v1807 = vmul.f32 1.0, %v1806
        %v1808 = vld [vmem:[%s667] sm:$0xf]
        %v1809 = vadd.f32 %v1808, %v1795
        %v1810 = vxor.u32 %v1809, 2147483648
        %v1811 = vmul.f32 %v1810, 1.442695
        %v1812 = vpow.pop %v1811
        %v1813 = vadd.f32 %v1812, 1.0
        %v1814 = vrcp.pop %v1813
        %v1815 = vmul.f32 1.0, %v1814
        %v1816 = vld [vmem:[%s709] sm:$0xf]
        %1817 = vmatprep.subr.bf16.mxu0 0
        %1818 = vmatpush1.bf16.msra.mxu0 0
        %1819 = vmatprep.subr.bf16.mxu0 0
        %1820 = vmatpush1.bf16.msra.mxu0 0
        %1821 = vmatprep.subr.bf16.mxu0 0
        %1822 = vmatpush1.bf16.msra.mxu0 0
        %1823 = vmatprep.subr.bf16.mxu0 0
        %1824 = vmatpush1.bf16.msra.mxu0 0
        %1825 = vmatprep.subr.bf16.mxu0 0
        %1826 = vmatpush1.bf16.msra.mxu0 0
        %1827 = vmatprep.subr.bf16.mxu0 0
        %1828 = vmatpush1.bf16.msra.mxu0 0
        %1829 = vmatprep.subr.bf16.mxu0 0
        %1830 = vmatpush1.bf16.msra.mxu0 %v1657
        %1831 = vmatprep.subr.bf16.mxu0 0
        %1832 = vmatpush1.bf16.msra.mxu0 %v1656
        %1833 = vmatprep.subr.bf16.mxu0 0
        %1834 = vmatpush2.bf16.msra.mxu0 0
        %1835 = vmatprep.subr.bf16.mxu0 0
        %1836 = vmatpush2.bf16.msra.mxu0 0
        %1837 = vmatprep.subr.bf16.mxu0 0
        %1838 = vmatpush2.bf16.msra.mxu0 0
        %1839 = vmatprep.subr.bf16.mxu0 0
        %1840 = vmatpush2.bf16.msra.mxu0 0
        %1841 = vmatprep.subr.bf16.mxu0 0
        %1842 = vmatpush2.bf16.msra.mxu0 0
        %1843 = vmatprep.subr.bf16.mxu0 0
        %1844 = vmatpush2.bf16.msra.mxu0 0
        %1845 = vmatprep.subr.bf16.mxu0 0
        %1846 = vmatpush2.bf16.msra.mxu0 0
        %1847 = vmatprep.subr.bf16.mxu0 0
        %1848 = vmatpush2.bf16.msra.mxu0 0
        %1849 = vmatprep.mubr.bf16.mxu0 0
        %1850 = vmatmul.mubr.bf16.gmra.mxu0 %v1718
        %v1851 = vpop.f32.mrf.mxu0
        %v1852 = vadd.f32 %v1646, %v1851
        %v1853 = vpop.f32.mrf.mxu0
        %v1854 = vpop.f32.mrf.mxu0
        %v1855 = vpop.f32.mrf.mxu0
        %1856 = vdwg.mxu0
        %v1857 = vmul.f32 %v1807, %v1852
        %v1858 = vadd.f32 %v1816, %v1857
        %v1859 = vtanh.pop %v1858
        %v1860 = vsub.f32 1.0, %v1815
        %v1861 = vmul.f32 %v1860, %v1859
        %v1862 = vmul.f32 %v1815, %v1715
        %v1863 = vadd.f32 %v1861, %v1862
        %vm1864 = vcmp.gt.s32.totalorder %v1515, 1
        %v1865 = vsel %vm1864, 1, 0
        %1866 = vset.pattern.permute.xlu0 0
        %1867 = vperm.xlu0 %1866, %v1865
        %v1868 = vpop.permute.xlu0 %1867
        %vm1869 = vcmp.eq.s32.totalorder %v1868, 1
        %v1870 = vsel %vm1869, %v1863, 0.0
        %s1871 = scalar_lea.vmem %s349, 4 [#allocation6]
        %1872 = vst.msk [vmem:[%s1871] sm:$0xf] %vm460, %v1870
        %v1873 = vsel %vm1869, %v1863, %v1715
        %v1874 = vpack.c.bf16 %v1873, %v1873
        %v1876 = vsel %vm416, %v1874, 0
        %1878 = vmatprep.subr.bf16.mxu0 0
        %1879 = vmatpush1.bf16.msra.mxu0 0
        %1880 = vmatprep.subr.bf16.mxu0 0
        %1881 = vmatpush1.bf16.msra.mxu0 0
        %1882 = vmatprep.subr.bf16.mxu0 0
        %1883 = vmatpush1.bf16.msra.mxu0 0
        %1884 = vmatprep.subr.bf16.mxu0 0
        %1885 = vmatpush1.bf16.msra.mxu0 0
        %1886 = vmatprep.subr.bf16.mxu0 0
        %1887 = vmatpush1.bf16.msra.mxu0 0
        %1888 = vmatprep.subr.bf16.mxu0 0
        %1889 = vmatpush1.bf16.msra.mxu0 0
        %1890 = vmatprep.subr.bf16.mxu0 0
        %1891 = vmatpush1.bf16.msra.mxu0 %v1527
        %1892 = vmatprep.subr.bf16.mxu0 0
        %1893 = vmatpush1.bf16.msra.mxu0 %v1526
        %1894 = vmatprep.subr.bf16.mxu0 0
        %1895 = vmatpush2.bf16.msra.mxu0 0
        %1896 = vmatprep.subr.bf16.mxu0 0
        %1897 = vmatpush2.bf16.msra.mxu0 0
        %1898 = vmatprep.subr.bf16.mxu0 0
        %1899 = vmatpush2.bf16.msra.mxu0 0
        %1900 = vmatprep.subr.bf16.mxu0 0
        %1901 = vmatpush2.bf16.msra.mxu0 0
        %1902 = vmatprep.subr.bf16.mxu0 0
        %1903 = vmatpush2.bf16.msra.mxu0 0
        %1904 = vmatprep.subr.bf16.mxu0 0
        %1905 = vmatpush2.bf16.msra.mxu0 0
        %1906 = vmatprep.subr.bf16.mxu0 0
        %1907 = vmatpush2.bf16.msra.mxu0 0
        %1908 = vmatprep.subr.bf16.mxu0 0
        %1909 = vmatpush2.bf16.msra.mxu0 0
        %1910 = vmatprep.mubr.bf16.mxu0 0
        %1911 = vmatmul.mubr.bf16.gmra.mxu0 %v1876
        %v1912 = vpop.f32.mrf.mxu0
        %v1913 = vadd.f32 0.0, %v1912
        %v1914 = vpop.f32.mrf.mxu0
        %v1915 = vpop.f32.mrf.mxu0
        %v1916 = vpop.f32.mrf.mxu0
        %1917 = vdwg.mxu0
        %1918 = vmatprep.subr.bf16.mxu0 0
        %1919 = vmatpush1.bf16.msra.mxu0 0
        %1920 = vmatprep.subr.bf16.mxu0 0
        %1921 = vmatpush1.bf16.msra.mxu0 0
        %1922 = vmatprep.subr.bf16.mxu0 0
        %1923 = vmatpush1.bf16.msra.mxu0 0
        %1924 = vmatprep.subr.bf16.mxu0 0
        %1925 = vmatpush1.bf16.msra.mxu0 0
        %1926 = vmatprep.subr.bf16.mxu0 0
        %1927 = vmatpush1.bf16.msra.mxu0 0
        %1928 = vmatprep.subr.bf16.mxu0 0
        %1929 = vmatpush1.bf16.msra.mxu0 0
        %1930 = vmatprep.subr.bf16.mxu0 0
        %1931 = vmatpush1.bf16.msra.mxu0 %v1582
        %1932 = vmatprep.subr.bf16.mxu0 0
        %1933 = vmatpush1.bf16.msra.mxu0 %v1581
        %1934 = vmatprep.subr.bf16.mxu0 0
        %1935 = vmatpush2.bf16.msra.mxu0 0
        %1936 = vmatprep.subr.bf16.mxu0 0
        %1937 = vmatpush2.bf16.msra.mxu0 0
        %1938 = vmatprep.subr.bf16.mxu0 0
        %1939 = vmatpush2.bf16.msra.mxu0 0
        %1940 = vmatprep.subr.bf16.mxu0 0
        %1941 = vmatpush2.bf16.msra.mxu0 0
        %1942 = vmatprep.subr.bf16.mxu0 0
        %1943 = vmatpush2.bf16.msra.mxu0 0
        %1944 = vmatprep.subr.bf16.mxu0 0
        %1945 = vmatpush2.bf16.msra.mxu0 0
        %1946 = vmatprep.subr.bf16.mxu0 0
        %1947 = vmatpush2.bf16.msra.mxu0 0
        %1948 = vmatprep.subr.bf16.mxu0 0
        %1949 = vmatpush2.bf16.msra.mxu0 0
        %1950 = vmatprep.mubr.bf16.mxu0 0
        %1951 = vmatmul.mubr.bf16.gmra.mxu0 %v1876
        %v1952 = vpop.f32.mrf.mxu0
        %v1953 = vadd.f32 0.0, %v1952
        %v1954 = vpop.f32.mrf.mxu0
        %v1955 = vpop.f32.mrf.mxu0
        %v1956 = vpop.f32.mrf.mxu0
        %1957 = vdwg.mxu0
        %v1958 = vld [vmem:[%s756] sm:$0xf]
        %v1959 = vadd.f32 %v1958, %v1913
        %v1960 = vxor.u32 %v1959, 2147483648
        %v1961 = vmul.f32 %v1960, 1.442695
        %v1962 = vpow.pop %v1961
        %v1963 = vadd.f32 %v1962, 1.0
        %v1964 = vrcp.pop %v1963
        %v1965 = vmul.f32 1.0, %v1964
        %v1966 = vld [vmem:[%s798] sm:$0xf]
        %v1967 = vadd.f32 %v1966, %v1953
        %v1968 = vxor.u32 %v1967, 2147483648
        %v1969 = vmul.f32 %v1968, 1.442695
        %v1970 = vpow.pop %v1969
        %v1971 = vadd.f32 %v1970, 1.0
        %v1972 = vrcp.pop %v1971
        %v1973 = vmul.f32 1.0, %v1972
        %v1974 = vld [vmem:[%s840] sm:$0xf]
        %1975 = vmatprep.subr.bf16.mxu0 0
        %1976 = vmatpush1.bf16.msra.mxu0 0
        %1977 = vmatprep.subr.bf16.mxu0 0
        %1978 = vmatpush1.bf16.msra.mxu0 0
        %1979 = vmatprep.subr.bf16.mxu0 0
        %1980 = vmatpush1.bf16.msra.mxu0 0
        %1981 = vmatprep.subr.bf16.mxu0 0
        %1982 = vmatpush1.bf16.msra.mxu0 0
        %1983 = vmatprep.subr.bf16.mxu0 0
        %1984 = vmatpush1.bf16.msra.mxu0 0
        %1985 = vmatprep.subr.bf16.mxu0 0
        %1986 = vmatpush1.bf16.msra.mxu0 0
        %1987 = vmatprep.subr.bf16.mxu0 0
        %1988 = vmatpush1.bf16.msra.mxu0 %v1657
        %1989 = vmatprep.subr.bf16.mxu0 0
        %1990 = vmatpush1.bf16.msra.mxu0 %v1656
        %1991 = vmatprep.subr.bf16.mxu0 0
        %1992 = vmatpush2.bf16.msra.mxu0 0
        %1993 = vmatprep.subr.bf16.mxu0 0
        %1994 = vmatpush2.bf16.msra.mxu0 0
        %1995 = vmatprep.subr.bf16.mxu0 0
        %1996 = vmatpush2.bf16.msra.mxu0 0
        %1997 = vmatprep.subr.bf16.mxu0 0
        %1998 = vmatpush2.bf16.msra.mxu0 0
        %1999 = vmatprep.subr.bf16.mxu0 0
        %2000 = vmatpush2.bf16.msra.mxu0 0
        %2001 = vmatprep.subr.bf16.mxu0 0
        %2002 = vmatpush2.bf16.msra.mxu0 0
        %2003 = vmatprep.subr.bf16.mxu0 0
        %2004 = vmatpush2.bf16.msra.mxu0 0
        %2005 = vmatprep.subr.bf16.mxu0 0
        %2006 = vmatpush2.bf16.msra.mxu0 0
        %2007 = vmatprep.mubr.bf16.mxu0 0
        %2008 = vmatmul.mubr.bf16.gmra.mxu0 %v1876
        %v2009 = vpop.f32.mrf.mxu0
        %v2010 = vadd.f32 %v1646, %v2009
        %v2011 = vpop.f32.mrf.mxu0
        %v2012 = vpop.f32.mrf.mxu0
        %v2013 = vpop.f32.mrf.mxu0
        %2014 = vdwg.mxu0
        %v2015 = vmul.f32 %v1965, %v2010
        %v2016 = vadd.f32 %v1974, %v2015
        %v2017 = vtanh.pop %v2016
        %v2018 = vsub.f32 1.0, %v1973
        %v2019 = vmul.f32 %v2018, %v2017
        %v2020 = vmul.f32 %v1973, %v1873
        %v2021 = vadd.f32 %v2019, %v2020
        %vm2022 = vcmp.gt.s32.totalorder %v1515, 2
        %v2023 = vsel %vm2022, 1, 0
        %2024 = vset.pattern.permute.xlu0 0
        %2025 = vperm.xlu0 %2024, %v2023
        %v2026 = vpop.permute.xlu0 %2025
        %vm2027 = vcmp.eq.s32.totalorder %v2026, 1
        %v2028 = vsel %vm2027, %v2021, 0.0
        %s2029 = scalar_lea.vmem %s349, 8 [#allocation6]
        %2030 = vst.msk [vmem:[%s2029] sm:$0xf] %vm460, %v2028
        %v2031 = vsel %vm2027, %v2021, %v1873
        %v2032 = vpack.c.bf16 %v2031, %v2031
        %v2034 = vsel %vm416, %v2032, 0
        %2036 = vmatprep.subr.bf16.mxu0 0
        %2037 = vmatpush1.bf16.msra.mxu0 0
        %2038 = vmatprep.subr.bf16.mxu0 0
        %2039 = vmatpush1.bf16.msra.mxu0 0
        %2040 = vmatprep.subr.bf16.mxu0 0
        %2041 = vmatpush1.bf16.msra.mxu0 0
        %2042 = vmatprep.subr.bf16.mxu0 0
        %2043 = vmatpush1.bf16.msra.mxu0 0
        %2044 = vmatprep.subr.bf16.mxu0 0
        %2045 = vmatpush1.bf16.msra.mxu0 0
        %2046 = vmatprep.subr.bf16.mxu0 0
        %2047 = vmatpush1.bf16.msra.mxu0 0
        %2048 = vmatprep.subr.bf16.mxu0 0
        %2049 = vmatpush1.bf16.msra.mxu0 %v1527
        %2050 = vmatprep.subr.bf16.mxu0 0
        %2051 = vmatpush1.bf16.msra.mxu0 %v1526
        %2052 = vmatprep.subr.bf16.mxu0 0
        %2053 = vmatpush2.bf16.msra.mxu0 0
        %2054 = vmatprep.subr.bf16.mxu0 0
        %2055 = vmatpush2.bf16.msra.mxu0 0
        %2056 = vmatprep.subr.bf16.mxu0 0
        %2057 = vmatpush2.bf16.msra.mxu0 0
        %2058 = vmatprep.subr.bf16.mxu0 0
        %2059 = vmatpush2.bf16.msra.mxu0 0
        %2060 = vmatprep.subr.bf16.mxu0 0
        %2061 = vmatpush2.bf16.msra.mxu0 0
        %2062 = vmatprep.subr.bf16.mxu0 0
        %2063 = vmatpush2.bf16.msra.mxu0 0
        %2064 = vmatprep.subr.bf16.mxu0 0
        %2065 = vmatpush2.bf16.msra.mxu0 0
        %2066 = vmatprep.subr.bf16.mxu0 0
        %2067 = vmatpush2.bf16.msra.mxu0 0
        %2068 = vmatprep.mubr.bf16.mxu0 0
        %2069 = vmatmul.mubr.bf16.gmra.mxu0 %v2034
        %v2070 = vpop.f32.mrf.mxu0
        %v2071 = vadd.f32 0.0, %v2070
        %v2072 = vpop.f32.mrf.mxu0
        %v2073 = vpop.f32.mrf.mxu0
        %v2074 = vpop.f32.mrf.mxu0
        %2075 = vdwg.mxu0
        %2076 = vmatprep.subr.bf16.mxu0 0
        %2077 = vmatpush1.bf16.msra.mxu0 0
        %2078 = vmatprep.subr.bf16.mxu0 0
        %2079 = vmatpush1.bf16.msra.mxu0 0
        %2080 = vmatprep.subr.bf16.mxu0 0
        %2081 = vmatpush1.bf16.msra.mxu0 0
        %2082 = vmatprep.subr.bf16.mxu0 0
        %2083 = vmatpush1.bf16.msra.mxu0 0
        %2084 = vmatprep.subr.bf16.mxu0 0
        %2085 = vmatpush1.bf16.msra.mxu0 0
        %2086 = vmatprep.subr.bf16.mxu0 0
        %2087 = vmatpush1.bf16.msra.mxu0 0
        %2088 = vmatprep.subr.bf16.mxu0 0
        %2089 = vmatpush1.bf16.msra.mxu0 %v1582
        %2090 = vmatprep.subr.bf16.mxu0 0
        %2091 = vmatpush1.bf16.msra.mxu0 %v1581
        %2092 = vmatprep.subr.bf16.mxu0 0
        %2093 = vmatpush2.bf16.msra.mxu0 0
        %2094 = vmatprep.subr.bf16.mxu0 0
        %2095 = vmatpush2.bf16.msra.mxu0 0
        %2096 = vmatprep.subr.bf16.mxu0 0
        %2097 = vmatpush2.bf16.msra.mxu0 0
        %2098 = vmatprep.subr.bf16.mxu0 0
        %2099 = vmatpush2.bf16.msra.mxu0 0
        %2100 = vmatprep.subr.bf16.mxu0 0
        %2101 = vmatpush2.bf16.msra.mxu0 0
        %2102 = vmatprep.subr.bf16.mxu0 0
        %2103 = vmatpush2.bf16.msra.mxu0 0
        %2104 = vmatprep.subr.bf16.mxu0 0
        %2105 = vmatpush2.bf16.msra.mxu0 0
        %2106 = vmatprep.subr.bf16.mxu0 0
        %2107 = vmatpush2.bf16.msra.mxu0 0
        %2108 = vmatprep.mubr.bf16.mxu0 0
        %2109 = vmatmul.mubr.bf16.gmra.mxu0 %v2034
        %v2110 = vpop.f32.mrf.mxu0
        %v2111 = vadd.f32 0.0, %v2110
        %v2112 = vpop.f32.mrf.mxu0
        %v2113 = vpop.f32.mrf.mxu0
        %v2114 = vpop.f32.mrf.mxu0
        %2115 = vdwg.mxu0
        %v2116 = vld [vmem:[%s887] sm:$0xf]
        %v2117 = vadd.f32 %v2116, %v2071
        %v2118 = vxor.u32 %v2117, 2147483648
        %v2119 = vmul.f32 %v2118, 1.442695
        %v2120 = vpow.pop %v2119
        %v2121 = vadd.f32 %v2120, 1.0
        %v2122 = vrcp.pop %v2121
        %v2123 = vmul.f32 1.0, %v2122
        %v2124 = vld [vmem:[%s929] sm:$0xf]
        %v2125 = vadd.f32 %v2124, %v2111
        %v2126 = vxor.u32 %v2125, 2147483648
        %v2127 = vmul.f32 %v2126, 1.442695
        %v2128 = vpow.pop %v2127
        %v2129 = vadd.f32 %v2128, 1.0
        %v2130 = vrcp.pop %v2129
        %v2131 = vmul.f32 1.0, %v2130
        %v2132 = vld [vmem:[%s971] sm:$0xf]
        %2133 = vmatprep.subr.bf16.mxu0 0
        %2134 = vmatpush1.bf16.msra.mxu0 0
        %2135 = vmatprep.subr.bf16.mxu0 0
        %2136 = vmatpush1.bf16.msra.mxu0 0
        %2137 = vmatprep.subr.bf16.mxu0 0
        %2138 = vmatpush1.bf16.msra.mxu0 0
        %2139 = vmatprep.subr.bf16.mxu0 0
        %2140 = vmatpush1.bf16.msra.mxu0 0
        %2141 = vmatprep.subr.bf16.mxu0 0
        %2142 = vmatpush1.bf16.msra.mxu0 0
        %2143 = vmatprep.subr.bf16.mxu0 0
        %2144 = vmatpush1.bf16.msra.mxu0 0
        %2145 = vmatprep.subr.bf16.mxu0 0
        %2146 = vmatpush1.bf16.msra.mxu0 %v1657
        %2147 = vmatprep.subr.bf16.mxu0 0
        %2148 = vmatpush1.bf16.msra.mxu0 %v1656
        %2149 = vmatprep.subr.bf16.mxu0 0
        %2150 = vmatpush2.bf16.msra.mxu0 0
        %2151 = vmatprep.subr.bf16.mxu0 0
        %2152 = vmatpush2.bf16.msra.mxu0 0
        %2153 = vmatprep.subr.bf16.mxu0 0
        %2154 = vmatpush2.bf16.msra.mxu0 0
        %2155 = vmatprep.subr.bf16.mxu0 0
        %2156 = vmatpush2.bf16.msra.mxu0 0
        %2157 = vmatprep.subr.bf16.mxu0 0
        %2158 = vmatpush2.bf16.msra.mxu0 0
        %2159 = vmatprep.subr.bf16.mxu0 0
        %2160 = vmatpush2.bf16.msra.mxu0 0
        %2161 = vmatprep.subr.bf16.mxu0 0
        %2162 = vmatpush2.bf16.msra.mxu0 0
        %2163 = vmatprep.subr.bf16.mxu0 0
        %2164 = vmatpush2.bf16.msra.mxu0 0
        %2165 = vmatprep.mubr.bf16.mxu0 0
        %2166 = vmatmul.mubr.bf16.gmra.mxu0 %v2034
        %v2167 = vpop.f32.mrf.mxu0
        %v2168 = vadd.f32 %v1646, %v2167
        %v2169 = vpop.f32.mrf.mxu0
        %v2170 = vpop.f32.mrf.mxu0
        %v2171 = vpop.f32.mrf.mxu0
        %2172 = vdwg.mxu0
        %v2173 = vmul.f32 %v2123, %v2168
        %v2174 = vadd.f32 %v2132, %v2173
        %v2175 = vtanh.pop %v2174
        %v2176 = vsub.f32 1.0, %v2131
        %v2177 = vmul.f32 %v2176, %v2175
        %v2178 = vmul.f32 %v2131, %v2031
        %v2179 = vadd.f32 %v2177, %v2178
        %vm2180 = vcmp.gt.s32.totalorder %v1515, 3
        %v2181 = vsel %vm2180, 1, 0
        %2182 = vset.pattern.permute.xlu0 0
        %2183 = vperm.xlu0 %2182, %v2181
        %v2184 = vpop.permute.xlu0 %2183
        %vm2185 = vcmp.eq.s32.totalorder %v2184, 1
        %v2186 = vsel %vm2185, %v2179, 0.0
        %s2187 = scalar_lea.vmem %s349, 12 [#allocation6]
        %2188 = vst.msk [vmem:[%s2187] sm:$0xf] %vm460, %v2186
        %v2189 = vsel %vm2185, %v2179, %v2031
        %v2190 = vpack.c.bf16 %v2189, %v2189
        %v2192 = vsel %vm416, %v2190, 0
        %2194 = vmatprep.subr.bf16.mxu0 0
        %2195 = vmatpush1.bf16.msra.mxu0 0
        %2196 = vmatprep.subr.bf16.mxu0 0
        %2197 = vmatpush1.bf16.msra.mxu0 0
        %2198 = vmatprep.subr.bf16.mxu0 0
        %2199 = vmatpush1.bf16.msra.mxu0 0
        %2200 = vmatprep.subr.bf16.mxu0 0
        %2201 = vmatpush1.bf16.msra.mxu0 0
        %2202 = vmatprep.subr.bf16.mxu0 0
        %2203 = vmatpush1.bf16.msra.mxu0 0
        %2204 = vmatprep.subr.bf16.mxu0 0
        %2205 = vmatpush1.bf16.msra.mxu0 0
        %2206 = vmatprep.subr.bf16.mxu0 0
        %2207 = vmatpush1.bf16.msra.mxu0 %v1527
        %2208 = vmatprep.subr.bf16.mxu0 0
        %2209 = vmatpush1.bf16.msra.mxu0 %v1526
        %2210 = vmatprep.subr.bf16.mxu0 0
        %2211 = vmatpush2.bf16.msra.mxu0 0
        %2212 = vmatprep.subr.bf16.mxu0 0
        %2213 = vmatpush2.bf16.msra.mxu0 0
        %2214 = vmatprep.subr.bf16.mxu0 0
        %2215 = vmatpush2.bf16.msra.mxu0 0
        %2216 = vmatprep.subr.bf16.mxu0 0
        %2217 = vmatpush2.bf16.msra.mxu0 0
        %2218 = vmatprep.subr.bf16.mxu0 0
        %2219 = vmatpush2.bf16.msra.mxu0 0
        %2220 = vmatprep.subr.bf16.mxu0 0
        %2221 = vmatpush2.bf16.msra.mxu0 0
        %2222 = vmatprep.subr.bf16.mxu0 0
        %2223 = vmatpush2.bf16.msra.mxu0 0
        %2224 = vmatprep.subr.bf16.mxu0 0
        %2225 = vmatpush2.bf16.msra.mxu0 0
        %2226 = vmatprep.mubr.bf16.mxu0 0
        %2227 = vmatmul.mubr.bf16.gmra.mxu0 %v2192
        %v2228 = vpop.f32.mrf.mxu0
        %v2229 = vadd.f32 0.0, %v2228
        %v2230 = vpop.f32.mrf.mxu0
        %v2231 = vpop.f32.mrf.mxu0
        %v2232 = vpop.f32.mrf.mxu0
        %2233 = vdwg.mxu0
        %2234 = vmatprep.subr.bf16.mxu0 0
        %2235 = vmatpush1.bf16.msra.mxu0 0
        %2236 = vmatprep.subr.bf16.mxu0 0
        %2237 = vmatpush1.bf16.msra.mxu0 0
        %2238 = vmatprep.subr.bf16.mxu0 0
        %2239 = vmatpush1.bf16.msra.mxu0 0
        %2240 = vmatprep.subr.bf16.mxu0 0
        %2241 = vmatpush1.bf16.msra.mxu0 0
        %2242 = vmatprep.subr.bf16.mxu0 0
        %2243 = vmatpush1.bf16.msra.mxu0 0
        %2244 = vmatprep.subr.bf16.mxu0 0
        %2245 = vmatpush1.bf16.msra.mxu0 0
        %2246 = vmatprep.subr.bf16.mxu0 0
        %2247 = vmatpush1.bf16.msra.mxu0 %v1582
        %2248 = vmatprep.subr.bf16.mxu0 0
        %2249 = vmatpush1.bf16.msra.mxu0 %v1581
        %2250 = vmatprep.subr.bf16.mxu0 0
        %2251 = vmatpush2.bf16.msra.mxu0 0
        %2252 = vmatprep.subr.bf16.mxu0 0
        %2253 = vmatpush2.bf16.msra.mxu0 0
        %2254 = vmatprep.subr.bf16.mxu0 0
        %2255 = vmatpush2.bf16.msra.mxu0 0
        %2256 = vmatprep.subr.bf16.mxu0 0
        %2257 = vmatpush2.bf16.msra.mxu0 0
        %2258 = vmatprep.subr.bf16.mxu0 0
        %2259 = vmatpush2.bf16.msra.mxu0 0
        %2260 = vmatprep.subr.bf16.mxu0 0
        %2261 = vmatpush2.bf16.msra.mxu0 0
        %2262 = vmatprep.subr.bf16.mxu0 0
        %2263 = vmatpush2.bf16.msra.mxu0 0
        %2264 = vmatprep.subr.bf16.mxu0 0
        %2265 = vmatpush2.bf16.msra.mxu0 0
        %2266 = vmatprep.mubr.bf16.mxu0 0
        %2267 = vmatmul.mubr.bf16.gmra.mxu0 %v2192
        %v2268 = vpop.f32.mrf.mxu0
        %v2269 = vadd.f32 0.0, %v2268
        %v2270 = vpop.f32.mrf.mxu0
        %v2271 = vpop.f32.mrf.mxu0
        %v2272 = vpop.f32.mrf.mxu0
        %2273 = vdwg.mxu0
        %v2274 = vld [vmem:[%s1018] sm:$0xf]
        %v2275 = vadd.f32 %v2274, %v2229
        %v2276 = vxor.u32 %v2275, 2147483648
        %v2277 = vmul.f32 %v2276, 1.442695
        %v2278 = vpow.pop %v2277
        %v2279 = vadd.f32 %v2278, 1.0
        %v2280 = vrcp.pop %v2279
        %v2281 = vmul.f32 1.0, %v2280
        %v2282 = vld [vmem:[%s1060] sm:$0xf]
        %v2283 = vadd.f32 %v2282, %v2269
        %v2284 = vxor.u32 %v2283, 2147483648
        %v2285 = vmul.f32 %v2284, 1.442695
        %v2286 = vpow.pop %v2285
        %v2287 = vadd.f32 %v2286, 1.0
        %v2288 = vrcp.pop %v2287
        %v2289 = vmul.f32 1.0, %v2288
        %v2290 = vld [vmem:[%s1102] sm:$0xf]
        %2291 = vmatprep.subr.bf16.mxu0 0
        %2292 = vmatpush1.bf16.msra.mxu0 0
        %2293 = vmatprep.subr.bf16.mxu0 0
        %2294 = vmatpush1.bf16.msra.mxu0 0
        %2295 = vmatprep.subr.bf16.mxu0 0
        %2296 = vmatpush1.bf16.msra.mxu0 0
        %2297 = vmatprep.subr.bf16.mxu0 0
        %2298 = vmatpush1.bf16.msra.mxu0 0
        %2299 = vmatprep.subr.bf16.mxu0 0
        %2300 = vmatpush1.bf16.msra.mxu0 0
        %2301 = vmatprep.subr.bf16.mxu0 0
        %2302 = vmatpush1.bf16.msra.mxu0 0
        %2303 = vmatprep.subr.bf16.mxu0 0
        %2304 = vmatpush1.bf16.msra.mxu0 %v1657
        %2305 = vmatprep.subr.bf16.mxu0 0
        %2306 = vmatpush1.bf16.msra.mxu0 %v1656
        %2307 = vmatprep.subr.bf16.mxu0 0
        %2308 = vmatpush2.bf16.msra.mxu0 0
        %2309 = vmatprep.subr.bf16.mxu0 0
        %2310 = vmatpush2.bf16.msra.mxu0 0
        %2311 = vmatprep.subr.bf16.mxu0 0
        %2312 = vmatpush2.bf16.msra.mxu0 0
        %2313 = vmatprep.subr.bf16.mxu0 0
        %2314 = vmatpush2.bf16.msra.mxu0 0
        %2315 = vmatprep.subr.bf16.mxu0 0
        %2316 = vmatpush2.bf16.msra.mxu0 0
        %2317 = vmatprep.subr.bf16.mxu0 0
        %2318 = vmatpush2.bf16.msra.mxu0 0
        %2319 = vmatprep.subr.bf16.mxu0 0
        %2320 = vmatpush2.bf16.msra.mxu0 0
        %2321 = vmatprep.subr.bf16.mxu0 0
        %2322 = vmatpush2.bf16.msra.mxu0 0
        %2323 = vmatprep.mubr.bf16.mxu0 0
        %2324 = vmatmul.mubr.bf16.gmra.mxu0 %v2192
        %v2325 = vpop.f32.mrf.mxu0
        %v2326 = vadd.f32 %v1646, %v2325
        %v2327 = vpop.f32.mrf.mxu0
        %v2328 = vpop.f32.mrf.mxu0
        %v2329 = vpop.f32.mrf.mxu0
        %2330 = vdwg.mxu0
        %v2331 = vmul.f32 %v2281, %v2326
        %v2332 = vadd.f32 %v2290, %v2331
        %v2333 = vtanh.pop %v2332
        %v2334 = vsub.f32 1.0, %v2289
        %v2335 = vmul.f32 %v2334, %v2333
        %v2336 = vmul.f32 %v2289, %v2189
        %v2337 = vadd.f32 %v2335, %v2336
        %vm2338 = vcmp.gt.s32.totalorder %v1515, 4
        %v2339 = vsel %vm2338, 1, 0
        %2340 = vset.pattern.permute.xlu0 0
        %2341 = vperm.xlu0 %2340, %v2339
        %v2342 = vpop.permute.xlu0 %2341
        %vm2343 = vcmp.eq.s32.totalorder %v2342, 1
        %v2344 = vsel %vm2343, %v2337, 0.0
        %s2345 = scalar_lea.vmem %s349, 16 [#allocation6]
        %2346 = vst.msk [vmem:[%s2345] sm:$0xf] %vm460, %v2344
        %v2347 = vsel %vm2343, %v2337, %v2189
        %v2348 = vpack.c.bf16 %v2347, %v2347
        %v2350 = vsel %vm416, %v2348, 0
        %2352 = vmatprep.subr.bf16.mxu0 0
        %2353 = vmatpush1.bf16.msra.mxu0 0
        %2354 = vmatprep.subr.bf16.mxu0 0
        %2355 = vmatpush1.bf16.msra.mxu0 0
        %2356 = vmatprep.subr.bf16.mxu0 0
        %2357 = vmatpush1.bf16.msra.mxu0 0
        %2358 = vmatprep.subr.bf16.mxu0 0
        %2359 = vmatpush1.bf16.msra.mxu0 0
        %2360 = vmatprep.subr.bf16.mxu0 0
        %2361 = vmatpush1.bf16.msra.mxu0 0
        %2362 = vmatprep.subr.bf16.mxu0 0
        %2363 = vmatpush1.bf16.msra.mxu0 0
        %2364 = vmatprep.subr.bf16.mxu0 0
        %2365 = vmatpush1.bf16.msra.mxu0 %v1527
        %2366 = vmatprep.subr.bf16.mxu0 0
        %2367 = vmatpush1.bf16.msra.mxu0 %v1526
        %2368 = vmatprep.subr.bf16.mxu0 0
        %2369 = vmatpush2.bf16.msra.mxu0 0
        %2370 = vmatprep.subr.bf16.mxu0 0
        %2371 = vmatpush2.bf16.msra.mxu0 0
        %2372 = vmatprep.subr.bf16.mxu0 0
        %2373 = vmatpush2.bf16.msra.mxu0 0
        %2374 = vmatprep.subr.bf16.mxu0 0
        %2375 = vmatpush2.bf16.msra.mxu0 0
        %2376 = vmatprep.subr.bf16.mxu0 0
        %2377 = vmatpush2.bf16.msra.mxu0 0
        %2378 = vmatprep.subr.bf16.mxu0 0
        %2379 = vmatpush2.bf16.msra.mxu0 0
        %2380 = vmatprep.subr.bf16.mxu0 0
        %2381 = vmatpush2.bf16.msra.mxu0 0
        %2382 = vmatprep.subr.bf16.mxu0 0
        %2383 = vmatpush2.bf16.msra.mxu0 0
        %2384 = vmatprep.mubr.bf16.mxu0 0
        %2385 = vmatmul.mubr.bf16.gmra.mxu0 %v2350
        %v2386 = vpop.f32.mrf.mxu0
        %v2387 = vadd.f32 0.0, %v2386
        %v2388 = vpop.f32.mrf.mxu0
        %v2389 = vpop.f32.mrf.mxu0
        %v2390 = vpop.f32.mrf.mxu0
        %2391 = vdwg.mxu0
        %2392 = vmatprep.subr.bf16.mxu0 0
        %2393 = vmatpush1.bf16.msra.mxu0 0
        %2394 = vmatprep.subr.bf16.mxu0 0
        %2395 = vmatpush1.bf16.msra.mxu0 0
        %2396 = vmatprep.subr.bf16.mxu0 0
        %2397 = vmatpush1.bf16.msra.mxu0 0
        %2398 = vmatprep.subr.bf16.mxu0 0
        %2399 = vmatpush1.bf16.msra.mxu0 0
        %2400 = vmatprep.subr.bf16.mxu0 0
        %2401 = vmatpush1.bf16.msra.mxu0 0
        %2402 = vmatprep.subr.bf16.mxu0 0
        %2403 = vmatpush1.bf16.msra.mxu0 0
        %2404 = vmatprep.subr.bf16.mxu0 0
        %2405 = vmatpush1.bf16.msra.mxu0 %v1582
        %2406 = vmatprep.subr.bf16.mxu0 0
        %2407 = vmatpush1.bf16.msra.mxu0 %v1581
        %2408 = vmatprep.subr.bf16.mxu0 0
        %2409 = vmatpush2.bf16.msra.mxu0 0
        %2410 = vmatprep.subr.bf16.mxu0 0
        %2411 = vmatpush2.bf16.msra.mxu0 0
        %2412 = vmatprep.subr.bf16.mxu0 0
        %2413 = vmatpush2.bf16.msra.mxu0 0
        %2414 = vmatprep.subr.bf16.mxu0 0
        %2415 = vmatpush2.bf16.msra.mxu0 0
        %2416 = vmatprep.subr.bf16.mxu0 0
        %2417 = vmatpush2.bf16.msra.mxu0 0
        %2418 = vmatprep.subr.bf16.mxu0 0
        %2419 = vmatpush2.bf16.msra.mxu0 0
        %2420 = vmatprep.subr.bf16.mxu0 0
        %2421 = vmatpush2.bf16.msra.mxu0 0
        %2422 = vmatprep.subr.bf16.mxu0 0
        %2423 = vmatpush2.bf16.msra.mxu0 0
        %2424 = vmatprep.mubr.bf16.mxu0 0
        %2425 = vmatmul.mubr.bf16.gmra.mxu0 %v2350
        %v2426 = vpop.f32.mrf.mxu0
        %v2427 = vadd.f32 0.0, %v2426
        %v2428 = vpop.f32.mrf.mxu0
        %v2429 = vpop.f32.mrf.mxu0
        %v2430 = vpop.f32.mrf.mxu0
        %2431 = vdwg.mxu0
        %v2432 = vld [vmem:[%s1149] sm:$0xf]
        %v2433 = vadd.f32 %v2432, %v2387
        %v2434 = vxor.u32 %v2433, 2147483648
        %v2435 = vmul.f32 %v2434, 1.442695
        %v2436 = vpow.pop %v2435
        %v2437 = vadd.f32 %v2436, 1.0
        %v2438 = vrcp.pop %v2437
        %v2439 = vmul.f32 1.0, %v2438
        %v2440 = vld [vmem:[%s1191] sm:$0xf]
        %v2441 = vadd.f32 %v2440, %v2427
        %v2442 = vxor.u32 %v2441, 2147483648
        %v2443 = vmul.f32 %v2442, 1.442695
        %v2444 = vpow.pop %v2443
        %v2445 = vadd.f32 %v2444, 1.0
        %v2446 = vrcp.pop %v2445
        %v2447 = vmul.f32 1.0, %v2446
        %v2448 = vld [vmem:[%s1233] sm:$0xf]
        %2449 = vmatprep.subr.bf16.mxu0 0
        %2450 = vmatpush1.bf16.msra.mxu0 0
        %2451 = vmatprep.subr.bf16.mxu0 0
        %2452 = vmatpush1.bf16.msra.mxu0 0
        %2453 = vmatprep.subr.bf16.mxu0 0
        %2454 = vmatpush1.bf16.msra.mxu0 0
        %2455 = vmatprep.subr.bf16.mxu0 0
        %2456 = vmatpush1.bf16.msra.mxu0 0
        %2457 = vmatprep.subr.bf16.mxu0 0
        %2458 = vmatpush1.bf16.msra.mxu0 0
        %2459 = vmatprep.subr.bf16.mxu0 0
        %2460 = vmatpush1.bf16.msra.mxu0 0
        %2461 = vmatprep.subr.bf16.mxu0 0
        %2462 = vmatpush1.bf16.msra.mxu0 %v1657
        %2463 = vmatprep.subr.bf16.mxu0 0
        %2464 = vmatpush1.bf16.msra.mxu0 %v1656
        %2465 = vmatprep.subr.bf16.mxu0 0
        %2466 = vmatpush2.bf16.msra.mxu0 0
        %2467 = vmatprep.subr.bf16.mxu0 0
        %2468 = vmatpush2.bf16.msra.mxu0 0
        %2469 = vmatprep.subr.bf16.mxu0 0
        %2470 = vmatpush2.bf16.msra.mxu0 0
        %2471 = vmatprep.subr.bf16.mxu0 0
        %2472 = vmatpush2.bf16.msra.mxu0 0
        %2473 = vmatprep.subr.bf16.mxu0 0
        %2474 = vmatpush2.bf16.msra.mxu0 0
        %2475 = vmatprep.subr.bf16.mxu0 0
        %2476 = vmatpush2.bf16.msra.mxu0 0
        %2477 = vmatprep.subr.bf16.mxu0 0
        %2478 = vmatpush2.bf16.msra.mxu0 0
        %2479 = vmatprep.subr.bf16.mxu0 0
        %2480 = vmatpush2.bf16.msra.mxu0 0
        %2481 = vmatprep.mubr.bf16.mxu0 0
        %2482 = vmatmul.mubr.bf16.gmra.mxu0 %v2350
        %v2483 = vpop.f32.mrf.mxu0
        %v2484 = vadd.f32 %v1646, %v2483
        %v2485 = vpop.f32.mrf.mxu0
        %v2486 = vpop.f32.mrf.mxu0
        %v2487 = vpop.f32.mrf.mxu0
        %2488 = vdwg.mxu0
        %v2489 = vmul.f32 %v2439, %v2484
        %v2490 = vadd.f32 %v2448, %v2489
        %v2491 = vtanh.pop %v2490
        %v2492 = vsub.f32 1.0, %v2447
        %v2493 = vmul.f32 %v2492, %v2491
        %v2494 = vmul.f32 %v2447, %v2347
        %v2495 = vadd.f32 %v2493, %v2494
        %vm2496 = vcmp.gt.s32.totalorder %v1515, 5
        %v2497 = vsel %vm2496, 1, 0
        %2498 = vset.pattern.permute.xlu0 0
        %2499 = vperm.xlu0 %2498, %v2497
        %v2500 = vpop.permute.xlu0 %2499
        %vm2501 = vcmp.eq.s32.totalorder %v2500, 1
        %v2502 = vsel %vm2501, %v2495, 0.0
        %s2503 = scalar_lea.vmem %s349, 20 [#allocation6]
        %2504 = vst.msk [vmem:[%s2503] sm:$0xf] %vm460, %v2502
        %v2505 = vsel %vm2501, %v2495, %v2347
        %v2506 = vpack.c.bf16 %v2505, %v2505
        %v2508 = vsel %vm416, %v2506, 0
        %2510 = vmatprep.subr.bf16.mxu0 0
        %2511 = vmatpush1.bf16.msra.mxu0 0
        %2512 = vmatprep.subr.bf16.mxu0 0
        %2513 = vmatpush1.bf16.msra.mxu0 0
        %2514 = vmatprep.subr.bf16.mxu0 0
        %2515 = vmatpush1.bf16.msra.mxu0 0
        %2516 = vmatprep.subr.bf16.mxu0 0
        %2517 = vmatpush1.bf16.msra.mxu0 0
        %2518 = vmatprep.subr.bf16.mxu0 0
        %2519 = vmatpush1.bf16.msra.mxu0 0
        %2520 = vmatprep.subr.bf16.mxu0 0
        %2521 = vmatpush1.bf16.msra.mxu0 0
        %2522 = vmatprep.subr.bf16.mxu0 0
        %2523 = vmatpush1.bf16.msra.mxu0 %v1527
        %2524 = vmatprep.subr.bf16.mxu0 0
        %2525 = vmatpush1.bf16.msra.mxu0 %v1526
        %2526 = vmatprep.subr.bf16.mxu0 0
        %2527 = vmatpush2.bf16.msra.mxu0 0
        %2528 = vmatprep.subr.bf16.mxu0 0
        %2529 = vmatpush2.bf16.msra.mxu0 0
        %2530 = vmatprep.subr.bf16.mxu0 0
        %2531 = vmatpush2.bf16.msra.mxu0 0
        %2532 = vmatprep.subr.bf16.mxu0 0
        %2533 = vmatpush2.bf16.msra.mxu0 0
        %2534 = vmatprep.subr.bf16.mxu0 0
        %2535 = vmatpush2.bf16.msra.mxu0 0
        %2536 = vmatprep.subr.bf16.mxu0 0
        %2537 = vmatpush2.bf16.msra.mxu0 0
        %2538 = vmatprep.subr.bf16.mxu0 0
        %2539 = vmatpush2.bf16.msra.mxu0 0
        %2540 = vmatprep.subr.bf16.mxu0 0
        %2541 = vmatpush2.bf16.msra.mxu0 0
        %2542 = vmatprep.mubr.bf16.mxu0 0
        %2543 = vmatmul.mubr.bf16.gmra.mxu0 %v2508
        %v2544 = vpop.f32.mrf.mxu0
        %v2545 = vadd.f32 0.0, %v2544
        %v2546 = vpop.f32.mrf.mxu0
        %v2547 = vpop.f32.mrf.mxu0
        %v2548 = vpop.f32.mrf.mxu0
        %2549 = vdwg.mxu0
        %2550 = vmatprep.subr.bf16.mxu0 0
        %2551 = vmatpush1.bf16.msra.mxu0 0
        %2552 = vmatprep.subr.bf16.mxu0 0
        %2553 = vmatpush1.bf16.msra.mxu0 0
        %2554 = vmatprep.subr.bf16.mxu0 0
        %2555 = vmatpush1.bf16.msra.mxu0 0
        %2556 = vmatprep.subr.bf16.mxu0 0
        %2557 = vmatpush1.bf16.msra.mxu0 0
        %2558 = vmatprep.subr.bf16.mxu0 0
        %2559 = vmatpush1.bf16.msra.mxu0 0
        %2560 = vmatprep.subr.bf16.mxu0 0
        %2561 = vmatpush1.bf16.msra.mxu0 0
        %2562 = vmatprep.subr.bf16.mxu0 0
        %2563 = vmatpush1.bf16.msra.mxu0 %v1582
        %2564 = vmatprep.subr.bf16.mxu0 0
        %2565 = vmatpush1.bf16.msra.mxu0 %v1581
        %2566 = vmatprep.subr.bf16.mxu0 0
        %2567 = vmatpush2.bf16.msra.mxu0 0
        %2568 = vmatprep.subr.bf16.mxu0 0
        %2569 = vmatpush2.bf16.msra.mxu0 0
        %2570 = vmatprep.subr.bf16.mxu0 0
        %2571 = vmatpush2.bf16.msra.mxu0 0
        %2572 = vmatprep.subr.bf16.mxu0 0
        %2573 = vmatpush2.bf16.msra.mxu0 0
        %2574 = vmatprep.subr.bf16.mxu0 0
        %2575 = vmatpush2.bf16.msra.mxu0 0
        %2576 = vmatprep.subr.bf16.mxu0 0
        %2577 = vmatpush2.bf16.msra.mxu0 0
        %2578 = vmatprep.subr.bf16.mxu0 0
        %2579 = vmatpush2.bf16.msra.mxu0 0
        %2580 = vmatprep.subr.bf16.mxu0 0
        %2581 = vmatpush2.bf16.msra.mxu0 0
        %2582 = vmatprep.mubr.bf16.mxu0 0
        %2583 = vmatmul.mubr.bf16.gmra.mxu0 %v2508
        %v2584 = vpop.f32.mrf.mxu0
        %v2585 = vadd.f32 0.0, %v2584
        %v2586 = vpop.f32.mrf.mxu0
        %v2587 = vpop.f32.mrf.mxu0
        %v2588 = vpop.f32.mrf.mxu0
        %2589 = vdwg.mxu0
        %v2590 = vld [vmem:[%s1280] sm:$0xf]
        %v2591 = vadd.f32 %v2590, %v2545
        %v2592 = vxor.u32 %v2591, 2147483648
        %v2593 = vmul.f32 %v2592, 1.442695
        %v2594 = vpow.pop %v2593
        %v2595 = vadd.f32 %v2594, 1.0
        %v2596 = vrcp.pop %v2595
        %v2597 = vmul.f32 1.0, %v2596
        %v2598 = vld [vmem:[%s1322] sm:$0xf]
        %v2599 = vadd.f32 %v2598, %v2585
        %v2600 = vxor.u32 %v2599, 2147483648
        %v2601 = vmul.f32 %v2600, 1.442695
        %v2602 = vpow.pop %v2601
        %v2603 = vadd.f32 %v2602, 1.0
        %v2604 = vrcp.pop %v2603
        %v2605 = vmul.f32 1.0, %v2604
        %v2606 = vld [vmem:[%s1364] sm:$0xf]
        %2607 = vmatprep.subr.bf16.mxu0 0
        %2608 = vmatpush1.bf16.msra.mxu0 0
        %2609 = vmatprep.subr.bf16.mxu0 0
        %2610 = vmatpush1.bf16.msra.mxu0 0
        %2611 = vmatprep.subr.bf16.mxu0 0
        %2612 = vmatpush1.bf16.msra.mxu0 0
        %2613 = vmatprep.subr.bf16.mxu0 0
        %2614 = vmatpush1.bf16.msra.mxu0 0
        %2615 = vmatprep.subr.bf16.mxu0 0
        %2616 = vmatpush1.bf16.msra.mxu0 0
        %2617 = vmatprep.subr.bf16.mxu0 0
        %2618 = vmatpush1.bf16.msra.mxu0 0
        %2619 = vmatprep.subr.bf16.mxu0 0
        %2620 = vmatpush1.bf16.msra.mxu0 %v1657
        %2621 = vmatprep.subr.bf16.mxu0 0
        %2622 = vmatpush1.bf16.msra.mxu0 %v1656
        %2623 = vmatprep.subr.bf16.mxu0 0
        %2624 = vmatpush2.bf16.msra.mxu0 0
        %2625 = vmatprep.subr.bf16.mxu0 0
        %2626 = vmatpush2.bf16.msra.mxu0 0
        %2627 = vmatprep.subr.bf16.mxu0 0
        %2628 = vmatpush2.bf16.msra.mxu0 0
        %2629 = vmatprep.subr.bf16.mxu0 0
        %2630 = vmatpush2.bf16.msra.mxu0 0
        %2631 = vmatprep.subr.bf16.mxu0 0
        %2632 = vmatpush2.bf16.msra.mxu0 0
        %2633 = vmatprep.subr.bf16.mxu0 0
        %2634 = vmatpush2.bf16.msra.mxu0 0
        %2635 = vmatprep.subr.bf16.mxu0 0
        %2636 = vmatpush2.bf16.msra.mxu0 0
        %2637 = vmatprep.subr.bf16.mxu0 0
        %2638 = vmatpush2.bf16.msra.mxu0 0
        %2639 = vmatprep.mubr.bf16.mxu0 0
        %2640 = vmatmul.mubr.bf16.gmra.mxu0 %v2508
        %v2641 = vpop.f32.mrf.mxu0
        %v2642 = vadd.f32 %v1646, %v2641
        %v2643 = vpop.f32.mrf.mxu0
        %v2644 = vpop.f32.mrf.mxu0
        %v2645 = vpop.f32.mrf.mxu0
        %2646 = vdwg.mxu0
        %v2647 = vmul.f32 %v2597, %v2642
        %v2648 = vadd.f32 %v2606, %v2647
        %v2649 = vtanh.pop %v2648
        %v2650 = vsub.f32 1.0, %v2605
        %v2651 = vmul.f32 %v2650, %v2649
        %v2652 = vmul.f32 %v2605, %v2505
        %v2653 = vadd.f32 %v2651, %v2652
        %vm2654 = vcmp.gt.s32.totalorder %v1515, 6
        %v2655 = vsel %vm2654, 1, 0
        %2656 = vset.pattern.permute.xlu0 0
        %2657 = vperm.xlu0 %2656, %v2655
        %v2658 = vpop.permute.xlu0 %2657
        %vm2659 = vcmp.eq.s32.totalorder %v2658, 1
        %v2660 = vsel %vm2659, %v2653, 0.0
        %s2661 = scalar_lea.vmem %s349, 24 [#allocation6]
        %2662 = vst.msk [vmem:[%s2661] sm:$0xf] %vm460, %v2660
        %v2663 = vsel %vm2659, %v2653, %v2505
        %v2664 = vpack.c.bf16 %v2663, %v2663
        %v2666 = vsel %vm416, %v2664, 0
        %2668 = vmatprep.subr.bf16.mxu0 0
        %2669 = vmatpush1.bf16.msra.mxu0 0
        %2670 = vmatprep.subr.bf16.mxu0 0
        %2671 = vmatpush1.bf16.msra.mxu0 0
        %2672 = vmatprep.subr.bf16.mxu0 0
        %2673 = vmatpush1.bf16.msra.mxu0 0
        %2674 = vmatprep.subr.bf16.mxu0 0
        %2675 = vmatpush1.bf16.msra.mxu0 0
        %2676 = vmatprep.subr.bf16.mxu0 0
        %2677 = vmatpush1.bf16.msra.mxu0 0
        %2678 = vmatprep.subr.bf16.mxu0 0
        %2679 = vmatpush1.bf16.msra.mxu0 0
        %2680 = vmatprep.subr.bf16.mxu0 0
        %2681 = vmatpush1.bf16.msra.mxu0 %v1527
        %2682 = vmatprep.subr.bf16.mxu0 0
        %2683 = vmatpush1.bf16.msra.mxu0 %v1526
        %2684 = vmatprep.subr.bf16.mxu0 0
        %2685 = vmatpush2.bf16.msra.mxu0 0
        %2686 = vmatprep.subr.bf16.mxu0 0
        %2687 = vmatpush2.bf16.msra.mxu0 0
        %2688 = vmatprep.subr.bf16.mxu0 0
        %2689 = vmatpush2.bf16.msra.mxu0 0
        %2690 = vmatprep.subr.bf16.mxu0 0
        %2691 = vmatpush2.bf16.msra.mxu0 0
        %2692 = vmatprep.subr.bf16.mxu0 0
        %2693 = vmatpush2.bf16.msra.mxu0 0
        %2694 = vmatprep.subr.bf16.mxu0 0
        %2695 = vmatpush2.bf16.msra.mxu0 0
        %2696 = vmatprep.subr.bf16.mxu0 0
        %2697 = vmatpush2.bf16.msra.mxu0 0
        %2698 = vmatprep.subr.bf16.mxu0 0
        %2699 = vmatpush2.bf16.msra.mxu0 0
        %2700 = vmatprep.mubr.bf16.mxu0 0
        %2701 = vmatmul.mubr.bf16.gmra.mxu0 %v2666
        %v2702 = vpop.f32.mrf.mxu0
        %v2703 = vadd.f32 0.0, %v2702
        %v2704 = vpop.f32.mrf.mxu0
        %v2705 = vpop.f32.mrf.mxu0
        %v2706 = vpop.f32.mrf.mxu0
        %2707 = vdwg.mxu0
        %2708 = vmatprep.subr.bf16.mxu0 0
        %2709 = vmatpush1.bf16.msra.mxu0 0
        %2710 = vmatprep.subr.bf16.mxu0 0
        %2711 = vmatpush1.bf16.msra.mxu0 0
        %2712 = vmatprep.subr.bf16.mxu0 0
        %2713 = vmatpush1.bf16.msra.mxu0 0
        %2714 = vmatprep.subr.bf16.mxu0 0
        %2715 = vmatpush1.bf16.msra.mxu0 0
        %2716 = vmatprep.subr.bf16.mxu0 0
        %2717 = vmatpush1.bf16.msra.mxu0 0
        %2718 = vmatprep.subr.bf16.mxu0 0
        %2719 = vmatpush1.bf16.msra.mxu0 0
        %2720 = vmatprep.subr.bf16.mxu0 0
        %2721 = vmatpush1.bf16.msra.mxu0 %v1582
        %2722 = vmatprep.subr.bf16.mxu0 0
        %2723 = vmatpush1.bf16.msra.mxu0 %v1581
        %2724 = vmatprep.subr.bf16.mxu0 0
        %2725 = vmatpush2.bf16.msra.mxu0 0
        %2726 = vmatprep.subr.bf16.mxu0 0
        %2727 = vmatpush2.bf16.msra.mxu0 0
        %2728 = vmatprep.subr.bf16.mxu0 0
        %2729 = vmatpush2.bf16.msra.mxu0 0
        %2730 = vmatprep.subr.bf16.mxu0 0
        %2731 = vmatpush2.bf16.msra.mxu0 0
        %2732 = vmatprep.subr.bf16.mxu0 0
        %2733 = vmatpush2.bf16.msra.mxu0 0
        %2734 = vmatprep.subr.bf16.mxu0 0
        %2735 = vmatpush2.bf16.msra.mxu0 0
        %2736 = vmatprep.subr.bf16.mxu0 0
        %2737 = vmatpush2.bf16.msra.mxu0 0
        %2738 = vmatprep.subr.bf16.mxu0 0
        %2739 = vmatpush2.bf16.msra.mxu0 0
        %2740 = vmatprep.mubr.bf16.mxu0 0
        %2741 = vmatmul.mubr.bf16.gmra.mxu0 %v2666
        %v2742 = vpop.f32.mrf.mxu0
        %v2743 = vadd.f32 0.0, %v2742
        %v2744 = vpop.f32.mrf.mxu0
        %v2745 = vpop.f32.mrf.mxu0
        %v2746 = vpop.f32.mrf.mxu0
        %2747 = vdwg.mxu0
        %v2748 = vld [vmem:[%s1411] sm:$0xf]
        %v2749 = vadd.f32 %v2748, %v2703
        %v2750 = vxor.u32 %v2749, 2147483648
        %v2751 = vmul.f32 %v2750, 1.442695
        %v2752 = vpow.pop %v2751
        %v2753 = vadd.f32 %v2752, 1.0
        %v2754 = vrcp.pop %v2753
        %v2755 = vmul.f32 1.0, %v2754
        %v2756 = vld [vmem:[%s1453] sm:$0xf]
        %v2757 = vadd.f32 %v2756, %v2743
        %v2758 = vxor.u32 %v2757, 2147483648
        %v2759 = vmul.f32 %v2758, 1.442695
        %v2760 = vpow.pop %v2759
        %v2761 = vadd.f32 %v2760, 1.0
        %v2762 = vrcp.pop %v2761
        %v2763 = vmul.f32 1.0, %v2762
        %v2764 = vld [vmem:[%s1495] sm:$0xf]
        %2765 = vmatprep.subr.bf16.mxu0 0
        %2766 = vmatpush1.bf16.msra.mxu0 0
        %2767 = vmatprep.subr.bf16.mxu0 0
        %2768 = vmatpush1.bf16.msra.mxu0 0
        %2769 = vmatprep.subr.bf16.mxu0 0
        %2770 = vmatpush1.bf16.msra.mxu0 0
        %2771 = vmatprep.subr.bf16.mxu0 0
        %2772 = vmatpush1.bf16.msra.mxu0 0
        %2773 = vmatprep.subr.bf16.mxu0 0
        %2774 = vmatpush1.bf16.msra.mxu0 0
        %2775 = vmatprep.subr.bf16.mxu0 0
        %2776 = vmatpush1.bf16.msra.mxu0 0
        %2777 = vmatprep.subr.bf16.mxu0 0
        %2778 = vmatpush1.bf16.msra.mxu0 %v1657
        %2779 = vmatprep.subr.bf16.mxu0 0
        %2780 = vmatpush1.bf16.msra.mxu0 %v1656
        %2781 = vmatprep.subr.bf16.mxu0 0
        %2782 = vmatpush2.bf16.msra.mxu0 0
        %2783 = vmatprep.subr.bf16.mxu0 0
        %2784 = vmatpush2.bf16.msra.mxu0 0
        %2785 = vmatprep.subr.bf16.mxu0 0
        %2786 = vmatpush2.bf16.msra.mxu0 0
        %2787 = vmatprep.subr.bf16.mxu0 0
        %2788 = vmatpush2.bf16.msra.mxu0 0
        %2789 = vmatprep.subr.bf16.mxu0 0
        %2790 = vmatpush2.bf16.msra.mxu0 0
        %2791 = vmatprep.subr.bf16.mxu0 0
        %2792 = vmatpush2.bf16.msra.mxu0 0
        %2793 = vmatprep.subr.bf16.mxu0 0
        %2794 = vmatpush2.bf16.msra.mxu0 0
        %2795 = vmatprep.subr.bf16.mxu0 0
        %2796 = vmatpush2.bf16.msra.mxu0 0
        %2797 = vmatprep.mubr.bf16.mxu0 0
        %2798 = vmatmul.mubr.bf16.gmra.mxu0 %v2666
        %v2799 = vpop.f32.mrf.mxu0
        %v2800 = vadd.f32 %v1646, %v2799
        %v2801 = vpop.f32.mrf.mxu0
        %v2802 = vpop.f32.mrf.mxu0
        %v2803 = vpop.f32.mrf.mxu0
        %2804 = vdwg.mxu0
        %v2805 = vmul.f32 %v2755, %v2800
        %v2806 = vadd.f32 %v2764, %v2805
        %v2807 = vtanh.pop %v2806
        %v2808 = vsub.f32 1.0, %v2763
        %v2809 = vmul.f32 %v2808, %v2807
        %v2810 = vmul.f32 %v2763, %v2663
        %v2811 = vadd.f32 %v2809, %v2810
        %vm2812 = vcmp.gt.s32.totalorder %v1515, 7
        %v2813 = vsel %vm2812, 1, 0
        %2814 = vset.pattern.permute.xlu0 0
        %2815 = vperm.xlu0 %2814, %v2813
        %v2816 = vpop.permute.xlu0 %2815
        %vm2817 = vcmp.eq.s32.totalorder %v2816, 1
        %v2818 = vsel %vm2817, %v2811, 0.0
        %s2819 = scalar_lea.vmem %s349, 28 [#allocation6]
        %2820 = vst.msk [vmem:[%s2819] sm:$0xf] %vm460, %v2818
        %v2821 = vsel %vm2817, %v2811, %v2663
        %2822 = vst.msk [vmem:[#allocation5] sm:$0xf] %vm460, %v2821
        %p2823 = scmp.eq.s32.totalorder %s29, 1
        // Predicated region
        $region53: #{encoder_forward.1} parent=47 // pred_check
          %p2824 = pneg %p2823
        $region54: #{encoder_forward.1} parent=47 // pred_check_branch
          %2826 = sbr.rel (%p2824) target = $region56
        $region55: #{encoder_forward.1} parent=47 // pred_region
          %2827 = vst.msk [vmem:[#allocation8] sm:$0xf] %vm460, %v2821
        $region56: #{encoder_forward.1} parent=47 // pred_fallthru
          _
        %s2828 = sand.u32 %s210, 1
        %s2829 = scalar_lea.sflag [#allocation7], %s2828
        %s2830 = sand.u32 %s210, 1
        %s2831 = smul.addr %s2830, 32
        %s2832 = scalar_lea.vmem [#allocation6], %s2831
        // Predicated region
        $region57: #{encoder_forward.1} parent=47 // pred_check
          %p2833 = pneg %p220
        $region58: #{encoder_forward.1} parent=47 // pred_check_branch
          %2835 = sbr.rel (%p2833) target = $region60
        $region59: #{encoder_forward.1} parent=47 // pred_region
          %s2836 = smul.u32 8, %s29
          %s2838 = ssub.s32 512, 512
          %2839 = vsyncadd %s2829, %s2838
          %s2840 = sadd.s32 %s28, %s2836
          %s2841 = smul.addr %s2840, 64
          %s2842 = scalar_lea.hbm %s7, %s2841
          %s2843 = sshll.u32 %s2832, 4
          %s2844 = int_to_ptr.vmem [resolvable:$true] %s2843
          %2849 = dma.vmem_to_hbm [thread:$0]  %s2844, 512, %s2842, %s2829, 64, 64, 4
        $region60: #{encoder_forward.1} parent=47 // pred_fallthru
          _
        // Predicated region
        $region61: #{encoder_forward.1} parent=47 // pred_check
          %p2850 = pneg %p246
        $region62: #{encoder_forward.1} parent=47 // pred_check_branch
          %2852 = sbr.rel (%p2850) target = $region64
        $region63: #{encoder_forward.1} parent=47 // pred_region
          %s2854 = ssub.s32 64, 64
          %2855 = vsyncadd [#allocation9], %s2854
          %s2856 = smul.addr %s28, 64
          %s2857 = scalar_lea.hbm %s8, %s2856
          %s2859 = sshll.u32 [#allocation8], 4
          %s2860 = int_to_ptr.vmem [resolvable:$true] %s2859
          %2862 = dma.vmem_to_hbm [thread:$0]  %s2860, 64, %s2857, [#allocation9]
        $region64: #{encoder_forward.1} parent=47 // pred_fallthru
          _
        // Predicated region
        $region65: #{encoder_forward.1} parent=47 // pred_check
          %p2863 = pneg %p246
        $region66: #{encoder_forward.1} parent=47 // pred_check_branch
          %2865 = sbr.rel (%p2863) target = $region68
        $region67: #{encoder_forward.1} parent=47 // pred_region
          %2866 = dma.done [#allocation9], 64
        $region68: #{encoder_forward.1} parent=47 // pred_fallthru
          _
      $region48: #{encoder_forward.1} parent=5 // pred_fallthru
        _
      %p2867 = scmp.le.s32.totalorder 2, %s19
      // Predicated region
      $region69: #{encoder_forward.1} parent=5 // pred_check
        %p2868 = pneg %p2867
      $region70: #{encoder_forward.1} parent=5 // pred_check_branch
        %2870 = sbr.rel (%p2868) target = $region72
      $region71: #{encoder_forward.1} parent=5 // pred_region
        %s2871 = ssub.s32 %s19, 2
        // Predicated region
        $region73: #{encoder_forward.1} parent=71 // pred_check
          %p2872 = pneg %p226
        $region74: #{encoder_forward.1} parent=71 // pred_check_branch
          %2874 = sbr.rel (%p2872) target = $region76
        $region75: #{encoder_forward.1} parent=71 // pred_region
          %s2875 = sand.u32 %s211, 1
          %s2876 = scalar_lea.sflag [#allocation7], %s2875
          %s2877 = sand.u32 %s211, 1
          %s2878 = smul.addr %s2877, 32
          %s2879 = scalar_lea.vmem [#allocation6], %s2878
          %2880 = dma.done %s2876, 512
        $region76: #{encoder_forward.1} parent=71 // pred_fallthru
          _
      $region72: #{encoder_forward.1} parent=5 // pred_fallthru
        _
    $region6: #{encoder_forward.1} parent=1 // loop_footer
      %s23 = sadd.s32 1, %s19
    $region7: #{encoder_forward.1} parent=1 // loop_footer_branch
      %18 = sbr.rel target = $region3
    $region8: #{encoder_forward.1} parent=1 // loop_exit
      _
    %2881 = vsyncpa [#allocation7], 1
    %s2882 = scalar_lea.sflag [#allocation7], 1
    %2883 = vsyncpa %s2882, 1
    %2884 = vsyncpa [#allocation9], 1

</llo_original>
